<compile_context>
chip_gen: v7x
topology: tpu7x:2x2x1
jax: 0.10.0
libtpu: 0.0.40
codegen_flags: <defaults>
</compile_context>

<pallas_src>
import functools

import jax
import jax.numpy as jnp
import numpy as np
from jax.experimental import pallas as pl
from jax.experimental.pallas import tpu as pltpu

HIDDEN = 128   # hidden_size
VOCAB = 256    # output_size


def decoder_chunk_kernel(tok_ref,       # (Tc, Bb, 1) int32  token ids for this chunk/block
                         h0_ref,        # (Bb, H)  f32       initial hidden
                         gi_tab_ref,    # (V, 3H)  bf16      relu(emb) @ W_ih + b_ih
                         w_hh_ref,      # (H, 3H)  bf16
                         b_hh_ref,      # (1, 3H)  f32
                         w_out_ref,     # (H, V)   bf16
                         b_out_ref,     # (1, V)   f32
                         logp_ref,      # (Tc, Bb, V) f32 out
                         h_out_ref,     # (Bb, H)  f32 out
                         h_scratch):    # (Bb, H)  f32 VMEM carry across T-chunks
    t_blk = pl.program_id(1)

    t_chunk = tok_ref.shape[0]
    Bb, H = h0_ref.shape
    V = b_out_ref.shape[1]

    @pl.when(t_blk == 0)
    def _():
        h_scratch[...] = h0_ref[...]

    # Hoisted loop-invariant loads / iota (JAX does not CSE broadcast_in_dim).
    col_iota = jax.lax.broadcasted_iota(jnp.int32, (Bb, V), 1)
    gi_tab = gi_tab_ref[...]
    w_hh = w_hh_ref[...]
    b_hh = b_hh_ref[...]
    w_out = w_out_ref[...]
    b_out = b_out_ref[...]

    def step(t_local, h):
        # ---- gather gi = relu(emb[tok]) @ W_ih + b_ih via one-hot MXU matmul ----
        tok_col = tok_ref[t_local]                                   # (Bb, 1) int32
        onehot = (col_iota == tok_col).astype(jnp.bfloat16)          # (Bb, V)
        gi = jnp.dot(onehot, gi_tab, preferred_element_type=jnp.float32)   # (Bb, 3H)

        # ---- recurrent gate matmul (exact PyTorch GRU math) ----
        gh = jnp.dot(h.astype(jnp.bfloat16), w_hh,
                     preferred_element_type=jnp.float32) + b_hh      # (Bb, 3H)
        r = jax.nn.sigmoid(gi[:, :H] + gh[:, :H])
        z = jax.nn.sigmoid(gi[:, H:2 * H] + gh[:, H:2 * H])
        n = jnp.tanh(gi[:, 2 * H:] + r * gh[:, 2 * H:])
        h_new = (1.0 - z) * n + z * h

        # ---- output projection + numerically stable log-softmax (dim=1) ----
        logits = jnp.dot(h_new.astype(jnp.bfloat16), w_out,
                         preferred_element_type=jnp.float32) + b_out  # (Bb, V)
        m = jnp.max(logits, axis=-1, keepdims=True)
        shifted = logits - m
        lse = jnp.log(jnp.sum(jnp.exp(shifted), axis=-1, keepdims=True))
        logp_ref[t_local] = shifted - lse                             # lane-dense (Bb, V) slab
        return h_new

    h_final = jax.lax.fori_loop(0, t_chunk, step, h_scratch[...],
                                unroll=bool(t_chunk <= 32))
    h_scratch[...] = h_final

    @pl.when(t_blk == pl.num_programs(1) - 1)
    def _():
        h_out_ref[...] = h_final


def make_params(key, hidden=HIDDEN, vocab=VOCAB):
    ks = jax.random.split(key, 7)
    s = 0.05
    return {
        "embedding": (jax.random.normal(ks[0], (vocab, hidden)) * s).astype(jnp.float32),
        # stored as (in_features, out_features) == transpose of the PyTorch layout
        "w_ih": (jax.random.normal(ks[1], (hidden, 3 * hidden)) * s).astype(jnp.float32),
        "w_hh": (jax.random.normal(ks[2], (hidden, 3 * hidden)) * s).astype(jnp.float32),
        "b_ih": (jax.random.normal(ks[3], (1, 3 * hidden)) * s).astype(jnp.float32),
        "b_hh": (jax.random.normal(ks[4], (1, 3 * hidden)) * s).astype(jnp.float32),
        "w_out": (jax.random.normal(ks[5], (hidden, vocab)) * s).astype(jnp.float32),
        "b_out": (jax.random.normal(ks[6], (1, vocab)) * s).astype(jnp.float32),
    }


def prepare_device_params(params):
    """One-time packing: fold relu(embedding)@W_ih + b_ih into a (V,3H) table."""
    x_tab = jnp.maximum(params["embedding"], 0.0)                      # relu(emb) per vocab row
    gi_table = (x_tab @ params["w_ih"] + params["b_ih"]).astype(jnp.bfloat16)   # (V, 3H)
    return {
        "gi_table": gi_table,                                          # bf16 (V, 3H), 192 KiB
        "w_hh": params["w_hh"].astype(jnp.bfloat16),                   # (H, 3H)
        "b_hh": params["b_hh"],                                        # (1, 3H) f32
        "w_out": params["w_out"].astype(jnp.bfloat16),                 # (H, V)
        "b_out": params["b_out"],                                      # (1, V) f32
    }


@functools.partial(jax.jit, static_argnames=("t_chunk", "b_block"))
def decoder_rnn_decode(tokens, h0, dp, *, t_chunk=None, b_block=None):
    """Run T decoder steps for B independent streams.

    tokens: (T, B) int32 token ids; h0: (B, HIDDEN) f32 initial hidden.
    Returns (log_probs (T, B, VOCAB) f32, final_hidden (1, B, HIDDEN) f32).
    Each (step, stream) matches DecoderRNN.forward semantics.
    """
    T, B = tokens.shape
    H, V = HIDDEN, VOCAB

    if t_chunk is None:
        t_chunk = min(T, 128)          # whole sequence in one kernel body for short T
    if b_block is None:
        b_block = B                    # set B//2 to shard streams over v7x's two TCs
    assert T % t_chunk == 0 and B % b_block == 0
    assert b_block % 8 == 0            # keep sublane tiling happy

    tokens3 = tokens.reshape(T, B, 1)  # per-step (B,1) columns -> vectorized one-hot

    grid = (B // b_block, T // t_chunk)
    grid_spec = pltpu.PrefetchScalarGridSpec(
        num_scalar_prefetch=0,
        grid=grid,
        in_specs=[
            pl.BlockSpec((t_chunk, b_block, 1), lambda b, t: (t, b, 0)),   # token ids
            pl.BlockSpec((b_block, H), lambda b, t: (b, 0)),               # h0
            pl.BlockSpec((V, 3 * H), lambda b, t: (0, 0)),                 # gi_table (resident)
            pl.BlockSpec((H, 3 * H), lambda b, t: (0, 0)),                 # W_hh
            pl.BlockSpec((1, 3 * H), lambda b, t: (0, 0)),                 # b_hh
            pl.BlockSpec((H, V), lambda b, t: (0, 0)),                     # W_out
            pl.BlockSpec((1, V), lambda b, t: (0, 0)),                     # b_out
        ],
        out_specs=(
            pl.BlockSpec((t_chunk, b_block, V), lambda b, t: (t, b, 0)),   # log-prob slabs
            pl.BlockSpec((b_block, H), lambda b, t: (b, 0)),               # final hidden
        ),
        scratch_shapes=[pltpu.VMEM((b_block, H), jnp.float32)],            # hidden carry
    )

    logp, h_final = pl.pallas_call(
        decoder_chunk_kernel,
        grid_spec=grid_spec,
        out_shape=(jax.ShapeDtypeStruct((T, B, V), jnp.float32),
                   jax.ShapeDtypeStruct((B, H), jnp.float32)),
        compiler_params=pltpu.CompilerParams(
            # batch-block axis is embarrassingly parallel (v7x dual-TC);
            # T-chunk axis is a sequential recurrence.
            dimension_semantics=("parallel", "arbitrary")),
    )(tokens3, h0, dp["gi_table"], dp["w_hh"], dp["b_hh"], dp["w_out"], dp["b_out"])
    return logp, h_final.reshape(1, B, H)


def reference_decode(tokens, h0, dp):
    """Pure-JAX reference mirroring the kernel's bf16 weight/table casts."""
    H = HIDDEN
    gi_tab = dp["gi_table"].astype(jnp.float32)      # (V, 3H) = relu(emb)@W_ih + b_ih
    w_hh = dp["w_hh"].astype(jnp.float32)
    w_out = dp["w_out"].astype(jnp.float32)
    b_hh, b_out = dp["b_hh"], dp["b_out"]

    def step(h, tok):
        gi = gi_tab[tok]                                            # (B, 3H)
        hb = h.astype(jnp.bfloat16).astype(jnp.float32)
        gh = hb @ w_hh + b_hh
        r = jax.nn.sigmoid(gi[:, :H] + gh[:, :H])
        z = jax.nn.sigmoid(gi[:, H:2 * H] + gh[:, H:2 * H])
        n = jnp.tanh(gi[:, 2 * H:] + r * gh[:, 2 * H:])
        h_new = (1.0 - z) * n + z * h
        logits = h_new.astype(jnp.bfloat16).astype(jnp.float32) @ w_out + b_out
        return h_new, jax.nn.log_softmax(logits, axis=-1)

    h_final, logps = jax.lax.scan(step, h0, tokens)
    return logps, h_final


if __name__ == "__main__":
    root = jax.random.PRNGKey(0)
    k_params, k_tok = jax.random.split(root)
    params = make_params(k_params)
    dp = prepare_device_params(params)

    T, B = 8, 8                                          # decode steps x independent streams
    tokens = jax.random.randint(k_tok, (T, B), 0, VOCAB, dtype=jnp.int32)
    h0 = jnp.zeros((B, HIDDEN), dtype=jnp.float32)       # initHidden() per stream

    # TODO(synk): on v7x pass b_block=B//2 to shard the independent streams
    # across both TensorCores (single-TC v5e/v6e keep the default b_block=B).
    log_probs, new_hidden = decoder_rnn_decode(tokens, h0, dp)
    jax.block_until_ready((log_probs, new_hidden))

    assert log_probs.shape == (T, B, VOCAB)
    assert new_hidden.shape == (1, B, HIDDEN)

    # Correctness vs a pure-JAX reference with identical bf16 casts.
    ref_logp, ref_h = reference_decode(tokens, h0, dp)
    np.testing.assert_allclose(np.asarray(log_probs), np.asarray(ref_logp),
                               rtol=5e-2, atol=5e-2)
    np.testing.assert_allclose(np.asarray(new_hidden[0]), np.asarray(ref_h),
                               rtol=5e-2, atol=5e-2)
    # every row is a valid log-probability distribution
    assert bool(jnp.all(jnp.abs(jnp.sum(jnp.exp(log_probs), axis=-1) - 1.0) < 1e-3))

    print("KERNEL_OK")
</pallas_src>

<mosaic_0001>
module attributes {stable_mosaic.version = 11 : i64} {
  func.func @decoder_chunk_kernel(%arg0: i32, %arg1: i32, %arg2: memref<8x8x1xi32, #tpu.memory_space<vmem>>, %arg3: memref<8x128xf32, #tpu.memory_space<vmem>>, %arg4: memref<256x384xbf16, #tpu.memory_space<vmem>>, %arg5: memref<128x384xbf16, #tpu.memory_space<vmem>>, %arg6: memref<1x384xf32, #tpu.memory_space<vmem>>, %arg7: memref<128x256xbf16, #tpu.memory_space<vmem>>, %arg8: memref<1x256xf32, #tpu.memory_space<vmem>>, %arg9: memref<8x8x256xf32, #tpu.memory_space<vmem>>, %arg10: memref<8x128xf32, #tpu.memory_space<vmem>>, %arg11: memref<8x128xf32, #tpu.memory_space<vmem>>) attributes {dimension_semantics = [#tpu.dimension_semantics<parallel>, #tpu.dimension_semantics<arbitrary>], iteration_bounds = array<i64: 1, 1>, scalar_prefetch = 0 : i64, scratch_operands = 1 : i64, tpu.core_type = #tpu.core_type<tc>, window_params = [{transform_indices = @transform_0, window_bounds = array<i64: 8, 8, 1>}, {transform_indices = @transform_1, window_bounds = array<i64: 8, 128>}, {pipeline_mode = #tpu.pipeline_mode<synchronous>, transform_indices = @transform_2, window_bounds = array<i64: 256, 384>}, {pipeline_mode = #tpu.pipeline_mode<synchronous>, transform_indices = @transform_3, window_bounds = array<i64: 128, 384>}, {pipeline_mode = #tpu.pipeline_mode<synchronous>, transform_indices = @transform_4, window_bounds = array<i64: 1, 384>}, {pipeline_mode = #tpu.pipeline_mode<synchronous>, transform_indices = @transform_5, window_bounds = array<i64: 128, 256>}, {pipeline_mode = #tpu.pipeline_mode<synchronous>, transform_indices = @transform_6, window_bounds = array<i64: 1, 256>}, {transform_indices = @transform_7, window_bounds = array<i64: 8, 8, 256>}, {transform_indices = @transform_8, window_bounds = array<i64: 8, 128>}]} {
    %c0_i32 = arith.constant 0 : i32
    %0 = arith.cmpi eq, %arg1, %c0_i32 : i32
    %1 = arith.extui %0 : i1 to i32
    %c0_i32_0 = arith.constant 0 : i32
    %2 = arith.cmpi ne, %1, %c0_i32_0 : i32
    scf.if %2 {
      %c0_112 = arith.constant 0 : index
      %c0_113 = arith.constant 0 : index
      %470 = vector.load %arg3[%c0_112, %c0_113] : memref<8x128xf32, #tpu.memory_space<vmem>>, vector<8x128xf32>
      %c0_114 = arith.constant 0 : index
      %c0_115 = arith.constant 0 : index
      %471 = vector.load %arg11[%c0_114, %c0_115] : memref<8x128xf32, #tpu.memory_space<vmem>>, vector<8x128xf32>
      tpu.vector_store %arg11[%c0_114, %c0_115], %470 {strides = array<i32>} : memref<8x128xf32, #tpu.memory_space<vmem>>, vector<8x128xf32>,
    } else {
    }
    %3 = tpu.iota {dimensions = array<i32: 1>} : vector<8x256xi32>
    %c0 = arith.constant 0 : index
    %c0_1 = arith.constant 0 : index
    %4 = vector.load %arg4[%c0, %c0_1] : memref<256x384xbf16, #tpu.memory_space<vmem>>, vector<256x384xbf16>
    %c0_2 = arith.constant 0 : index
    %c0_3 = arith.constant 0 : index
    %5 = vector.load %arg5[%c0_2, %c0_3] : memref<128x384xbf16, #tpu.memory_space<vmem>>, vector<128x384xbf16>
    %c0_4 = arith.constant 0 : index
    %c0_5 = arith.constant 0 : index
    %6 = vector.load %arg6[%c0_4, %c0_5] : memref<1x384xf32, #tpu.memory_space<vmem>>, vector<1x384xf32>
    %c0_6 = arith.constant 0 : index
    %c0_7 = arith.constant 0 : index
    %7 = vector.load %arg7[%c0_6, %c0_7] : memref<128x256xbf16, #tpu.memory_space<vmem>>, vector<128x256xbf16>
    %c0_8 = arith.constant 0 : index
    %c0_9 = arith.constant 0 : index
    %8 = vector.load %arg8[%c0_8, %c0_9] : memref<1x256xf32, #tpu.memory_space<vmem>>, vector<1x256xf32>
    %c0_10 = arith.constant 0 : index
    %c0_11 = arith.constant 0 : index
    %9 = vector.load %arg11[%c0_10, %c0_11] : memref<8x128xf32, #tpu.memory_space<vmem>>, vector<8x128xf32>
    %c0_i32_12 = arith.constant 0 : i32
    %10 = arith.index_cast %c0_i32_12 : i32 to index
    %c0_13 = arith.constant 0 : index
    %c0_14 = arith.constant 0 : index
    %11 = vector.load %arg2[%10, %c0_13, %c0_14] : memref<8x8x1xi32, #tpu.memory_space<vmem>>, vector<1x8x1xi32>
    %12 = vector.shape_cast %11 : vector<1x8x1xi32> to vector<8x1xi32>
    %13 = vector.broadcast %12 : vector<8x1xi32> to vector<8x256xi32>
    %14 = arith.cmpi eq, %3, %13 : vector<8x256xi32>
    %15 = arith.extui %14 : vector<8x256xi1> to vector<8x256xi32>
    %16 = arith.sitofp %15 : vector<8x256xi32> to vector<8x256xf32>
    %17 = arith.truncf %16 : vector<8x256xf32> to vector<8x256xbf16>
    %cst = arith.constant dense<0.000000e+00> : vector<8x384xf32>
    %18 = tpu.matmul %17, %4, %cst {dimension_numbers = #tpu.dot_dimension_numbers<[1], [0], [0], [1], [0, 0, 1, 1], [], []>} : vector<8x256xbf16>, vector<256x384xbf16>, vector<8x384xf32> -> vector<8x384xf32>
    %19 = arith.truncf %9 : vector<8x128xf32> to vector<8x128xbf16>
    %cst_15 = arith.constant dense<0.000000e+00> : vector<8x384xf32>
    %20 = tpu.matmul %19, %5, %cst_15 {dimension_numbers = #tpu.dot_dimension_numbers<[1], [0], [0], [1], [0, 0, 1, 1], [], []>} : vector<8x128xbf16>, vector<128x384xbf16>, vector<8x384xf32> -> vector<8x384xf32>
    %21 = vector.broadcast %6 : vector<1x384xf32> to vector<8x384xf32>
    %22 = arith.addf %20, %21 : vector<8x384xf32>
    %23 = vector.extract_strided_slice %18 {offsets = [0, 0], sizes = [8, 128], strides = [1, 1]} : vector<8x384xf32> to vector<8x128xf32>
    %24 = vector.extract_strided_slice %22 {offsets = [0, 0], sizes = [8, 128], strides = [1, 1]} : vector<8x384xf32> to vector<8x128xf32>
    %25 = arith.addf %23, %24 : vector<8x128xf32>
    %26 = arith.negf %25 : vector<8x128xf32>
    %27 = math.exp %26 : vector<8x128xf32>
    %cst_16 = arith.constant 1.000000e+00 : f32
    %28 = vector.broadcast %cst_16 : f32 to vector<8x128xf32>
    %29 = arith.addf %28, %27 : vector<8x128xf32>
    %30 = arith.divf %28, %29 : vector<8x128xf32>
    %31 = vector.extract_strided_slice %18 {offsets = [0, 128], sizes = [8, 128], strides = [1, 1]} : vector<8x384xf32> to vector<8x128xf32>
    %32 = vector.extract_strided_slice %22 {offsets = [0, 128], sizes = [8, 128], strides = [1, 1]} : vector<8x384xf32> to vector<8x128xf32>
    %33 = arith.addf %31, %32 : vector<8x128xf32>
    %34 = arith.negf %33 : vector<8x128xf32>
    %35 = math.exp %34 : vector<8x128xf32>
    %cst_17 = arith.constant 1.000000e+00 : f32
    %36 = vector.broadcast %cst_17 : f32 to vector<8x128xf32>
    %37 = arith.addf %36, %35 : vector<8x128xf32>
    %38 = arith.divf %36, %37 : vector<8x128xf32>
    %39 = vector.extract_strided_slice %18 {offsets = [0, 256], sizes = [8, 128], strides = [1, 1]} : vector<8x384xf32> to vector<8x128xf32>
    %40 = vector.extract_strided_slice %22 {offsets = [0, 256], sizes = [8, 128], strides = [1, 1]} : vector<8x384xf32> to vector<8x128xf32>
    %41 = arith.mulf %30, %40 : vector<8x128xf32>
    %42 = arith.addf %39, %41 : vector<8x128xf32>
    %43 = math.tanh %42 : vector<8x128xf32>
    %cst_18 = arith.constant 1.000000e+00 : f32
    %44 = vector.broadcast %cst_18 : f32 to vector<8x128xf32>
    %45 = arith.subf %44, %38 : vector<8x128xf32>
    %46 = arith.mulf %45, %43 : vector<8x128xf32>
    %47 = arith.mulf %38, %9 : vector<8x128xf32>
    %48 = arith.addf %46, %47 : vector<8x128xf32>
    %49 = arith.truncf %48 : vector<8x128xf32> to vector<8x128xbf16>
    %cst_19 = arith.constant dense<0.000000e+00> : vector<8x256xf32>
    %50 = tpu.matmul %49, %7, %cst_19 {dimension_numbers = #tpu.dot_dimension_numbers<[1], [0], [0], [1], [0, 0, 1, 1], [], []>} : vector<8x128xbf16>, vector<128x256xbf16>, vector<8x256xf32> -> vector<8x256xf32>
    %51 = vector.broadcast %8 : vector<1x256xf32> to vector<8x256xf32>
    %52 = arith.addf %50, %51 : vector<8x256xf32>
    %cst_20 = arith.constant dense<0xFF800000> : vector<8xf32>
    %53 = vector.multi_reduction <maximumf>, %52, %cst_20 [1] : vector<8x256xf32> to vector<8xf32>
    %54 = vector.shape_cast %53 : vector<8xf32> to vector<8x1xf32>
    %55 = vector.broadcast %54 : vector<8x1xf32> to vector<8x256xf32>
    %56 = arith.subf %52, %55 : vector<8x256xf32>
    %57 = math.exp %56 : vector<8x256xf32>
    %cst_21 = arith.constant dense<0.000000e+00> : vector<8xf32>
    %58 = vector.multi_reduction <add>, %57, %cst_21 [1] : vector<8x256xf32> to vector<8xf32>
    %59 = vector.shape_cast %58 : vector<8xf32> to vector<8x1xf32>
    %60 = math.log %59 : vector<8x1xf32>
    %61 = vector.broadcast %60 : vector<8x1xf32> to vector<8x256xf32>
    %62 = arith.subf %56, %61 : vector<8x256xf32>
    %63 = arith.index_cast %c0_i32_12 : i32 to index
    %c0_22 = arith.constant 0 : index
    %c0_23 = arith.constant 0 : index
    %64 = vector.load %arg9[%63, %c0_22, %c0_23] : memref<8x8x256xf32, #tpu.memory_space<vmem>>, vector<1x8x256xf32>
    %65 = vector.shape_cast %64 : vector<1x8x256xf32> to vector<8x256xf32>
    %66 = vector.shape_cast %62 : vector<8x256xf32> to vector<1x8x256xf32>
    tpu.vector_store %arg9[%63, %c0_22, %c0_23], %66 {strides = array<i32>} : memref<8x8x256xf32, #tpu.memory_space<vmem>>, vector<1x8x256xf32>,
    %c1_i32 = arith.constant 1 : i32
    %67 = arith.index_cast %c1_i32 : i32 to index
    %c0_24 = arith.constant 0 : index
    %c0_25 = arith.constant 0 : index
    %68 = vector.load %arg2[%67, %c0_24, %c0_25] : memref<8x8x1xi32, #tpu.memory_space<vmem>>, vector<1x8x1xi32>
    %69 = vector.shape_cast %68 : vector<1x8x1xi32> to vector<8x1xi32>
    %70 = vector.broadcast %69 : vector<8x1xi32> to vector<8x256xi32>
    %71 = arith.cmpi eq, %3, %70 : vector<8x256xi32>
    %72 = arith.extui %71 : vector<8x256xi1> to vector<8x256xi32>
    %73 = arith.sitofp %72 : vector<8x256xi32> to vector<8x256xf32>
    %74 = arith.truncf %73 : vector<8x256xf32> to vector<8x256xbf16>
    %cst_26 = arith.constant dense<0.000000e+00> : vector<8x384xf32>
    %75 = tpu.matmul %74, %4, %cst_26 {dimension_numbers = #tpu.dot_dimension_numbers<[1], [0], [0], [1], [0, 0, 1, 1], [], []>} : vector<8x256xbf16>, vector<256x384xbf16>, vector<8x384xf32> -> vector<8x384xf32>
    %76 = arith.truncf %48 : vector<8x128xf32> to vector<8x128xbf16>
    %cst_27 = arith.constant dense<0.000000e+00> : vector<8x384xf32>
    %77 = tpu.matmul %76, %5, %cst_27 {dimension_numbers = #tpu.dot_dimension_numbers<[1], [0], [0], [1], [0, 0, 1, 1], [], []>} : vector<8x128xbf16>, vector<128x384xbf16>, vector<8x384xf32> -> vector<8x384xf32>
    %78 = vector.broadcast %6 : vector<1x384xf32> to vector<8x384xf32>
    %79 = arith.addf %77, %78 : vector<8x384xf32>
    %80 = vector.extract_strided_slice %75 {offsets = [0, 0], sizes = [8, 128], strides = [1, 1]} : vector<8x384xf32> to vector<8x128xf32>
    %81 = vector.extract_strided_slice %79 {offsets = [0, 0], sizes = [8, 128], strides = [1, 1]} : vector<8x384xf32> to vector<8x128xf32>
    %82 = arith.addf %80, %81 : vector<8x128xf32>
    %83 = arith.negf %82 : vector<8x128xf32>
    %84 = math.exp %83 : vector<8x128xf32>
    %cst_28 = arith.constant 1.000000e+00 : f32
    %85 = vector.broadcast %cst_28 : f32 to vector<8x128xf32>
    %86 = arith.addf %85, %84 : vector<8x128xf32>
    %87 = arith.divf %85, %86 : vector<8x128xf32>
    %88 = vector.extract_strided_slice %75 {offsets = [0, 128], sizes = [8, 128], strides = [1, 1]} : vector<8x384xf32> to vector<8x128xf32>
    %89 = vector.extract_strided_slice %79 {offsets = [0, 128], sizes = [8, 128], strides = [1, 1]} : vector<8x384xf32> to vector<8x128xf32>
    %90 = arith.addf %88, %89 : vector<8x128xf32>
    %91 = arith.negf %90 : vector<8x128xf32>
    %92 = math.exp %91 : vector<8x128xf32>
    %cst_29 = arith.constant 1.000000e+00 : f32
    %93 = vector.broadcast %cst_29 : f32 to vector<8x128xf32>
    %94 = arith.addf %93, %92 : vector<8x128xf32>
    %95 = arith.divf %93, %94 : vector<8x128xf32>
    %96 = vector.extract_strided_slice %75 {offsets = [0, 256], sizes = [8, 128], strides = [1, 1]} : vector<8x384xf32> to vector<8x128xf32>
    %97 = vector.extract_strided_slice %79 {offsets = [0, 256], sizes = [8, 128], strides = [1, 1]} : vector<8x384xf32> to vector<8x128xf32>
    %98 = arith.mulf %87, %97 : vector<8x128xf32>
    %99 = arith.addf %96, %98 : vector<8x128xf32>
    %100 = math.tanh %99 : vector<8x128xf32>
    %cst_30 = arith.constant 1.000000e+00 : f32
    %101 = vector.broadcast %cst_30 : f32 to vector<8x128xf32>
    %102 = arith.subf %101, %95 : vector<8x128xf32>
    %103 = arith.mulf %102, %100 : vector<8x128xf32>
    %104 = arith.mulf %95, %48 : vector<8x128xf32>
    %105 = arith.addf %103, %104 : vector<8x128xf32>
    %106 = arith.truncf %105 : vector<8x128xf32> to vector<8x128xbf16>
    %cst_31 = arith.constant dense<0.000000e+00> : vector<8x256xf32>
    %107 = tpu.matmul %106, %7, %cst_31 {dimension_numbers = #tpu.dot_dimension_numbers<[1], [0], [0], [1], [0, 0, 1, 1], [], []>} : vector<8x128xbf16>, vector<128x256xbf16>, vector<8x256xf32> -> vector<8x256xf32>
    %108 = vector.broadcast %8 : vector<1x256xf32> to vector<8x256xf32>
    %109 = arith.addf %107, %108 : vector<8x256xf32>
    %cst_32 = arith.constant dense<0xFF800000> : vector<8xf32>
    %110 = vector.multi_reduction <maximumf>, %109, %cst_32 [1] : vector<8x256xf32> to vector<8xf32>
    %111 = vector.shape_cast %110 : vector<8xf32> to vector<8x1xf32>
    %112 = vector.broadcast %111 : vector<8x1xf32> to vector<8x256xf32>
    %113 = arith.subf %109, %112 : vector<8x256xf32>
    %114 = math.exp %113 : vector<8x256xf32>
    %cst_33 = arith.constant dense<0.000000e+00> : vector<8xf32>
    %115 = vector.multi_reduction <add>, %114, %cst_33 [1] : vector<8x256xf32> to vector<8xf32>
    %116 = vector.shape_cast %115 : vector<8xf32> to vector<8x1xf32>
    %117 = math.log %116 : vector<8x1xf32>
    %118 = vector.broadcast %117 : vector<8x1xf32> to vector<8x256xf32>
    %119 = arith.subf %113, %118 : vector<8x256xf32>
    %120 = arith.index_cast %c1_i32 : i32 to index
    %c0_34 = arith.constant 0 : index
    %c0_35 = arith.constant 0 : index
    %121 = vector.load %arg9[%120, %c0_34, %c0_35] : memref<8x8x256xf32, #tpu.memory_space<vmem>>, vector<1x8x256xf32>
    %122 = vector.shape_cast %121 : vector<1x8x256xf32> to vector<8x256xf32>
    %123 = vector.shape_cast %119 : vector<8x256xf32> to vector<1x8x256xf32>
    tpu.vector_store %arg9[%120, %c0_34, %c0_35], %123 {strides = array<i32>} : memref<8x8x256xf32, #tpu.memory_space<vmem>>, vector<1x8x256xf32>,
    %c2_i32 = arith.constant 2 : i32
    %124 = arith.index_cast %c2_i32 : i32 to index
    %c0_36 = arith.constant 0 : index
    %c0_37 = arith.constant 0 : index
    %125 = vector.load %arg2[%124, %c0_36, %c0_37] : memref<8x8x1xi32, #tpu.memory_space<vmem>>, vector<1x8x1xi32>
    %126 = vector.shape_cast %125 : vector<1x8x1xi32> to vector<8x1xi32>
    %127 = vector.broadcast %126 : vector<8x1xi32> to vector<8x256xi32>
    %128 = arith.cmpi eq, %3, %127 : vector<8x256xi32>
    %129 = arith.extui %128 : vector<8x256xi1> to vector<8x256xi32>
    %130 = arith.sitofp %129 : vector<8x256xi32> to vector<8x256xf32>
    %131 = arith.truncf %130 : vector<8x256xf32> to vector<8x256xbf16>
    %cst_38 = arith.constant dense<0.000000e+00> : vector<8x384xf32>
    %132 = tpu.matmul %131, %4, %cst_38 {dimension_numbers = #tpu.dot_dimension_numbers<[1], [0], [0], [1], [0, 0, 1, 1], [], []>} : vector<8x256xbf16>, vector<256x384xbf16>, vector<8x384xf32> -> vector<8x384xf32>
    %133 = arith.truncf %105 : vector<8x128xf32> to vector<8x128xbf16>
    %cst_39 = arith.constant dense<0.000000e+00> : vector<8x384xf32>
    %134 = tpu.matmul %133, %5, %cst_39 {dimension_numbers = #tpu.dot_dimension_numbers<[1], [0], [0], [1], [0, 0, 1, 1], [], []>} : vector<8x128xbf16>, vector<128x384xbf16>, vector<8x384xf32> -> vector<8x384xf32>
    %135 = vector.broadcast %6 : vector<1x384xf32> to vector<8x384xf32>
    %136 = arith.addf %134, %135 : vector<8x384xf32>
    %137 = vector.extract_strided_slice %132 {offsets = [0, 0], sizes = [8, 128], strides = [1, 1]} : vector<8x384xf32> to vector<8x128xf32>
    %138 = vector.extract_strided_slice %136 {offsets = [0, 0], sizes = [8, 128], strides = [1, 1]} : vector<8x384xf32> to vector<8x128xf32>
    %139 = arith.addf %137, %138 : vector<8x128xf32>
    %140 = arith.negf %139 : vector<8x128xf32>
    %141 = math.exp %140 : vector<8x128xf32>
    %cst_40 = arith.constant 1.000000e+00 : f32
    %142 = vector.broadcast %cst_40 : f32 to vector<8x128xf32>
    %143 = arith.addf %142, %141 : vector<8x128xf32>
    %144 = arith.divf %142, %143 : vector<8x128xf32>
    %145 = vector.extract_strided_slice %132 {offsets = [0, 128], sizes = [8, 128], strides = [1, 1]} : vector<8x384xf32> to vector<8x128xf32>
    %146 = vector.extract_strided_slice %136 {offsets = [0, 128], sizes = [8, 128], strides = [1, 1]} : vector<8x384xf32> to vector<8x128xf32>
    %147 = arith.addf %145, %146 : vector<8x128xf32>
    %148 = arith.negf %147 : vector<8x128xf32>
    %149 = math.exp %148 : vector<8x128xf32>
    %cst_41 = arith.constant 1.000000e+00 : f32
    %150 = vector.broadcast %cst_41 : f32 to vector<8x128xf32>
    %151 = arith.addf %150, %149 : vector<8x128xf32>
    %152 = arith.divf %150, %151 : vector<8x128xf32>
    %153 = vector.extract_strided_slice %132 {offsets = [0, 256], sizes = [8, 128], strides = [1, 1]} : vector<8x384xf32> to vector<8x128xf32>
    %154 = vector.extract_strided_slice %136 {offsets = [0, 256], sizes = [8, 128], strides = [1, 1]} : vector<8x384xf32> to vector<8x128xf32>
    %155 = arith.mulf %144, %154 : vector<8x128xf32>
    %156 = arith.addf %153, %155 : vector<8x128xf32>
    %157 = math.tanh %156 : vector<8x128xf32>
    %cst_42 = arith.constant 1.000000e+00 : f32
    %158 = vector.broadcast %cst_42 : f32 to vector<8x128xf32>
    %159 = arith.subf %158, %152 : vector<8x128xf32>
    %160 = arith.mulf %159, %157 : vector<8x128xf32>
    %161 = arith.mulf %152, %105 : vector<8x128xf32>
    %162 = arith.addf %160, %161 : vector<8x128xf32>
    %163 = arith.truncf %162 : vector<8x128xf32> to vector<8x128xbf16>
    %cst_43 = arith.constant dense<0.000000e+00> : vector<8x256xf32>
    %164 = tpu.matmul %163, %7, %cst_43 {dimension_numbers = #tpu.dot_dimension_numbers<[1], [0], [0], [1], [0, 0, 1, 1], [], []>} : vector<8x128xbf16>, vector<128x256xbf16>, vector<8x256xf32> -> vector<8x256xf32>
    %165 = vector.broadcast %8 : vector<1x256xf32> to vector<8x256xf32>
    %166 = arith.addf %164, %165 : vector<8x256xf32>
    %cst_44 = arith.constant dense<0xFF800000> : vector<8xf32>
    %167 = vector.multi_reduction <maximumf>, %166, %cst_44 [1] : vector<8x256xf32> to vector<8xf32>
    %168 = vector.shape_cast %167 : vector<8xf32> to vector<8x1xf32>
    %169 = vector.broadcast %168 : vector<8x1xf32> to vector<8x256xf32>
    %170 = arith.subf %166, %169 : vector<8x256xf32>
    %171 = math.exp %170 : vector<8x256xf32>
    %cst_45 = arith.constant dense<0.000000e+00> : vector<8xf32>
    %172 = vector.multi_reduction <add>, %171, %cst_45 [1] : vector<8x256xf32> to vector<8xf32>
    %173 = vector.shape_cast %172 : vector<8xf32> to vector<8x1xf32>
    %174 = math.log %173 : vector<8x1xf32>
    %175 = vector.broadcast %174 : vector<8x1xf32> to vector<8x256xf32>
    %176 = arith.subf %170, %175 : vector<8x256xf32>
    %177 = arith.index_cast %c2_i32 : i32 to index
    %c0_46 = arith.constant 0 : index
    %c0_47 = arith.constant 0 : index
    %178 = vector.load %arg9[%177, %c0_46, %c0_47] : memref<8x8x256xf32, #tpu.memory_space<vmem>>, vector<1x8x256xf32>
    %179 = vector.shape_cast %178 : vector<1x8x256xf32> to vector<8x256xf32>
    %180 = vector.shape_cast %176 : vector<8x256xf32> to vector<1x8x256xf32>
    tpu.vector_store %arg9[%177, %c0_46, %c0_47], %180 {strides = array<i32>} : memref<8x8x256xf32, #tpu.memory_space<vmem>>, vector<1x8x256xf32>,
    %c3_i32 = arith.constant 3 : i32
    %181 = arith.index_cast %c3_i32 : i32 to index
    %c0_48 = arith.constant 0 : index
    %c0_49 = arith.constant 0 : index
    %182 = vector.load %arg2[%181, %c0_48, %c0_49] : memref<8x8x1xi32, #tpu.memory_space<vmem>>, vector<1x8x1xi32>
    %183 = vector.shape_cast %182 : vector<1x8x1xi32> to vector<8x1xi32>
    %184 = vector.broadcast %183 : vector<8x1xi32> to vector<8x256xi32>
    %185 = arith.cmpi eq, %3, %184 : vector<8x256xi32>
    %186 = arith.extui %185 : vector<8x256xi1> to vector<8x256xi32>
    %187 = arith.sitofp %186 : vector<8x256xi32> to vector<8x256xf32>
    %188 = arith.truncf %187 : vector<8x256xf32> to vector<8x256xbf16>
    %cst_50 = arith.constant dense<0.000000e+00> : vector<8x384xf32>
    %189 = tpu.matmul %188, %4, %cst_50 {dimension_numbers = #tpu.dot_dimension_numbers<[1], [0], [0], [1], [0, 0, 1, 1], [], []>} : vector<8x256xbf16>, vector<256x384xbf16>, vector<8x384xf32> -> vector<8x384xf32>
    %190 = arith.truncf %162 : vector<8x128xf32> to vector<8x128xbf16>
    %cst_51 = arith.constant dense<0.000000e+00> : vector<8x384xf32>
    %191 = tpu.matmul %190, %5, %cst_51 {dimension_numbers = #tpu.dot_dimension_numbers<[1], [0], [0], [1], [0, 0, 1, 1], [], []>} : vector<8x128xbf16>, vector<128x384xbf16>, vector<8x384xf32> -> vector<8x384xf32>
    %192 = vector.broadcast %6 : vector<1x384xf32> to vector<8x384xf32>
    %193 = arith.addf %191, %192 : vector<8x384xf32>
    %194 = vector.extract_strided_slice %189 {offsets = [0, 0], sizes = [8, 128], strides = [1, 1]} : vector<8x384xf32> to vector<8x128xf32>
    %195 = vector.extract_strided_slice %193 {offsets = [0, 0], sizes = [8, 128], strides = [1, 1]} : vector<8x384xf32> to vector<8x128xf32>
    %196 = arith.addf %194, %195 : vector<8x128xf32>
    %197 = arith.negf %196 : vector<8x128xf32>
    %198 = math.exp %197 : vector<8x128xf32>
    %cst_52 = arith.constant 1.000000e+00 : f32
    %199 = vector.broadcast %cst_52 : f32 to vector<8x128xf32>
    %200 = arith.addf %199, %198 : vector<8x128xf32>
    %201 = arith.divf %199, %200 : vector<8x128xf32>
    %202 = vector.extract_strided_slice %189 {offsets = [0, 128], sizes = [8, 128], strides = [1, 1]} : vector<8x384xf32> to vector<8x128xf32>
    %203 = vector.extract_strided_slice %193 {offsets = [0, 128], sizes = [8, 128], strides = [1, 1]} : vector<8x384xf32> to vector<8x128xf32>
    %204 = arith.addf %202, %203 : vector<8x128xf32>
    %205 = arith.negf %204 : vector<8x128xf32>
    %206 = math.exp %205 : vector<8x128xf32>
    %cst_53 = arith.constant 1.000000e+00 : f32
    %207 = vector.broadcast %cst_53 : f32 to vector<8x128xf32>
    %208 = arith.addf %207, %206 : vector<8x128xf32>
    %209 = arith.divf %207, %208 : vector<8x128xf32>
    %210 = vector.extract_strided_slice %189 {offsets = [0, 256], sizes = [8, 128], strides = [1, 1]} : vector<8x384xf32> to vector<8x128xf32>
    %211 = vector.extract_strided_slice %193 {offsets = [0, 256], sizes = [8, 128], strides = [1, 1]} : vector<8x384xf32> to vector<8x128xf32>
    %212 = arith.mulf %201, %211 : vector<8x128xf32>
    %213 = arith.addf %210, %212 : vector<8x128xf32>
    %214 = math.tanh %213 : vector<8x128xf32>
    %cst_54 = arith.constant 1.000000e+00 : f32
    %215 = vector.broadcast %cst_54 : f32 to vector<8x128xf32>
    %216 = arith.subf %215, %209 : vector<8x128xf32>
    %217 = arith.mulf %216, %214 : vector<8x128xf32>
    %218 = arith.mulf %209, %162 : vector<8x128xf32>
    %219 = arith.addf %217, %218 : vector<8x128xf32>
    %220 = arith.truncf %219 : vector<8x128xf32> to vector<8x128xbf16>
    %cst_55 = arith.constant dense<0.000000e+00> : vector<8x256xf32>
    %221 = tpu.matmul %220, %7, %cst_55 {dimension_numbers = #tpu.dot_dimension_numbers<[1], [0], [0], [1], [0, 0, 1, 1], [], []>} : vector<8x128xbf16>, vector<128x256xbf16>, vector<8x256xf32> -> vector<8x256xf32>
    %222 = vector.broadcast %8 : vector<1x256xf32> to vector<8x256xf32>
    %223 = arith.addf %221, %222 : vector<8x256xf32>
    %cst_56 = arith.constant dense<0xFF800000> : vector<8xf32>
    %224 = vector.multi_reduction <maximumf>, %223, %cst_56 [1] : vector<8x256xf32> to vector<8xf32>
    %225 = vector.shape_cast %224 : vector<8xf32> to vector<8x1xf32>
    %226 = vector.broadcast %225 : vector<8x1xf32> to vector<8x256xf32>
    %227 = arith.subf %223, %226 : vector<8x256xf32>
    %228 = math.exp %227 : vector<8x256xf32>
    %cst_57 = arith.constant dense<0.000000e+00> : vector<8xf32>
    %229 = vector.multi_reduction <add>, %228, %cst_57 [1] : vector<8x256xf32> to vector<8xf32>
    %230 = vector.shape_cast %229 : vector<8xf32> to vector<8x1xf32>
    %231 = math.log %230 : vector<8x1xf32>
    %232 = vector.broadcast %231 : vector<8x1xf32> to vector<8x256xf32>
    %233 = arith.subf %227, %232 : vector<8x256xf32>
    %234 = arith.index_cast %c3_i32 : i32 to index
    %c0_58 = arith.constant 0 : index
    %c0_59 = arith.constant 0 : index
    %235 = vector.load %arg9[%234, %c0_58, %c0_59] : memref<8x8x256xf32, #tpu.memory_space<vmem>>, vector<1x8x256xf32>
    %236 = vector.shape_cast %235 : vector<1x8x256xf32> to vector<8x256xf32>
    %237 = vector.shape_cast %233 : vector<8x256xf32> to vector<1x8x256xf32>
    tpu.vector_store %arg9[%234, %c0_58, %c0_59], %237 {strides = array<i32>} : memref<8x8x256xf32, #tpu.memory_space<vmem>>, vector<1x8x256xf32>,
    %c4_i32 = arith.constant 4 : i32
    %238 = arith.index_cast %c4_i32 : i32 to index
    %c0_60 = arith.constant 0 : index
    %c0_61 = arith.constant 0 : index
    %239 = vector.load %arg2[%238, %c0_60, %c0_61] : memref<8x8x1xi32, #tpu.memory_space<vmem>>, vector<1x8x1xi32>
    %240 = vector.shape_cast %239 : vector<1x8x1xi32> to vector<8x1xi32>
    %241 = vector.broadcast %240 : vector<8x1xi32> to vector<8x256xi32>
    %242 = arith.cmpi eq, %3, %241 : vector<8x256xi32>
    %243 = arith.extui %242 : vector<8x256xi1> to vector<8x256xi32>
    %244 = arith.sitofp %243 : vector<8x256xi32> to vector<8x256xf32>
    %245 = arith.truncf %244 : vector<8x256xf32> to vector<8x256xbf16>
    %cst_62 = arith.constant dense<0.000000e+00> : vector<8x384xf32>
    %246 = tpu.matmul %245, %4, %cst_62 {dimension_numbers = #tpu.dot_dimension_numbers<[1], [0], [0], [1], [0, 0, 1, 1], [], []>} : vector<8x256xbf16>, vector<256x384xbf16>, vector<8x384xf32> -> vector<8x384xf32>
    %247 = arith.truncf %219 : vector<8x128xf32> to vector<8x128xbf16>
    %cst_63 = arith.constant dense<0.000000e+00> : vector<8x384xf32>
    %248 = tpu.matmul %247, %5, %cst_63 {dimension_numbers = #tpu.dot_dimension_numbers<[1], [0], [0], [1], [0, 0, 1, 1], [], []>} : vector<8x128xbf16>, vector<128x384xbf16>, vector<8x384xf32> -> vector<8x384xf32>
    %249 = vector.broadcast %6 : vector<1x384xf32> to vector<8x384xf32>
    %250 = arith.addf %248, %249 : vector<8x384xf32>
    %251 = vector.extract_strided_slice %246 {offsets = [0, 0], sizes = [8, 128], strides = [1, 1]} : vector<8x384xf32> to vector<8x128xf32>
    %252 = vector.extract_strided_slice %250 {offsets = [0, 0], sizes = [8, 128], strides = [1, 1]} : vector<8x384xf32> to vector<8x128xf32>
    %253 = arith.addf %251, %252 : vector<8x128xf32>
    %254 = arith.negf %253 : vector<8x128xf32>
    %255 = math.exp %254 : vector<8x128xf32>
    %cst_64 = arith.constant 1.000000e+00 : f32
    %256 = vector.broadcast %cst_64 : f32 to vector<8x128xf32>
    %257 = arith.addf %256, %255 : vector<8x128xf32>
    %258 = arith.divf %256, %257 : vector<8x128xf32>
    %259 = vector.extract_strided_slice %246 {offsets = [0, 128], sizes = [8, 128], strides = [1, 1]} : vector<8x384xf32> to vector<8x128xf32>
    %260 = vector.extract_strided_slice %250 {offsets = [0, 128], sizes = [8, 128], strides = [1, 1]} : vector<8x384xf32> to vector<8x128xf32>
    %261 = arith.addf %259, %260 : vector<8x128xf32>
    %262 = arith.negf %261 : vector<8x128xf32>
    %263 = math.exp %262 : vector<8x128xf32>
    %cst_65 = arith.constant 1.000000e+00 : f32
    %264 = vector.broadcast %cst_65 : f32 to vector<8x128xf32>
    %265 = arith.addf %264, %263 : vector<8x128xf32>
    %266 = arith.divf %264, %265 : vector<8x128xf32>
    %267 = vector.extract_strided_slice %246 {offsets = [0, 256], sizes = [8, 128], strides = [1, 1]} : vector<8x384xf32> to vector<8x128xf32>
    %268 = vector.extract_strided_slice %250 {offsets = [0, 256], sizes = [8, 128], strides = [1, 1]} : vector<8x384xf32> to vector<8x128xf32>
    %269 = arith.mulf %258, %268 : vector<8x128xf32>
    %270 = arith.addf %267, %269 : vector<8x128xf32>
    %271 = math.tanh %270 : vector<8x128xf32>
    %cst_66 = arith.constant 1.000000e+00 : f32
    %272 = vector.broadcast %cst_66 : f32 to vector<8x128xf32>
    %273 = arith.subf %272, %266 : vector<8x128xf32>
    %274 = arith.mulf %273, %271 : vector<8x128xf32>
    %275 = arith.mulf %266, %219 : vector<8x128xf32>
    %276 = arith.addf %274, %275 : vector<8x128xf32>
    %277 = arith.truncf %276 : vector<8x128xf32> to vector<8x128xbf16>
    %cst_67 = arith.constant dense<0.000000e+00> : vector<8x256xf32>
    %278 = tpu.matmul %277, %7, %cst_67 {dimension_numbers = #tpu.dot_dimension_numbers<[1], [0], [0], [1], [0, 0, 1, 1], [], []>} : vector<8x128xbf16>, vector<128x256xbf16>, vector<8x256xf32> -> vector<8x256xf32>
    %279 = vector.broadcast %8 : vector<1x256xf32> to vector<8x256xf32>
    %280 = arith.addf %278, %279 : vector<8x256xf32>
    %cst_68 = arith.constant dense<0xFF800000> : vector<8xf32>
    %281 = vector.multi_reduction <maximumf>, %280, %cst_68 [1] : vector<8x256xf32> to vector<8xf32>
    %282 = vector.shape_cast %281 : vector<8xf32> to vector<8x1xf32>
    %283 = vector.broadcast %282 : vector<8x1xf32> to vector<8x256xf32>
    %284 = arith.subf %280, %283 : vector<8x256xf32>
    %285 = math.exp %284 : vector<8x256xf32>
    %cst_69 = arith.constant dense<0.000000e+00> : vector<8xf32>
    %286 = vector.multi_reduction <add>, %285, %cst_69 [1] : vector<8x256xf32> to vector<8xf32>
    %287 = vector.shape_cast %286 : vector<8xf32> to vector<8x1xf32>
    %288 = math.log %287 : vector<8x1xf32>
    %289 = vector.broadcast %288 : vector<8x1xf32> to vector<8x256xf32>
    %290 = arith.subf %284, %289 : vector<8x256xf32>
    %291 = arith.index_cast %c4_i32 : i32 to index
    %c0_70 = arith.constant 0 : index
    %c0_71 = arith.constant 0 : index
    %292 = vector.load %arg9[%291, %c0_70, %c0_71] : memref<8x8x256xf32, #tpu.memory_space<vmem>>, vector<1x8x256xf32>
    %293 = vector.shape_cast %292 : vector<1x8x256xf32> to vector<8x256xf32>
    %294 = vector.shape_cast %290 : vector<8x256xf32> to vector<1x8x256xf32>
    tpu.vector_store %arg9[%291, %c0_70, %c0_71], %294 {strides = array<i32>} : memref<8x8x256xf32, #tpu.memory_space<vmem>>, vector<1x8x256xf32>,
    %c5_i32 = arith.constant 5 : i32
    %295 = arith.index_cast %c5_i32 : i32 to index
    %c0_72 = arith.constant 0 : index
    %c0_73 = arith.constant 0 : index
    %296 = vector.load %arg2[%295, %c0_72, %c0_73] : memref<8x8x1xi32, #tpu.memory_space<vmem>>, vector<1x8x1xi32>
    %297 = vector.shape_cast %296 : vector<1x8x1xi32> to vector<8x1xi32>
    %298 = vector.broadcast %297 : vector<8x1xi32> to vector<8x256xi32>
    %299 = arith.cmpi eq, %3, %298 : vector<8x256xi32>
    %300 = arith.extui %299 : vector<8x256xi1> to vector<8x256xi32>
    %301 = arith.sitofp %300 : vector<8x256xi32> to vector<8x256xf32>
    %302 = arith.truncf %301 : vector<8x256xf32> to vector<8x256xbf16>
    %cst_74 = arith.constant dense<0.000000e+00> : vector<8x384xf32>
    %303 = tpu.matmul %302, %4, %cst_74 {dimension_numbers = #tpu.dot_dimension_numbers<[1], [0], [0], [1], [0, 0, 1, 1], [], []>} : vector<8x256xbf16>, vector<256x384xbf16>, vector<8x384xf32> -> vector<8x384xf32>
    %304 = arith.truncf %276 : vector<8x128xf32> to vector<8x128xbf16>
    %cst_75 = arith.constant dense<0.000000e+00> : vector<8x384xf32>
    %305 = tpu.matmul %304, %5, %cst_75 {dimension_numbers = #tpu.dot_dimension_numbers<[1], [0], [0], [1], [0, 0, 1, 1], [], []>} : vector<8x128xbf16>, vector<128x384xbf16>, vector<8x384xf32> -> vector<8x384xf32>
    %306 = vector.broadcast %6 : vector<1x384xf32> to vector<8x384xf32>
    %307 = arith.addf %305, %306 : vector<8x384xf32>
    %308 = vector.extract_strided_slice %303 {offsets = [0, 0], sizes = [8, 128], strides = [1, 1]} : vector<8x384xf32> to vector<8x128xf32>
    %309 = vector.extract_strided_slice %307 {offsets = [0, 0], sizes = [8, 128], strides = [1, 1]} : vector<8x384xf32> to vector<8x128xf32>
    %310 = arith.addf %308, %309 : vector<8x128xf32>
    %311 = arith.negf %310 : vector<8x128xf32>
    %312 = math.exp %311 : vector<8x128xf32>
    %cst_76 = arith.constant 1.000000e+00 : f32
    %313 = vector.broadcast %cst_76 : f32 to vector<8x128xf32>
    %314 = arith.addf %313, %312 : vector<8x128xf32>
    %315 = arith.divf %313, %314 : vector<8x128xf32>
    %316 = vector.extract_strided_slice %303 {offsets = [0, 128], sizes = [8, 128], strides = [1, 1]} : vector<8x384xf32> to vector<8x128xf32>
    %317 = vector.extract_strided_slice %307 {offsets = [0, 128], sizes = [8, 128], strides = [1, 1]} : vector<8x384xf32> to vector<8x128xf32>
    %318 = arith.addf %316, %317 : vector<8x128xf32>
    %319 = arith.negf %318 : vector<8x128xf32>
    %320 = math.exp %319 : vector<8x128xf32>
    %cst_77 = arith.constant 1.000000e+00 : f32
    %321 = vector.broadcast %cst_77 : f32 to vector<8x128xf32>
    %322 = arith.addf %321, %320 : vector<8x128xf32>
    %323 = arith.divf %321, %322 : vector<8x128xf32>
    %324 = vector.extract_strided_slice %303 {offsets = [0, 256], sizes = [8, 128], strides = [1, 1]} : vector<8x384xf32> to vector<8x128xf32>
    %325 = vector.extract_strided_slice %307 {offsets = [0, 256], sizes = [8, 128], strides = [1, 1]} : vector<8x384xf32> to vector<8x128xf32>
    %326 = arith.mulf %315, %325 : vector<8x128xf32>
    %327 = arith.addf %324, %326 : vector<8x128xf32>
    %328 = math.tanh %327 : vector<8x128xf32>
    %cst_78 = arith.constant 1.000000e+00 : f32
    %329 = vector.broadcast %cst_78 : f32 to vector<8x128xf32>
    %330 = arith.subf %329, %323 : vector<8x128xf32>
    %331 = arith.mulf %330, %328 : vector<8x128xf32>
    %332 = arith.mulf %323, %276 : vector<8x128xf32>
    %333 = arith.addf %331, %332 : vector<8x128xf32>
    %334 = arith.truncf %333 : vector<8x128xf32> to vector<8x128xbf16>
    %cst_79 = arith.constant dense<0.000000e+00> : vector<8x256xf32>
    %335 = tpu.matmul %334, %7, %cst_79 {dimension_numbers = #tpu.dot_dimension_numbers<[1], [0], [0], [1], [0, 0, 1, 1], [], []>} : vector<8x128xbf16>, vector<128x256xbf16>, vector<8x256xf32> -> vector<8x256xf32>
    %336 = vector.broadcast %8 : vector<1x256xf32> to vector<8x256xf32>
    %337 = arith.addf %335, %336 : vector<8x256xf32>
    %cst_80 = arith.constant dense<0xFF800000> : vector<8xf32>
    %338 = vector.multi_reduction <maximumf>, %337, %cst_80 [1] : vector<8x256xf32> to vector<8xf32>
    %339 = vector.shape_cast %338 : vector<8xf32> to vector<8x1xf32>
    %340 = vector.broadcast %339 : vector<8x1xf32> to vector<8x256xf32>
    %341 = arith.subf %337, %340 : vector<8x256xf32>
    %342 = math.exp %341 : vector<8x256xf32>
    %cst_81 = arith.constant dense<0.000000e+00> : vector<8xf32>
    %343 = vector.multi_reduction <add>, %342, %cst_81 [1] : vector<8x256xf32> to vector<8xf32>
    %344 = vector.shape_cast %343 : vector<8xf32> to vector<8x1xf32>
    %345 = math.log %344 : vector<8x1xf32>
    %346 = vector.broadcast %345 : vector<8x1xf32> to vector<8x256xf32>
    %347 = arith.subf %341, %346 : vector<8x256xf32>
    %348 = arith.index_cast %c5_i32 : i32 to index
    %c0_82 = arith.constant 0 : index
    %c0_83 = arith.constant 0 : index
    %349 = vector.load %arg9[%348, %c0_82, %c0_83] : memref<8x8x256xf32, #tpu.memory_space<vmem>>, vector<1x8x256xf32>
    %350 = vector.shape_cast %349 : vector<1x8x256xf32> to vector<8x256xf32>
    %351 = vector.shape_cast %347 : vector<8x256xf32> to vector<1x8x256xf32>
    tpu.vector_store %arg9[%348, %c0_82, %c0_83], %351 {strides = array<i32>} : memref<8x8x256xf32, #tpu.memory_space<vmem>>, vector<1x8x256xf32>,
    %c6_i32 = arith.constant 6 : i32
    %352 = arith.index_cast %c6_i32 : i32 to index
    %c0_84 = arith.constant 0 : index
    %c0_85 = arith.constant 0 : index
    %353 = vector.load %arg2[%352, %c0_84, %c0_85] : memref<8x8x1xi32, #tpu.memory_space<vmem>>, vector<1x8x1xi32>
    %354 = vector.shape_cast %353 : vector<1x8x1xi32> to vector<8x1xi32>
    %355 = vector.broadcast %354 : vector<8x1xi32> to vector<8x256xi32>
    %356 = arith.cmpi eq, %3, %355 : vector<8x256xi32>
    %357 = arith.extui %356 : vector<8x256xi1> to vector<8x256xi32>
    %358 = arith.sitofp %357 : vector<8x256xi32> to vector<8x256xf32>
    %359 = arith.truncf %358 : vector<8x256xf32> to vector<8x256xbf16>
    %cst_86 = arith.constant dense<0.000000e+00> : vector<8x384xf32>
    %360 = tpu.matmul %359, %4, %cst_86 {dimension_numbers = #tpu.dot_dimension_numbers<[1], [0], [0], [1], [0, 0, 1, 1], [], []>} : vector<8x256xbf16>, vector<256x384xbf16>, vector<8x384xf32> -> vector<8x384xf32>
    %361 = arith.truncf %333 : vector<8x128xf32> to vector<8x128xbf16>
    %cst_87 = arith.constant dense<0.000000e+00> : vector<8x384xf32>
    %362 = tpu.matmul %361, %5, %cst_87 {dimension_numbers = #tpu.dot_dimension_numbers<[1], [0], [0], [1], [0, 0, 1, 1], [], []>} : vector<8x128xbf16>, vector<128x384xbf16>, vector<8x384xf32> -> vector<8x384xf32>
    %363 = vector.broadcast %6 : vector<1x384xf32> to vector<8x384xf32>
    %364 = arith.addf %362, %363 : vector<8x384xf32>
    %365 = vector.extract_strided_slice %360 {offsets = [0, 0], sizes = [8, 128], strides = [1, 1]} : vector<8x384xf32> to vector<8x128xf32>
    %366 = vector.extract_strided_slice %364 {offsets = [0, 0], sizes = [8, 128], strides = [1, 1]} : vector<8x384xf32> to vector<8x128xf32>
    %367 = arith.addf %365, %366 : vector<8x128xf32>
    %368 = arith.negf %367 : vector<8x128xf32>
    %369 = math.exp %368 : vector<8x128xf32>
    %cst_88 = arith.constant 1.000000e+00 : f32
    %370 = vector.broadcast %cst_88 : f32 to vector<8x128xf32>
    %371 = arith.addf %370, %369 : vector<8x128xf32>
    %372 = arith.divf %370, %371 : vector<8x128xf32>
    %373 = vector.extract_strided_slice %360 {offsets = [0, 128], sizes = [8, 128], strides = [1, 1]} : vector<8x384xf32> to vector<8x128xf32>
    %374 = vector.extract_strided_slice %364 {offsets = [0, 128], sizes = [8, 128], strides = [1, 1]} : vector<8x384xf32> to vector<8x128xf32>
    %375 = arith.addf %373, %374 : vector<8x128xf32>
    %376 = arith.negf %375 : vector<8x128xf32>
    %377 = math.exp %376 : vector<8x128xf32>
    %cst_89 = arith.constant 1.000000e+00 : f32
    %378 = vector.broadcast %cst_89 : f32 to vector<8x128xf32>
    %379 = arith.addf %378, %377 : vector<8x128xf32>
    %380 = arith.divf %378, %379 : vector<8x128xf32>
    %381 = vector.extract_strided_slice %360 {offsets = [0, 256], sizes = [8, 128], strides = [1, 1]} : vector<8x384xf32> to vector<8x128xf32>
    %382 = vector.extract_strided_slice %364 {offsets = [0, 256], sizes = [8, 128], strides = [1, 1]} : vector<8x384xf32> to vector<8x128xf32>
    %383 = arith.mulf %372, %382 : vector<8x128xf32>
    %384 = arith.addf %381, %383 : vector<8x128xf32>
    %385 = math.tanh %384 : vector<8x128xf32>
    %cst_90 = arith.constant 1.000000e+00 : f32
    %386 = vector.broadcast %cst_90 : f32 to vector<8x128xf32>
    %387 = arith.subf %386, %380 : vector<8x128xf32>
    %388 = arith.mulf %387, %385 : vector<8x128xf32>
    %389 = arith.mulf %380, %333 : vector<8x128xf32>
    %390 = arith.addf %388, %389 : vector<8x128xf32>
    %391 = arith.truncf %390 : vector<8x128xf32> to vector<8x128xbf16>
    %cst_91 = arith.constant dense<0.000000e+00> : vector<8x256xf32>
    %392 = tpu.matmul %391, %7, %cst_91 {dimension_numbers = #tpu.dot_dimension_numbers<[1], [0], [0], [1], [0, 0, 1, 1], [], []>} : vector<8x128xbf16>, vector<128x256xbf16>, vector<8x256xf32> -> vector<8x256xf32>
    %393 = vector.broadcast %8 : vector<1x256xf32> to vector<8x256xf32>
    %394 = arith.addf %392, %393 : vector<8x256xf32>
    %cst_92 = arith.constant dense<0xFF800000> : vector<8xf32>
    %395 = vector.multi_reduction <maximumf>, %394, %cst_92 [1] : vector<8x256xf32> to vector<8xf32>
    %396 = vector.shape_cast %395 : vector<8xf32> to vector<8x1xf32>
    %397 = vector.broadcast %396 : vector<8x1xf32> to vector<8x256xf32>
    %398 = arith.subf %394, %397 : vector<8x256xf32>
    %399 = math.exp %398 : vector<8x256xf32>
    %cst_93 = arith.constant dense<0.000000e+00> : vector<8xf32>
    %400 = vector.multi_reduction <add>, %399, %cst_93 [1] : vector<8x256xf32> to vector<8xf32>
    %401 = vector.shape_cast %400 : vector<8xf32> to vector<8x1xf32>
    %402 = math.log %401 : vector<8x1xf32>
    %403 = vector.broadcast %402 : vector<8x1xf32> to vector<8x256xf32>
    %404 = arith.subf %398, %403 : vector<8x256xf32>
    %405 = arith.index_cast %c6_i32 : i32 to index
    %c0_94 = arith.constant 0 : index
    %c0_95 = arith.constant 0 : index
    %406 = vector.load %arg9[%405, %c0_94, %c0_95] : memref<8x8x256xf32, #tpu.memory_space<vmem>>, vector<1x8x256xf32>
    %407 = vector.shape_cast %406 : vector<1x8x256xf32> to vector<8x256xf32>
    %408 = vector.shape_cast %404 : vector<8x256xf32> to vector<1x8x256xf32>
    tpu.vector_store %arg9[%405, %c0_94, %c0_95], %408 {strides = array<i32>} : memref<8x8x256xf32, #tpu.memory_space<vmem>>, vector<1x8x256xf32>,
    %c7_i32 = arith.constant 7 : i32
    %409 = arith.index_cast %c7_i32 : i32 to index
    %c0_96 = arith.constant 0 : index
    %c0_97 = arith.constant 0 : index
    %410 = vector.load %arg2[%409, %c0_96, %c0_97] : memref<8x8x1xi32, #tpu.memory_space<vmem>>, vector<1x8x1xi32>
    %411 = vector.shape_cast %410 : vector<1x8x1xi32> to vector<8x1xi32>
    %412 = vector.broadcast %411 : vector<8x1xi32> to vector<8x256xi32>
    %413 = arith.cmpi eq, %3, %412 : vector<8x256xi32>
    %414 = arith.extui %413 : vector<8x256xi1> to vector<8x256xi32>
    %415 = arith.sitofp %414 : vector<8x256xi32> to vector<8x256xf32>
    %416 = arith.truncf %415 : vector<8x256xf32> to vector<8x256xbf16>
    %cst_98 = arith.constant dense<0.000000e+00> : vector<8x384xf32>
    %417 = tpu.matmul %416, %4, %cst_98 {dimension_numbers = #tpu.dot_dimension_numbers<[1], [0], [0], [1], [0, 0, 1, 1], [], []>} : vector<8x256xbf16>, vector<256x384xbf16>, vector<8x384xf32> -> vector<8x384xf32>
    %418 = arith.truncf %390 : vector<8x128xf32> to vector<8x128xbf16>
    %cst_99 = arith.constant dense<0.000000e+00> : vector<8x384xf32>
    %419 = tpu.matmul %418, %5, %cst_99 {dimension_numbers = #tpu.dot_dimension_numbers<[1], [0], [0], [1], [0, 0, 1, 1], [], []>} : vector<8x128xbf16>, vector<128x384xbf16>, vector<8x384xf32> -> vector<8x384xf32>
    %420 = vector.broadcast %6 : vector<1x384xf32> to vector<8x384xf32>
    %421 = arith.addf %419, %420 : vector<8x384xf32>
    %422 = vector.extract_strided_slice %417 {offsets = [0, 0], sizes = [8, 128], strides = [1, 1]} : vector<8x384xf32> to vector<8x128xf32>
    %423 = vector.extract_strided_slice %421 {offsets = [0, 0], sizes = [8, 128], strides = [1, 1]} : vector<8x384xf32> to vector<8x128xf32>
    %424 = arith.addf %422, %423 : vector<8x128xf32>
    %425 = arith.negf %424 : vector<8x128xf32>
    %426 = math.exp %425 : vector<8x128xf32>
    %cst_100 = arith.constant 1.000000e+00 : f32
    %427 = vector.broadcast %cst_100 : f32 to vector<8x128xf32>
    %428 = arith.addf %427, %426 : vector<8x128xf32>
    %429 = arith.divf %427, %428 : vector<8x128xf32>
    %430 = vector.extract_strided_slice %417 {offsets = [0, 128], sizes = [8, 128], strides = [1, 1]} : vector<8x384xf32> to vector<8x128xf32>
    %431 = vector.extract_strided_slice %421 {offsets = [0, 128], sizes = [8, 128], strides = [1, 1]} : vector<8x384xf32> to vector<8x128xf32>
    %432 = arith.addf %430, %431 : vector<8x128xf32>
    %433 = arith.negf %432 : vector<8x128xf32>
    %434 = math.exp %433 : vector<8x128xf32>
    %cst_101 = arith.constant 1.000000e+00 : f32
    %435 = vector.broadcast %cst_101 : f32 to vector<8x128xf32>
    %436 = arith.addf %435, %434 : vector<8x128xf32>
    %437 = arith.divf %435, %436 : vector<8x128xf32>
    %438 = vector.extract_strided_slice %417 {offsets = [0, 256], sizes = [8, 128], strides = [1, 1]} : vector<8x384xf32> to vector<8x128xf32>
    %439 = vector.extract_strided_slice %421 {offsets = [0, 256], sizes = [8, 128], strides = [1, 1]} : vector<8x384xf32> to vector<8x128xf32>
    %440 = arith.mulf %429, %439 : vector<8x128xf32>
    %441 = arith.addf %438, %440 : vector<8x128xf32>
    %442 = math.tanh %441 : vector<8x128xf32>
    %cst_102 = arith.constant 1.000000e+00 : f32
    %443 = vector.broadcast %cst_102 : f32 to vector<8x128xf32>
    %444 = arith.subf %443, %437 : vector<8x128xf32>
    %445 = arith.mulf %444, %442 : vector<8x128xf32>
    %446 = arith.mulf %437, %390 : vector<8x128xf32>
    %447 = arith.addf %445, %446 : vector<8x128xf32>
    %448 = arith.truncf %447 : vector<8x128xf32> to vector<8x128xbf16>
    %cst_103 = arith.constant dense<0.000000e+00> : vector<8x256xf32>
    %449 = tpu.matmul %448, %7, %cst_103 {dimension_numbers = #tpu.dot_dimension_numbers<[1], [0], [0], [1], [0, 0, 1, 1], [], []>} : vector<8x128xbf16>, vector<128x256xbf16>, vector<8x256xf32> -> vector<8x256xf32>
    %450 = vector.broadcast %8 : vector<1x256xf32> to vector<8x256xf32>
    %451 = arith.addf %449, %450 : vector<8x256xf32>
    %cst_104 = arith.constant dense<0xFF800000> : vector<8xf32>
    %452 = vector.multi_reduction <maximumf>, %451, %cst_104 [1] : vector<8x256xf32> to vector<8xf32>
    %453 = vector.shape_cast %452 : vector<8xf32> to vector<8x1xf32>
    %454 = vector.broadcast %453 : vector<8x1xf32> to vector<8x256xf32>
    %455 = arith.subf %451, %454 : vector<8x256xf32>
    %456 = math.exp %455 : vector<8x256xf32>
    %cst_105 = arith.constant dense<0.000000e+00> : vector<8xf32>
    %457 = vector.multi_reduction <add>, %456, %cst_105 [1] : vector<8x256xf32> to vector<8xf32>
    %458 = vector.shape_cast %457 : vector<8xf32> to vector<8x1xf32>
    %459 = math.log %458 : vector<8x1xf32>
    %460 = vector.broadcast %459 : vector<8x1xf32> to vector<8x256xf32>
    %461 = arith.subf %455, %460 : vector<8x256xf32>
    %462 = arith.index_cast %c7_i32 : i32 to index
    %c0_106 = arith.constant 0 : index
    %c0_107 = arith.constant 0 : index
    %463 = vector.load %arg9[%462, %c0_106, %c0_107] : memref<8x8x256xf32, #tpu.memory_space<vmem>>, vector<1x8x256xf32>
    %464 = vector.shape_cast %463 : vector<1x8x256xf32> to vector<8x256xf32>
    %465 = vector.shape_cast %461 : vector<8x256xf32> to vector<1x8x256xf32>
    tpu.vector_store %arg9[%462, %c0_106, %c0_107], %465 {strides = array<i32>} : memref<8x8x256xf32, #tpu.memory_space<vmem>>, vector<1x8x256xf32>,
    %c8_i32 = arith.constant 8 : i32
    %c0_108 = arith.constant 0 : index
    %c0_109 = arith.constant 0 : index
    %466 = vector.load %arg11[%c0_108, %c0_109] : memref<8x128xf32, #tpu.memory_space<vmem>>, vector<8x128xf32>
    tpu.vector_store %arg11[%c0_108, %c0_109], %447 {strides = array<i32>} : memref<8x128xf32, #tpu.memory_space<vmem>>, vector<8x128xf32>,
    %c0_i32_110 = arith.constant 0 : i32
    %467 = arith.cmpi eq, %arg1, %c0_i32_110 : i32
    %468 = arith.extui %467 : i1 to i32
    %c0_i32_111 = arith.constant 0 : i32
    %469 = arith.cmpi ne, %468, %c0_i32_111 : i32
    scf.if %469 {
      %c0_112 = arith.constant 0 : index
      %c0_113 = arith.constant 0 : index
      %470 = vector.load %arg10[%c0_112, %c0_113] : memref<8x128xf32, #tpu.memory_space<vmem>>, vector<8x128xf32>
      tpu.vector_store %arg10[%c0_112, %c0_113], %447 {strides = array<i32>} : memref<8x128xf32, #tpu.memory_space<vmem>>, vector<8x128xf32>,
    } else {
    }
    return
  }
  func.func @transform_0(%arg0: i32, %arg1: i32) -> (i32, i32, i32) {
    %c0_i32 = arith.constant 0 : i32
    %c0_i32_0 = arith.constant 0 : i32
    return %arg1, %arg0, %c0_i32 : i32, i32, i32
  }
  func.func @transform_1(%arg0: i32, %arg1: i32) -> (i32, i32) {
    %c0_i32 = arith.constant 0 : i32
    %c0_i32_0 = arith.constant 0 : i32
    return %arg0, %c0_i32 : i32, i32
  }
  func.func @transform_2(%arg0: i32, %arg1: i32) -> (i32, i32) {
    %c0_i32 = arith.constant 0 : i32
    %c0_i32_0 = arith.constant 0 : i32
    %c0_i32_1 = arith.constant 0 : i32
    return %c0_i32, %c0_i32_0 : i32, i32
  }
  func.func @transform_3(%arg0: i32, %arg1: i32) -> (i32, i32) {
    %c0_i32 = arith.constant 0 : i32
    %c0_i32_0 = arith.constant 0 : i32
    %c0_i32_1 = arith.constant 0 : i32
    return %c0_i32, %c0_i32_0 : i32, i32
  }
  func.func @transform_4(%arg0: i32, %arg1: i32) -> (i32, i32) {
    %c0_i32 = arith.constant 0 : i32
    %c0_i32_0 = arith.constant 0 : i32
    %c0_i32_1 = arith.constant 0 : i32
    return %c0_i32, %c0_i32_0 : i32, i32
  }
  func.func @transform_5(%arg0: i32, %arg1: i32) -> (i32, i32) {
    %c0_i32 = arith.constant 0 : i32
    %c0_i32_0 = arith.constant 0 : i32
    %c0_i32_1 = arith.constant 0 : i32
    return %c0_i32, %c0_i32_0 : i32, i32
  }
  func.func @transform_6(%arg0: i32, %arg1: i32) -> (i32, i32) {
    %c0_i32 = arith.constant 0 : i32
    %c0_i32_0 = arith.constant 0 : i32
    %c0_i32_1 = arith.constant 0 : i32
    return %c0_i32, %c0_i32_0 : i32, i32
  }
  func.func @transform_7(%arg0: i32, %arg1: i32) -> (i32, i32, i32) {
    %c0_i32 = arith.constant 0 : i32
    %c0_i32_0 = arith.constant 0 : i32
    return %arg1, %arg0, %c0_i32 : i32, i32, i32
  }
  func.func @transform_8(%arg0: i32, %arg1: i32) -> (i32, i32) {
    %c0_i32 = arith.constant 0 : i32
    %c0_i32_0 = arith.constant 0 : i32
    return %arg0, %c0_i32 : i32, i32
  }
}

</mosaic_0001>

<llo_original>
// kernel: decoder_rnn_decode.1
$region0: #{decoder_rnn_decode.1}
  #allocation0 [shape = 'u32[]', space=smem, size = 0x4, offset = 0x4, fixed_abs, tag = 'smem constant byte address 0x4 - core index']
  #allocation1 [shape = 'u32[144,128]{1,0:T(1,128)}', space=vmem, size = 0x12000, scoped, tag = 'internal scratch']
  #allocation2 [shape = 'f32[8,128]{1,0:T(8,128)}', space=vmem, size = 0x1000, scoped, tag = 'scratch operand']
  %s0 = inlined_call_operand.vmem [shape: s32[8,8,1], index: 0, kind: input, shape index: {}]
  %s1 = inlined_call_operand.vmem [shape: f32[8,128], index: 1, kind: input, shape index: {}]
  %s2 = inlined_call_operand.hbm [shape: bf16[256,384], index: 2, kind: input, shape index: {}]
  %s3 = inlined_call_operand.hbm [shape: bf16[128,384], index: 3, kind: input, shape index: {}]
  %s4 = inlined_call_operand.vmem [shape: f32[1,384], index: 4, kind: input, shape index: {}]
  %s5 = inlined_call_operand.hbm [shape: bf16[128,256], index: 5, kind: input, shape index: {}]
  %s6 = inlined_call_operand.vmem [shape: f32[1,256], index: 6, kind: input, shape index: {}]
  %s7 = inlined_call_operand.hbm [shape: f32[8,8,256], index: 7, kind: output, shape index: {0}]
  %s8 = inlined_call_operand.hbm [shape: f32[8,128], index: 8, kind: output, shape index: {1}]
  %9 = xla_tuple %s7, %s8
  %s10 = sld [smem:[#allocation0]]
  $region66: #{decoder_rnn_decode.1} parent=0
    _
  %s12 = ssub.s32 1, %s10
  %s13 = scalar_select 0, %s12, %s10
  $region1: #{decoder_rnn_decode.1} parent=0
    #allocation3 [shape = 'u8[196608]{0}', space=vmem, size = 0x30000, scoped, tag = 'input window, operand 2, single buffered']
    #allocation4 [shape = 's32[1]{0}', space=sflag, size = 0x4, scoped, tag = 'scoped memory for decoder_rnn_decode.1']
    #allocation5 [shape = 's32[1]{0}', space=sflag, size = 0x4, scoped, tag = 'scoped memory for decoder_rnn_decode.1']
    #allocation6 [shape = 'u8[98304]{0}', space=vmem, size = 0x18000, scoped, tag = 'input window, operand 3, single buffered']
    #allocation7 [shape = 's32[1]{0}', space=sflag, size = 0x4, scoped, tag = 'scoped memory for decoder_rnn_decode.1']
    #allocation8 [shape = 'u8[65536]{0}', space=vmem, size = 0x10000, scoped, tag = 'input window, operand 5, single buffered']
    #allocation9 [shape = 'u8[65536]{0}', space=vmem, size = 0x10000, scoped, tag = 'output window, operand 0, single buffered']
    #allocation10 [shape = 'u8[4096]{0}', space=vmem, size = 0x1000, scoped, tag = 'output window, operand 1, single buffered']
    #allocation11 [shape = 's32[1]{0}', space=sflag, size = 0x4, scoped, tag = 'scoped memory for decoder_rnn_decode.1']
    %14 = vsyncpa [#allocation4], 0
    %15 = vsyncpa [#allocation7], 0
    %16 = vsyncpa [#allocation5], 0
    %17 = vsyncpa [#allocation11], 0
    // Predicated region
    $region2: #{decoder_rnn_decode.1} parent=1 // pred_check
      _
    $region3: #{decoder_rnn_decode.1} parent=1 // pred_check_branch
      %19 = sbr.rel (0) target = $region5
    $region4: #{decoder_rnn_decode.1} parent=1 // pred_region
      _
    $region5: #{decoder_rnn_decode.1} parent=1 // pred_fallthru
      _
    // Predicated region
    $region6: #{decoder_rnn_decode.1} parent=1 // pred_check
      _
    $region7: #{decoder_rnn_decode.1} parent=1 // pred_check_branch
      %21 = sbr.rel (0) target = $region9
    $region8: #{decoder_rnn_decode.1} parent=1 // pred_region
      _
    $region9: #{decoder_rnn_decode.1} parent=1 // pred_fallthru
      _
    // Predicated region
    $region10: #{decoder_rnn_decode.1} parent=1 // pred_check
      _
    $region11: #{decoder_rnn_decode.1} parent=1 // pred_check_branch
      %23 = sbr.rel (0) target = $region13
    $region12: #{decoder_rnn_decode.1} parent=1 // pred_region
      %s25 = ssub.s32 6144, 6144
      %26 = vsyncadd [#allocation4], %s25
      %s27 = sshll.u32 [#allocation3], 4
      %s28 = int_to_ptr.vmem [resolvable:$true] %s27
      %33 = dma.hbm_to_vmem [thread:$0]  %s2, 6144, %s28, [#allocation4], 192, 192, 12
    $region13: #{decoder_rnn_decode.1} parent=1 // pred_fallthru
      _
    // Predicated region
    $region14: #{decoder_rnn_decode.1} parent=1 // pred_check
      _
    $region15: #{decoder_rnn_decode.1} parent=1 // pred_check_branch
      %35 = sbr.rel (0) target = $region17
    $region16: #{decoder_rnn_decode.1} parent=1 // pred_region
      %s37 = ssub.s32 3072, 3072
      %38 = vsyncadd [#allocation7], %s37
      %s39 = sshll.u32 [#allocation6], 4
      %s40 = int_to_ptr.vmem [resolvable:$true] %s39
      %45 = dma.hbm_to_vmem [thread:$0]  %s3, 3072, %s40, [#allocation7], 192, 192, 12
    $region17: #{decoder_rnn_decode.1} parent=1 // pred_fallthru
      _
    // Predicated region
    $region18: #{decoder_rnn_decode.1} parent=1 // pred_check
      _
    $region19: #{decoder_rnn_decode.1} parent=1 // pred_check_branch
      %47 = sbr.rel (0) target = $region21
    $region20: #{decoder_rnn_decode.1} parent=1 // pred_region
      _
    $region21: #{decoder_rnn_decode.1} parent=1 // pred_fallthru
      _
    // Predicated region
    $region22: #{decoder_rnn_decode.1} parent=1 // pred_check
      _
    $region23: #{decoder_rnn_decode.1} parent=1 // pred_check_branch
      %49 = sbr.rel (0) target = $region25
    $region24: #{decoder_rnn_decode.1} parent=1 // pred_region
      %s51 = ssub.s32 2048, 2048
      %52 = vsyncadd [#allocation7], %s51
      %s53 = sshll.u32 [#allocation8], 4
      %s54 = int_to_ptr.vmem [resolvable:$true] %s53
      %59 = dma.hbm_to_vmem [thread:$0]  %s5, 2048, %s54, [#allocation7], 128, 128, 8
    $region25: #{decoder_rnn_decode.1} parent=1 // pred_fallthru
      _
    // Predicated region
    $region26: #{decoder_rnn_decode.1} parent=1 // pred_check
      _
    $region27: #{decoder_rnn_decode.1} parent=1 // pred_check_branch
      %61 = sbr.rel (0) target = $region29
    $region28: #{decoder_rnn_decode.1} parent=1 // pred_region
      _
    $region29: #{decoder_rnn_decode.1} parent=1 // pred_fallthru
      _
    // Predicated region
    $region30: #{decoder_rnn_decode.1} parent=1 // pred_check
      _
    $region31: #{decoder_rnn_decode.1} parent=1 // pred_check_branch
      %63 = sbr.rel (0) target = $region33
    $region32: #{decoder_rnn_decode.1} parent=1 // pred_region
      %64 = dma.done [#allocation4], 6144
    $region33: #{decoder_rnn_decode.1} parent=1 // pred_fallthru
      _
    // Predicated region
    $region34: #{decoder_rnn_decode.1} parent=1 // pred_check
      _
    $region35: #{decoder_rnn_decode.1} parent=1 // pred_check_branch
      %66 = sbr.rel (0) target = $region37
    $region36: #{decoder_rnn_decode.1} parent=1 // pred_region
      %67 = dma.done [#allocation7], 3072
    $region37: #{decoder_rnn_decode.1} parent=1 // pred_fallthru
      _
    // Predicated region
    $region38: #{decoder_rnn_decode.1} parent=1 // pred_check
      _
    $region39: #{decoder_rnn_decode.1} parent=1 // pred_check_branch
      %69 = sbr.rel (0) target = $region41
    $region40: #{decoder_rnn_decode.1} parent=1 // pred_region
      %70 = dma.done [#allocation7], 2048
    $region41: #{decoder_rnn_decode.1} parent=1 // pred_fallthru
      _
    %p72 = scmp.eq.s32.totalorder 0, 0
    // Predicated region
    $region42: #{decoder_rnn_decode.1} parent=1 // pred_check
      %p73 = pneg %p72
    $region43: #{decoder_rnn_decode.1} parent=1 // pred_check_branch
      %75 = sbr.rel (%p73) target = $region45
    $region44: #{decoder_rnn_decode.1} parent=1 // pred_region
      %v76 = vld [vmem:[%s1] sm:$0xff]
      %77 = vst [vmem:[#allocation2] sm:$0xff] %v76
    $region45: #{decoder_rnn_decode.1} parent=1 // pred_fallthru
      _
    %v78 = vlaneseq
    %v79 = vand.u32 %v78, 127
    %v80 = vadd.s32 %v79, 128
    %v81 = vld [vmem:[#allocation3] sm:$0xff]
    %v82 = vld [vmem:[#allocation3 + $0x8] sm:$0xf]
    %v83 = vld [vmem:[#allocation3 + $0xc] sm:$0xff]
    %v84 = vld [vmem:[#allocation3 + $0x14] sm:$0xf]
    %v85 = vld [vmem:[#allocation3 + $0x18] sm:$0xff]
    %v86 = vld [vmem:[#allocation3 + $0x20] sm:$0xf]
    %v87 = vld [vmem:[#allocation3 + $0x24] sm:$0xff]
    %v88 = vld [vmem:[#allocation3 + $0x2c] sm:$0xf]
    %v89 = vld [vmem:[#allocation3 + $0x30] sm:$0xff]
    %v90 = vld [vmem:[#allocation3 + $0x38] sm:$0xf]
    %v91 = vld [vmem:[#allocation3 + $0x3c] sm:$0xff]
    %v92 = vld [vmem:[#allocation3 + $0x44] sm:$0xf]
    %v93 = vld [vmem:[#allocation3 + $0x48] sm:$0xff]
    %v94 = vld [vmem:[#allocation3 + $0x50] sm:$0xf]
    %v95 = vld [vmem:[#allocation3 + $0x54] sm:$0xff]
    %v96 = vld [vmem:[#allocation3 + $0x5c] sm:$0xf]
    %v97 = vld [vmem:[#allocation3 + $0x60] sm:$0xff]
    %v98 = vld [vmem:[#allocation3 + $0x68] sm:$0xf]
    %v99 = vld [vmem:[#allocation3 + $0x6c] sm:$0xff]
    %v100 = vld [vmem:[#allocation3 + $0x74] sm:$0xf]
    %v101 = vld [vmem:[#allocation3 + $0x78] sm:$0xff]
    %v102 = vld [vmem:[#allocation3 + $0x80] sm:$0xf]
    %v103 = vld [vmem:[#allocation3 + $0x84] sm:$0xff]
    %v104 = vld [vmem:[#allocation3 + $0x8c] sm:$0xf]
    %v105 = vld [vmem:[#allocation3 + $0x90] sm:$0xff]
    %v106 = vld [vmem:[#allocation3 + $0x98] sm:$0xf]
    %v107 = vld [vmem:[#allocation3 + $0x9c] sm:$0xff]
    %v108 = vld [vmem:[#allocation3 + $0xa4] sm:$0xf]
    %v109 = vld [vmem:[#allocation3 + $0xa8] sm:$0xff]
    %v110 = vld [vmem:[#allocation3 + $0xb0] sm:$0xf]
    %v111 = vld [vmem:[#allocation3 + $0xb4] sm:$0xff]
    %v112 = vld [vmem:[#allocation3 + $0xbc] sm:$0xf]
    %v113 = vld [vmem:[#allocation3 + $0xc0] sm:$0xff]
    %v114 = vld [vmem:[#allocation3 + $0xc8] sm:$0xf]
    %v115 = vld [vmem:[#allocation3 + $0xcc] sm:$0xff]
    %v116 = vld [vmem:[#allocation3 + $0xd4] sm:$0xf]
    %v117 = vld [vmem:[#allocation3 + $0xd8] sm:$0xff]
    %v118 = vld [vmem:[#allocation3 + $0xe0] sm:$0xf]
    %v119 = vld [vmem:[#allocation3 + $0xe4] sm:$0xff]
    %v120 = vld [vmem:[#allocation3 + $0xec] sm:$0xf]
    %v121 = vld [vmem:[#allocation3 + $0xf0] sm:$0xff]
    %v122 = vld [vmem:[#allocation3 + $0xf8] sm:$0xf]
    %v123 = vld [vmem:[#allocation3 + $0xfc] sm:$0xff]
    %v124 = vld [vmem:[#allocation3 + $0x104] sm:$0xf]
    %v125 = vld [vmem:[#allocation3 + $0x108] sm:$0xff]
    %v126 = vld [vmem:[#allocation3 + $0x110] sm:$0xf]
    %v127 = vld [vmem:[#allocation3 + $0x114] sm:$0xff]
    %v128 = vld [vmem:[#allocation3 + $0x11c] sm:$0xf]
    %v129 = vld [vmem:[#allocation3 + $0x120] sm:$0xff]
    %v130 = vld [vmem:[#allocation3 + $0x128] sm:$0xf]
    %v131 = vld [vmem:[#allocation3 + $0x12c] sm:$0xff]
    %v132 = vld [vmem:[#allocation3 + $0x134] sm:$0xf]
    %v133 = vld [vmem:[#allocation3 + $0x138] sm:$0xff]
    %v134 = vld [vmem:[#allocation3 + $0x140] sm:$0xf]
    %v135 = vld [vmem:[#allocation3 + $0x144] sm:$0xff]
    %v136 = vld [vmem:[#allocation3 + $0x14c] sm:$0xf]
    %v137 = vld [vmem:[#allocation3 + $0x150] sm:$0xff]
    %v138 = vld [vmem:[#allocation3 + $0x158] sm:$0xf]
    %v139 = vld [vmem:[#allocation3 + $0x15c] sm:$0xff]
    %v140 = vld [vmem:[#allocation3 + $0x164] sm:$0xf]
    %v141 = vld [vmem:[#allocation3 + $0x168] sm:$0xff]
    %v142 = vld [vmem:[#allocation3 + $0x170] sm:$0xf]
    %v143 = vld [vmem:[#allocation3 + $0x174] sm:$0xff]
    %v144 = vld [vmem:[#allocation3 + $0x17c] sm:$0xf]
    %v145 = vld [vmem:[#allocation6] sm:$0xff]
    %v146 = vld [vmem:[#allocation6 + $0x8] sm:$0xf]
    %v147 = vld [vmem:[#allocation6 + $0xc] sm:$0xff]
    %v148 = vld [vmem:[#allocation6 + $0x14] sm:$0xf]
    %v149 = vld [vmem:[#allocation6 + $0x18] sm:$0xff]
    %v150 = vld [vmem:[#allocation6 + $0x20] sm:$0xf]
    %v151 = vld [vmem:[#allocation6 + $0x24] sm:$0xff]
    %v152 = vld [vmem:[#allocation6 + $0x2c] sm:$0xf]
    %v153 = vld [vmem:[#allocation6 + $0x30] sm:$0xff]
    %v154 = vld [vmem:[#allocation6 + $0x38] sm:$0xf]
    %v155 = vld [vmem:[#allocation6 + $0x3c] sm:$0xff]
    %v156 = vld [vmem:[#allocation6 + $0x44] sm:$0xf]
    %v157 = vld [vmem:[#allocation6 + $0x48] sm:$0xff]
    %v158 = vld [vmem:[#allocation6 + $0x50] sm:$0xf]
    %v159 = vld [vmem:[#allocation6 + $0x54] sm:$0xff]
    %v160 = vld [vmem:[#allocation6 + $0x5c] sm:$0xf]
    %v161 = vld [vmem:[#allocation6 + $0x60] sm:$0xff]
    %v162 = vld [vmem:[#allocation6 + $0x68] sm:$0xf]
    %v163 = vld [vmem:[#allocation6 + $0x6c] sm:$0xff]
    %v164 = vld [vmem:[#allocation6 + $0x74] sm:$0xf]
    %v165 = vld [vmem:[#allocation6 + $0x78] sm:$0xff]
    %v166 = vld [vmem:[#allocation6 + $0x80] sm:$0xf]
    %v167 = vld [vmem:[#allocation6 + $0x84] sm:$0xff]
    %v168 = vld [vmem:[#allocation6 + $0x8c] sm:$0xf]
    %v169 = vld [vmem:[#allocation6 + $0x90] sm:$0xff]
    %v170 = vld [vmem:[#allocation6 + $0x98] sm:$0xf]
    %v171 = vld [vmem:[#allocation6 + $0x9c] sm:$0xff]
    %v172 = vld [vmem:[#allocation6 + $0xa4] sm:$0xf]
    %v173 = vld [vmem:[#allocation6 + $0xa8] sm:$0xff]
    %v174 = vld [vmem:[#allocation6 + $0xb0] sm:$0xf]
    %v175 = vld [vmem:[#allocation6 + $0xb4] sm:$0xff]
    %v176 = vld [vmem:[#allocation6 + $0xbc] sm:$0xf]
    %v177 = vld [vmem:[%s4] sm:$0x7]
    %v178 = vld [vmem:[#allocation8] sm:$0xff]
    %v179 = vld [vmem:[#allocation8 + $0x8] sm:$0xff]
    %v180 = vld [vmem:[#allocation8 + $0x10] sm:$0xff]
    %v181 = vld [vmem:[#allocation8 + $0x18] sm:$0xff]
    %v182 = vld [vmem:[#allocation8 + $0x20] sm:$0xff]
    %v183 = vld [vmem:[#allocation8 + $0x28] sm:$0xff]
    %v184 = vld [vmem:[#allocation8 + $0x30] sm:$0xff]
    %v185 = vld [vmem:[#allocation8 + $0x38] sm:$0xff]
    %v186 = vld [vmem:[#allocation8 + $0x40] sm:$0xff]
    %v187 = vld [vmem:[#allocation8 + $0x48] sm:$0xff]
    %v188 = vld [vmem:[#allocation8 + $0x50] sm:$0xff]
    %v189 = vld [vmem:[#allocation8 + $0x58] sm:$0xff]
    %v190 = vld [vmem:[#allocation8 + $0x60] sm:$0xff]
    %v191 = vld [vmem:[#allocation8 + $0x68] sm:$0xff]
    %v192 = vld [vmem:[#allocation8 + $0x70] sm:$0xff]
    %v193 = vld [vmem:[#allocation8 + $0x78] sm:$0xff]
    %v194 = vld [vmem:[%s6] sm:$0x3]
    %v195 = vld [vmem:[#allocation2] sm:$0xff]
    %v196 = vld [vmem:[%s0] sm:$0xff]
    %197 = vset.pattern.permute.xlu0 0
    %198 = vperm.xlu0 %197, %v196
    %v199 = vpop.permute.xlu0 %198
    %vm200 = vcmp.eq.s32.totalorder %v79, %v199
    %vm201 = vcmp.eq.s32.totalorder %v80, %v199
    %v202 = vsel %vm200, 1, 0
    %v203 = vsel %vm201, 1, 0
    %v204 = vcvt.s32.f32 %v202
    %v205 = vcvt.s32.f32 %v203
    %v206 = vpack.c.bf16 %v204, %v204
    %v207 = vpack.c.bf16 %v205, %v205
    %v272 = vunpack.c.l.b16 %v81
    %v273 = vunpack.c.h.b16 %v81
    %v274 = vunpack.c.l.b16 %v82
    %v275 = vunpack.c.l.b16 %v83
    %v276 = vunpack.c.h.b16 %v83
    %v277 = vunpack.c.l.b16 %v84
    %v278 = vunpack.c.l.b16 %v85
    %v279 = vunpack.c.h.b16 %v85
    %v280 = vunpack.c.l.b16 %v86
    %v281 = vunpack.c.l.b16 %v87
    %v282 = vunpack.c.h.b16 %v87
    %v283 = vunpack.c.l.b16 %v88
    %v284 = vunpack.c.l.b16 %v89
    %v285 = vunpack.c.h.b16 %v89
    %v286 = vunpack.c.l.b16 %v90
    %v287 = vunpack.c.l.b16 %v91
    %v288 = vunpack.c.h.b16 %v91
    %v289 = vunpack.c.l.b16 %v92
    %v290 = vunpack.c.l.b16 %v93
    %v291 = vunpack.c.h.b16 %v93
    %v292 = vunpack.c.l.b16 %v94
    %v293 = vunpack.c.l.b16 %v95
    %v294 = vunpack.c.h.b16 %v95
    %v295 = vunpack.c.l.b16 %v96
    %v296 = vunpack.c.l.b16 %v97
    %v297 = vunpack.c.h.b16 %v97
    %v298 = vunpack.c.l.b16 %v98
    %v299 = vunpack.c.l.b16 %v99
    %v300 = vunpack.c.h.b16 %v99
    %v301 = vunpack.c.l.b16 %v100
    %v302 = vunpack.c.l.b16 %v101
    %v303 = vunpack.c.h.b16 %v101
    %v304 = vunpack.c.l.b16 %v102
    %v305 = vunpack.c.l.b16 %v103
    %v306 = vunpack.c.h.b16 %v103
    %v307 = vunpack.c.l.b16 %v104
    %v308 = vunpack.c.l.b16 %v105
    %v309 = vunpack.c.h.b16 %v105
    %v310 = vunpack.c.l.b16 %v106
    %v311 = vunpack.c.l.b16 %v107
    %v312 = vunpack.c.h.b16 %v107
    %v313 = vunpack.c.l.b16 %v108
    %v314 = vunpack.c.l.b16 %v109
    %v315 = vunpack.c.h.b16 %v109
    %v316 = vunpack.c.l.b16 %v110
    %v317 = vunpack.c.l.b16 %v111
    %v318 = vunpack.c.h.b16 %v111
    %v319 = vunpack.c.l.b16 %v112
    %v320 = vunpack.c.l.b16 %v113
    %v321 = vunpack.c.h.b16 %v113
    %v322 = vunpack.c.l.b16 %v114
    %v323 = vunpack.c.l.b16 %v115
    %v324 = vunpack.c.h.b16 %v115
    %v325 = vunpack.c.l.b16 %v116
    %v326 = vunpack.c.l.b16 %v117
    %v327 = vunpack.c.h.b16 %v117
    %v328 = vunpack.c.l.b16 %v118
    %v329 = vunpack.c.l.b16 %v119
    %v330 = vunpack.c.h.b16 %v119
    %v331 = vunpack.c.l.b16 %v120
    %v332 = vunpack.c.l.b16 %v121
    %v333 = vunpack.c.h.b16 %v121
    %v334 = vunpack.c.l.b16 %v122
    %v335 = vunpack.c.l.b16 %v123
    %v336 = vunpack.c.h.b16 %v123
    %v337 = vunpack.c.l.b16 %v124
    %v338 = vunpack.c.l.b16 %v125
    %v339 = vunpack.c.h.b16 %v125
    %v340 = vunpack.c.l.b16 %v126
    %v341 = vunpack.c.l.b16 %v127
    %v342 = vunpack.c.h.b16 %v127
    %v343 = vunpack.c.l.b16 %v128
    %v344 = vunpack.c.l.b16 %v129
    %v345 = vunpack.c.h.b16 %v129
    %v346 = vunpack.c.l.b16 %v130
    %v347 = vunpack.c.l.b16 %v131
    %v348 = vunpack.c.h.b16 %v131
    %v349 = vunpack.c.l.b16 %v132
    %v350 = vunpack.c.l.b16 %v133
    %v351 = vunpack.c.h.b16 %v133
    %v352 = vunpack.c.l.b16 %v134
    %v353 = vunpack.c.l.b16 %v135
    %v354 = vunpack.c.h.b16 %v135
    %v355 = vunpack.c.l.b16 %v136
    %v356 = vunpack.c.l.b16 %v137
    %v357 = vunpack.c.h.b16 %v137
    %v358 = vunpack.c.l.b16 %v138
    %v359 = vunpack.c.l.b16 %v139
    %v360 = vunpack.c.h.b16 %v139
    %v361 = vunpack.c.l.b16 %v140
    %v362 = vunpack.c.l.b16 %v141
    %v363 = vunpack.c.h.b16 %v141
    %v364 = vunpack.c.l.b16 %v142
    %v365 = vunpack.c.l.b16 %v143
    %v366 = vunpack.c.h.b16 %v143
    %v367 = vunpack.c.l.b16 %v144
    %v368 = vpack.c.b16 %v275, %v272
    %v369 = vpack.c.b16 %v276, %v273
    %v370 = vpack.c.b16 %v277, %v274
    %v371 = vpack.c.b16 %v281, %v278
    %v372 = vpack.c.b16 %v282, %v279
    %v373 = vpack.c.b16 %v283, %v280
    %v374 = vpack.c.b16 %v287, %v284
    %v375 = vpack.c.b16 %v288, %v285
    %v376 = vpack.c.b16 %v289, %v286
    %v377 = vpack.c.b16 %v293, %v290
    %v378 = vpack.c.b16 %v294, %v291
    %v379 = vpack.c.b16 %v295, %v292
    %v380 = vpack.c.b16 %v299, %v296
    %v381 = vpack.c.b16 %v300, %v297
    %v382 = vpack.c.b16 %v301, %v298
    %v383 = vpack.c.b16 %v305, %v302
    %v384 = vpack.c.b16 %v306, %v303
    %v385 = vpack.c.b16 %v307, %v304
    %v386 = vpack.c.b16 %v311, %v308
    %v387 = vpack.c.b16 %v312, %v309
    %v388 = vpack.c.b16 %v313, %v310
    %v389 = vpack.c.b16 %v317, %v314
    %v390 = vpack.c.b16 %v318, %v315
    %v391 = vpack.c.b16 %v319, %v316
    %v392 = vpack.c.b16 %v323, %v320
    %v393 = vpack.c.b16 %v324, %v321
    %v394 = vpack.c.b16 %v325, %v322
    %v395 = vpack.c.b16 %v329, %v326
    %v396 = vpack.c.b16 %v330, %v327
    %v397 = vpack.c.b16 %v331, %v328
    %v398 = vpack.c.b16 %v335, %v332
    %v399 = vpack.c.b16 %v336, %v333
    %v400 = vpack.c.b16 %v337, %v334
    %v401 = vpack.c.b16 %v341, %v338
    %v402 = vpack.c.b16 %v342, %v339
    %v403 = vpack.c.b16 %v343, %v340
    %v404 = vpack.c.b16 %v347, %v344
    %v405 = vpack.c.b16 %v348, %v345
    %v406 = vpack.c.b16 %v349, %v346
    %v407 = vpack.c.b16 %v353, %v350
    %v408 = vpack.c.b16 %v354, %v351
    %v409 = vpack.c.b16 %v355, %v352
    %v410 = vpack.c.b16 %v359, %v356
    %v411 = vpack.c.b16 %v360, %v357
    %v412 = vpack.c.b16 %v361, %v358
    %v413 = vpack.c.b16 %v365, %v362
    %v414 = vpack.c.b16 %v366, %v363
    %v415 = vpack.c.b16 %v367, %v364
    %464 = vmatprep.subr.bf16.mxu0 %v369
    %465 = vmatpush1.bf16.msra.mxu0 %v368
    %466 = vmatprep.subr.bf16.mxu0 %v372
    %467 = vmatpush1.bf16.msra.mxu0 %v371
    %468 = vmatprep.subr.bf16.mxu0 %v375
    %469 = vmatpush1.bf16.msra.mxu0 %v374
    %470 = vmatprep.subr.bf16.mxu0 %v378
    %471 = vmatpush1.bf16.msra.mxu0 %v377
    %472 = vmatprep.subr.bf16.mxu0 %v381
    %473 = vmatpush1.bf16.msra.mxu0 %v380
    %474 = vmatprep.subr.bf16.mxu0 %v384
    %475 = vmatpush1.bf16.msra.mxu0 %v383
    %476 = vmatprep.subr.bf16.mxu0 %v387
    %477 = vmatpush1.bf16.msra.mxu0 %v386
    %478 = vmatprep.subr.bf16.mxu0 %v390
    %479 = vmatpush1.bf16.msra.mxu0 %v389
    %480 = vmatprep.subr.bf16.mxu0 %v393
    %481 = vmatpush1.bf16.msra.mxu0 %v392
    %482 = vmatprep.subr.bf16.mxu0 %v396
    %483 = vmatpush1.bf16.msra.mxu0 %v395
    %484 = vmatprep.subr.bf16.mxu0 %v399
    %485 = vmatpush1.bf16.msra.mxu0 %v398
    %486 = vmatprep.subr.bf16.mxu0 %v402
    %487 = vmatpush1.bf16.msra.mxu0 %v401
    %488 = vmatprep.subr.bf16.mxu0 %v405
    %489 = vmatpush1.bf16.msra.mxu0 %v404
    %490 = vmatprep.subr.bf16.mxu0 %v408
    %491 = vmatpush1.bf16.msra.mxu0 %v407
    %492 = vmatprep.subr.bf16.mxu0 %v411
    %493 = vmatpush1.bf16.msra.mxu0 %v410
    %494 = vmatprep.subr.bf16.mxu0 %v414
    %495 = vmatpush1.bf16.msra.mxu0 %v413
    %496 = vmatprep.mubr.bf16.mxu0 %v207
    %497 = vmatmul.mubr.bf16.gmra.mrb[0].mxu0 %v206
    %v498 = vpop.f32.mrb[0].mxu0
    %v499 = vadd.f32 0.0, %v498
    %v500 = vpop.f32.mrb[0].mxu0
    %v501 = vadd.f32 0.0, %v500
    %v502 = vpop.f32.mrb[0].mxu0
    %v503 = vpop.f32.mrb[0].mxu0
    %504 = vdwg.mxu0
    %505 = vmatprep.subr.bf16.mxu0 0
    %506 = vmatpush1.bf16.msra.mxu0 %v370
    %507 = vmatprep.subr.bf16.mxu0 0
    %508 = vmatpush1.bf16.msra.mxu0 %v373
    %509 = vmatprep.subr.bf16.mxu0 0
    %510 = vmatpush1.bf16.msra.mxu0 %v376
    %511 = vmatprep.subr.bf16.mxu0 0
    %512 = vmatpush1.bf16.msra.mxu0 %v379
    %513 = vmatprep.subr.bf16.mxu0 0
    %514 = vmatpush1.bf16.msra.mxu0 %v382
    %515 = vmatprep.subr.bf16.mxu0 0
    %516 = vmatpush1.bf16.msra.mxu0 %v385
    %517 = vmatprep.subr.bf16.mxu0 0
    %518 = vmatpush1.bf16.msra.mxu0 %v388
    %519 = vmatprep.subr.bf16.mxu0 0
    %520 = vmatpush1.bf16.msra.mxu0 %v391
    %521 = vmatprep.subr.bf16.mxu0 0
    %522 = vmatpush1.bf16.msra.mxu0 %v394
    %523 = vmatprep.subr.bf16.mxu0 0
    %524 = vmatpush1.bf16.msra.mxu0 %v397
    %525 = vmatprep.subr.bf16.mxu0 0
    %526 = vmatpush1.bf16.msra.mxu0 %v400
    %527 = vmatprep.subr.bf16.mxu0 0
    %528 = vmatpush1.bf16.msra.mxu0 %v403
    %529 = vmatprep.subr.bf16.mxu0 0
    %530 = vmatpush1.bf16.msra.mxu0 %v406
    %531 = vmatprep.subr.bf16.mxu0 0
    %532 = vmatpush1.bf16.msra.mxu0 %v409
    %533 = vmatprep.subr.bf16.mxu0 0
    %534 = vmatpush1.bf16.msra.mxu0 %v412
    %535 = vmatprep.subr.bf16.mxu0 0
    %536 = vmatpush1.bf16.msra.mxu0 %v415
    %537 = vmatprep.mubr.bf16.mxu0 %v207
    %538 = vmatmul.mubr.bf16.gmra.mrb[0].mxu0 %v206
    %v539 = vpop.f32.mrb[0].mxu0
    %v540 = vadd.f32 0.0, %v539
    %v541 = vpop.f32.mrb[0].mxu0
    %v542 = vpop.f32.mrb[0].mxu0
    %v543 = vpop.f32.mrb[0].mxu0
    %544 = vdwg.mxu0
    %v545 = vpack.c.bf16 %v195, %v195
    %v547 = vlaneseq
    %v548 = vshrl.u32 %v547, 7
    %v549 = vsub.s32 0, %v548
    %v550 = vrot.slane %v177, %v549
    %v551 = vlaneseq
    %v552 = vshrl.u32 %v551, 7
    %v553 = vsub.s32 1, %v552
    %v554 = vrot.slane %v177, %v553
    %v555 = vlaneseq
    %v556 = vshrl.u32 %v555, 7
    %v557 = vsub.s32 2, %v556
    %v558 = vrot.slane %v177, %v557
    %v594 = vunpack.c.l.b16 %v145
    %v595 = vunpack.c.h.b16 %v145
    %v596 = vunpack.c.l.b16 %v146
    %v597 = vunpack.c.l.b16 %v147
    %v598 = vunpack.c.h.b16 %v147
    %v599 = vunpack.c.l.b16 %v148
    %v600 = vunpack.c.l.b16 %v149
    %v601 = vunpack.c.h.b16 %v149
    %v602 = vunpack.c.l.b16 %v150
    %v603 = vunpack.c.l.b16 %v151
    %v604 = vunpack.c.h.b16 %v151
    %v605 = vunpack.c.l.b16 %v152
    %v606 = vunpack.c.l.b16 %v153
    %v607 = vunpack.c.h.b16 %v153
    %v608 = vunpack.c.l.b16 %v154
    %v609 = vunpack.c.l.b16 %v155
    %v610 = vunpack.c.h.b16 %v155
    %v611 = vunpack.c.l.b16 %v156
    %v612 = vunpack.c.l.b16 %v157
    %v613 = vunpack.c.h.b16 %v157
    %v614 = vunpack.c.l.b16 %v158
    %v615 = vunpack.c.l.b16 %v159
    %v616 = vunpack.c.h.b16 %v159
    %v617 = vunpack.c.l.b16 %v160
    %v618 = vunpack.c.l.b16 %v161
    %v619 = vunpack.c.h.b16 %v161
    %v620 = vunpack.c.l.b16 %v162
    %v621 = vunpack.c.l.b16 %v163
    %v622 = vunpack.c.h.b16 %v163
    %v623 = vunpack.c.l.b16 %v164
    %v624 = vunpack.c.l.b16 %v165
    %v625 = vunpack.c.h.b16 %v165
    %v626 = vunpack.c.l.b16 %v166
    %v627 = vunpack.c.l.b16 %v167
    %v628 = vunpack.c.h.b16 %v167
    %v629 = vunpack.c.l.b16 %v168
    %v630 = vunpack.c.l.b16 %v169
    %v631 = vunpack.c.h.b16 %v169
    %v632 = vunpack.c.l.b16 %v170
    %v633 = vunpack.c.l.b16 %v171
    %v634 = vunpack.c.h.b16 %v171
    %v635 = vunpack.c.l.b16 %v172
    %v636 = vunpack.c.l.b16 %v173
    %v637 = vunpack.c.h.b16 %v173
    %v638 = vunpack.c.l.b16 %v174
    %v639 = vunpack.c.l.b16 %v175
    %v640 = vunpack.c.h.b16 %v175
    %v641 = vunpack.c.l.b16 %v176
    %v642 = vpack.c.b16 %v597, %v594
    %v643 = vpack.c.b16 %v598, %v595
    %v644 = vpack.c.b16 %v599, %v596
    %v645 = vpack.c.b16 %v603, %v600
    %v646 = vpack.c.b16 %v604, %v601
    %v647 = vpack.c.b16 %v605, %v602
    %v648 = vpack.c.b16 %v609, %v606
    %v649 = vpack.c.b16 %v610, %v607
    %v650 = vpack.c.b16 %v611, %v608
    %v651 = vpack.c.b16 %v615, %v612
    %v652 = vpack.c.b16 %v616, %v613
    %v653 = vpack.c.b16 %v617, %v614
    %v654 = vpack.c.b16 %v621, %v618
    %v655 = vpack.c.b16 %v622, %v619
    %v656 = vpack.c.b16 %v623, %v620
    %v657 = vpack.c.b16 %v627, %v624
    %v658 = vpack.c.b16 %v628, %v625
    %v659 = vpack.c.b16 %v629, %v626
    %v660 = vpack.c.b16 %v633, %v630
    %v661 = vpack.c.b16 %v634, %v631
    %v662 = vpack.c.b16 %v635, %v632
    %v663 = vpack.c.b16 %v639, %v636
    %v664 = vpack.c.b16 %v640, %v637
    %v665 = vpack.c.b16 %v641, %v638
    %690 = vmatprep.subr.bf16.mxu0 %v643
    %691 = vmatpush1.bf16.msra.mxu0 %v642
    %692 = vmatprep.subr.bf16.mxu0 %v646
    %693 = vmatpush1.bf16.msra.mxu0 %v645
    %694 = vmatprep.subr.bf16.mxu0 %v649
    %695 = vmatpush1.bf16.msra.mxu0 %v648
    %696 = vmatprep.subr.bf16.mxu0 %v652
    %697 = vmatpush1.bf16.msra.mxu0 %v651
    %698 = vmatprep.subr.bf16.mxu0 %v655
    %699 = vmatpush1.bf16.msra.mxu0 %v654
    %700 = vmatprep.subr.bf16.mxu0 %v658
    %701 = vmatpush1.bf16.msra.mxu0 %v657
    %702 = vmatprep.subr.bf16.mxu0 %v661
    %703 = vmatpush1.bf16.msra.mxu0 %v660
    %704 = vmatprep.subr.bf16.mxu0 %v664
    %705 = vmatpush1.bf16.msra.mxu0 %v663
    %706 = vmatprep.subr.bf16.mxu0 0
    %707 = vmatpush1.bf16.msra.mxu0 0
    %708 = vmatprep.subr.bf16.mxu0 0
    %709 = vmatpush1.bf16.msra.mxu0 0
    %710 = vmatprep.subr.bf16.mxu0 0
    %711 = vmatpush1.bf16.msra.mxu0 0
    %712 = vmatprep.subr.bf16.mxu0 0
    %713 = vmatpush1.bf16.msra.mxu0 0
    %714 = vmatprep.subr.bf16.mxu0 0
    %715 = vmatpush1.bf16.msra.mxu0 0
    %716 = vmatprep.subr.bf16.mxu0 0
    %717 = vmatpush1.bf16.msra.mxu0 0
    %718 = vmatprep.subr.bf16.mxu0 0
    %719 = vmatpush1.bf16.msra.mxu0 0
    %720 = vmatprep.subr.bf16.mxu0 0
    %721 = vmatpush1.bf16.msra.mxu0 0
    %722 = vmatprep.mubr.bf16.mxu0 0
    %723 = vmatmul.mubr.bf16.gmra.mrb[0].mxu0 %v545
    %v724 = vpop.f32.mrb[0].mxu0
    %v725 = vadd.f32 %v550, %v724
    %v726 = vpop.f32.mrb[0].mxu0
    %v727 = vadd.f32 %v554, %v726
    %v728 = vpop.f32.mrb[0].mxu0
    %v729 = vpop.f32.mrb[0].mxu0
    %730 = vdwg.mxu0
    %731 = vmatprep.subr.bf16.mxu0 0
    %732 = vmatpush1.bf16.msra.mxu0 %v644
    %733 = vmatprep.subr.bf16.mxu0 0
    %734 = vmatpush1.bf16.msra.mxu0 %v647
    %735 = vmatprep.subr.bf16.mxu0 0
    %736 = vmatpush1.bf16.msra.mxu0 %v650
    %737 = vmatprep.subr.bf16.mxu0 0
    %738 = vmatpush1.bf16.msra.mxu0 %v653
    %739 = vmatprep.subr.bf16.mxu0 0
    %740 = vmatpush1.bf16.msra.mxu0 %v656
    %741 = vmatprep.subr.bf16.mxu0 0
    %742 = vmatpush1.bf16.msra.mxu0 %v659
    %743 = vmatprep.subr.bf16.mxu0 0
    %744 = vmatpush1.bf16.msra.mxu0 %v662
    %745 = vmatprep.subr.bf16.mxu0 0
    %746 = vmatpush1.bf16.msra.mxu0 %v665
    %747 = vmatprep.subr.bf16.mxu0 0
    %748 = vmatpush1.bf16.msra.mxu0 0
    %749 = vmatprep.subr.bf16.mxu0 0
    %750 = vmatpush1.bf16.msra.mxu0 0
    %751 = vmatprep.subr.bf16.mxu0 0
    %752 = vmatpush1.bf16.msra.mxu0 0
    %753 = vmatprep.subr.bf16.mxu0 0
    %754 = vmatpush1.bf16.msra.mxu0 0
    %755 = vmatprep.subr.bf16.mxu0 0
    %756 = vmatpush1.bf16.msra.mxu0 0
    %757 = vmatprep.subr.bf16.mxu0 0
    %758 = vmatpush1.bf16.msra.mxu0 0
    %759 = vmatprep.subr.bf16.mxu0 0
    %760 = vmatpush1.bf16.msra.mxu0 0
    %761 = vmatprep.subr.bf16.mxu0 0
    %762 = vmatpush1.bf16.msra.mxu0 0
    %763 = vmatprep.mubr.bf16.mxu0 0
    %764 = vmatmul.mubr.bf16.gmra.mrb[0].mxu0 %v545
    %v765 = vpop.f32.mrb[0].mxu0
    %v766 = vadd.f32 %v558, %v765
    %v767 = vpop.f32.mrb[0].mxu0
    %v768 = vpop.f32.mrb[0].mxu0
    %v769 = vpop.f32.mrb[0].mxu0
    %770 = vdwg.mxu0
    %v771 = vadd.f32 %v499, %v725
    %v772 = vxor.u32 %v771, 2147483648
    %v773 = vmul.f32 %v772, 1.442695
    %v774 = vpow.pop %v773
    %v775 = vadd.f32 %v774, 1.0
    %v776 = vrcp.pop %v775
    %v777 = vmul.f32 1.0, %v776
    %v778 = vadd.f32 %v501, %v727
    %v779 = vxor.u32 %v778, 2147483648
    %v780 = vmul.f32 %v779, 1.442695
    %v781 = vpow.pop %v780
    %v782 = vadd.f32 %v781, 1.0
    %v783 = vrcp.pop %v782
    %v784 = vmul.f32 1.0, %v783
    %v785 = vmul.f32 %v777, %v766
    %v786 = vadd.f32 %v540, %v785
    %v787 = vtanh.pop %v786
    %v788 = vsub.f32 1.0, %v784
    %v789 = vmul.f32 %v788, %v787
    %v790 = vmul.f32 %v784, %v195
    %v791 = vadd.f32 %v789, %v790
    %v792 = vpack.c.bf16 %v791, %v791
    %v794 = vlaneseq
    %v795 = vshrl.u32 %v794, 7
    %v796 = vsub.s32 0, %v795
    %v797 = vrot.slane %v194, %v796
    %v798 = vlaneseq
    %v799 = vshrl.u32 %v798, 7
    %v800 = vsub.s32 1, %v799
    %v801 = vrot.slane %v194, %v800
    %v820 = vunpack.c.l.b16 %v178
    %v821 = vunpack.c.h.b16 %v178
    %v822 = vunpack.c.l.b16 %v179
    %v823 = vunpack.c.h.b16 %v179
    %v824 = vunpack.c.l.b16 %v180
    %v825 = vunpack.c.h.b16 %v180
    %v826 = vunpack.c.l.b16 %v181
    %v827 = vunpack.c.h.b16 %v181
    %v828 = vunpack.c.l.b16 %v182
    %v829 = vunpack.c.h.b16 %v182
    %v830 = vunpack.c.l.b16 %v183
    %v831 = vunpack.c.h.b16 %v183
    %v832 = vunpack.c.l.b16 %v184
    %v833 = vunpack.c.h.b16 %v184
    %v834 = vunpack.c.l.b16 %v185
    %v835 = vunpack.c.h.b16 %v185
    %v836 = vunpack.c.l.b16 %v186
    %v837 = vunpack.c.h.b16 %v186
    %v838 = vunpack.c.l.b16 %v187
    %v839 = vunpack.c.h.b16 %v187
    %v840 = vunpack.c.l.b16 %v188
    %v841 = vunpack.c.h.b16 %v188
    %v842 = vunpack.c.l.b16 %v189
    %v843 = vunpack.c.h.b16 %v189
    %v844 = vunpack.c.l.b16 %v190
    %v845 = vunpack.c.h.b16 %v190
    %v846 = vunpack.c.l.b16 %v191
    %v847 = vunpack.c.h.b16 %v191
    %v848 = vunpack.c.l.b16 %v192
    %v849 = vunpack.c.h.b16 %v192
    %v850 = vunpack.c.l.b16 %v193
    %v851 = vunpack.c.h.b16 %v193
    %v852 = vpack.c.b16 %v822, %v820
    %v853 = vpack.c.b16 %v823, %v821
    %v854 = vpack.c.b16 %v826, %v824
    %v855 = vpack.c.b16 %v827, %v825
    %v856 = vpack.c.b16 %v830, %v828
    %v857 = vpack.c.b16 %v831, %v829
    %v858 = vpack.c.b16 %v834, %v832
    %v859 = vpack.c.b16 %v835, %v833
    %v860 = vpack.c.b16 %v838, %v836
    %v861 = vpack.c.b16 %v839, %v837
    %v862 = vpack.c.b16 %v842, %v840
    %v863 = vpack.c.b16 %v843, %v841
    %v864 = vpack.c.b16 %v846, %v844
    %v865 = vpack.c.b16 %v847, %v845
    %v866 = vpack.c.b16 %v850, %v848
    %v867 = vpack.c.b16 %v851, %v849
    %884 = vmatprep.subr.bf16.mxu0 %v853
    %885 = vmatpush1.bf16.msra.mxu0 %v852
    %886 = vmatprep.subr.bf16.mxu0 %v855
    %887 = vmatpush1.bf16.msra.mxu0 %v854
    %888 = vmatprep.subr.bf16.mxu0 %v857
    %889 = vmatpush1.bf16.msra.mxu0 %v856
    %890 = vmatprep.subr.bf16.mxu0 %v859
    %891 = vmatpush1.bf16.msra.mxu0 %v858
    %892 = vmatprep.subr.bf16.mxu0 %v861
    %893 = vmatpush1.bf16.msra.mxu0 %v860
    %894 = vmatprep.subr.bf16.mxu0 %v863
    %895 = vmatpush1.bf16.msra.mxu0 %v862
    %896 = vmatprep.subr.bf16.mxu0 %v865
    %897 = vmatpush1.bf16.msra.mxu0 %v864
    %898 = vmatprep.subr.bf16.mxu0 %v867
    %899 = vmatpush1.bf16.msra.mxu0 %v866
    %900 = vmatprep.subr.bf16.mxu0 0
    %901 = vmatpush1.bf16.msra.mxu0 0
    %902 = vmatprep.subr.bf16.mxu0 0
    %903 = vmatpush1.bf16.msra.mxu0 0
    %904 = vmatprep.subr.bf16.mxu0 0
    %905 = vmatpush1.bf16.msra.mxu0 0
    %906 = vmatprep.subr.bf16.mxu0 0
    %907 = vmatpush1.bf16.msra.mxu0 0
    %908 = vmatprep.subr.bf16.mxu0 0
    %909 = vmatpush1.bf16.msra.mxu0 0
    %910 = vmatprep.subr.bf16.mxu0 0
    %911 = vmatpush1.bf16.msra.mxu0 0
    %912 = vmatprep.subr.bf16.mxu0 0
    %913 = vmatpush1.bf16.msra.mxu0 0
    %914 = vmatprep.subr.bf16.mxu0 0
    %915 = vmatpush1.bf16.msra.mxu0 0
    %916 = vmatprep.mubr.bf16.mxu0 0
    %917 = vmatmul.mubr.bf16.gmra.mrb[0].mxu0 %v792
    %v918 = vpop.f32.mrb[0].mxu0
    %v919 = vadd.f32 %v797, %v918
    %v920 = vpop.f32.mrb[0].mxu0
    %v921 = vadd.f32 %v801, %v920
    %v922 = vpop.f32.mrb[0].mxu0
    %v923 = vpop.f32.mrb[0].mxu0
    %924 = vdwg.mxu0
    %v925 = vmax.f32 %v919, %v921
    %926 = vmax.xlane.f32.xlu0 %v925
    %v927 = vpop.xlane.xlu0 %926
    %v928 = vsub.f32 %v919, %v927
    %v929 = vsub.f32 %v921, %v927
    %v930 = vmul.f32 %v928, 1.442695
    %v931 = vpow.pop %v930
    %v932 = vmul.f32 %v929, 1.442695
    %v933 = vpow.pop %v932
    %v934 = vadd.f32 %v931, %v933
    %935 = vadd.xlane.f32.xlu0 %v934
    %v936 = vpop.xlane.xlu0 %935
    %v937 = vlog2.pop %v936
    %v938 = vmul.f32 %v937, 0.6931472
    %v939 = vsub.f32 %v928, %v938
    %v940 = vsub.f32 %v929, %v938
    %941 = vst [vmem:[#allocation9] sm:$0xff] %v939
    %942 = vst [vmem:[#allocation9 + $0x8] sm:$0xff] %v940
    %s943 = scalar_lea.vmem %s0, 8
    %v944 = vld [vmem:[%s943] sm:$0xff]
    %945 = vset.pattern.permute.xlu0 0
    %946 = vperm.xlu0 %945, %v944
    %v947 = vpop.permute.xlu0 %946
    %vm948 = vcmp.eq.s32.totalorder %v79, %v947
    %vm949 = vcmp.eq.s32.totalorder %v80, %v947
    %v950 = vsel %vm948, 1, 0
    %v951 = vsel %vm949, 1, 0
    %v952 = vcvt.s32.f32 %v950
    %v953 = vcvt.s32.f32 %v951
    %v954 = vpack.c.bf16 %v952, %v952
    %v955 = vpack.c.bf16 %v953, %v953
    %956 = vmatprep.subr.bf16.mxu0 %v369
    %957 = vmatpush1.bf16.msra.mxu0 %v368
    %958 = vmatprep.subr.bf16.mxu0 %v372
    %959 = vmatpush1.bf16.msra.mxu0 %v371
    %960 = vmatprep.subr.bf16.mxu0 %v375
    %961 = vmatpush1.bf16.msra.mxu0 %v374
    %962 = vmatprep.subr.bf16.mxu0 %v378
    %963 = vmatpush1.bf16.msra.mxu0 %v377
    %964 = vmatprep.subr.bf16.mxu0 %v381
    %965 = vmatpush1.bf16.msra.mxu0 %v380
    %966 = vmatprep.subr.bf16.mxu0 %v384
    %967 = vmatpush1.bf16.msra.mxu0 %v383
    %968 = vmatprep.subr.bf16.mxu0 %v387
    %969 = vmatpush1.bf16.msra.mxu0 %v386
    %970 = vmatprep.subr.bf16.mxu0 %v390
    %971 = vmatpush1.bf16.msra.mxu0 %v389
    %972 = vmatprep.subr.bf16.mxu0 %v393
    %973 = vmatpush1.bf16.msra.mxu0 %v392
    %974 = vmatprep.subr.bf16.mxu0 %v396
    %975 = vmatpush1.bf16.msra.mxu0 %v395
    %976 = vmatprep.subr.bf16.mxu0 %v399
    %977 = vmatpush1.bf16.msra.mxu0 %v398
    %978 = vmatprep.subr.bf16.mxu0 %v402
    %979 = vmatpush1.bf16.msra.mxu0 %v401
    %980 = vmatprep.subr.bf16.mxu0 %v405
    %981 = vmatpush1.bf16.msra.mxu0 %v404
    %982 = vmatprep.subr.bf16.mxu0 %v408
    %983 = vmatpush1.bf16.msra.mxu0 %v407
    %984 = vmatprep.subr.bf16.mxu0 %v411
    %985 = vmatpush1.bf16.msra.mxu0 %v410
    %986 = vmatprep.subr.bf16.mxu0 %v414
    %987 = vmatpush1.bf16.msra.mxu0 %v413
    %988 = vmatprep.mubr.bf16.mxu0 %v955
    %989 = vmatmul.mubr.bf16.gmra.mrb[0].mxu0 %v954
    %v990 = vpop.f32.mrb[0].mxu0
    %v991 = vadd.f32 0.0, %v990
    %v992 = vpop.f32.mrb[0].mxu0
    %v993 = vadd.f32 0.0, %v992
    %v994 = vpop.f32.mrb[0].mxu0
    %v995 = vpop.f32.mrb[0].mxu0
    %996 = vdwg.mxu0
    %997 = vmatprep.subr.bf16.mxu0 0
    %998 = vmatpush1.bf16.msra.mxu0 %v370
    %999 = vmatprep.subr.bf16.mxu0 0
    %1000 = vmatpush1.bf16.msra.mxu0 %v373
    %1001 = vmatprep.subr.bf16.mxu0 0
    %1002 = vmatpush1.bf16.msra.mxu0 %v376
    %1003 = vmatprep.subr.bf16.mxu0 0
    %1004 = vmatpush1.bf16.msra.mxu0 %v379
    %1005 = vmatprep.subr.bf16.mxu0 0
    %1006 = vmatpush1.bf16.msra.mxu0 %v382
    %1007 = vmatprep.subr.bf16.mxu0 0
    %1008 = vmatpush1.bf16.msra.mxu0 %v385
    %1009 = vmatprep.subr.bf16.mxu0 0
    %1010 = vmatpush1.bf16.msra.mxu0 %v388
    %1011 = vmatprep.subr.bf16.mxu0 0
    %1012 = vmatpush1.bf16.msra.mxu0 %v391
    %1013 = vmatprep.subr.bf16.mxu0 0
    %1014 = vmatpush1.bf16.msra.mxu0 %v394
    %1015 = vmatprep.subr.bf16.mxu0 0
    %1016 = vmatpush1.bf16.msra.mxu0 %v397
    %1017 = vmatprep.subr.bf16.mxu0 0
    %1018 = vmatpush1.bf16.msra.mxu0 %v400
    %1019 = vmatprep.subr.bf16.mxu0 0
    %1020 = vmatpush1.bf16.msra.mxu0 %v403
    %1021 = vmatprep.subr.bf16.mxu0 0
    %1022 = vmatpush1.bf16.msra.mxu0 %v406
    %1023 = vmatprep.subr.bf16.mxu0 0
    %1024 = vmatpush1.bf16.msra.mxu0 %v409
    %1025 = vmatprep.subr.bf16.mxu0 0
    %1026 = vmatpush1.bf16.msra.mxu0 %v412
    %1027 = vmatprep.subr.bf16.mxu0 0
    %1028 = vmatpush1.bf16.msra.mxu0 %v415
    %1029 = vmatprep.mubr.bf16.mxu0 %v955
    %1030 = vmatmul.mubr.bf16.gmra.mrb[0].mxu0 %v954
    %v1031 = vpop.f32.mrb[0].mxu0
    %v1032 = vadd.f32 0.0, %v1031
    %v1033 = vpop.f32.mrb[0].mxu0
    %v1034 = vpop.f32.mrb[0].mxu0
    %v1035 = vpop.f32.mrb[0].mxu0
    %1036 = vdwg.mxu0
    %1037 = vmatprep.subr.bf16.mxu0 %v643
    %1038 = vmatpush1.bf16.msra.mxu0 %v642
    %1039 = vmatprep.subr.bf16.mxu0 %v646
    %1040 = vmatpush1.bf16.msra.mxu0 %v645
    %1041 = vmatprep.subr.bf16.mxu0 %v649
    %1042 = vmatpush1.bf16.msra.mxu0 %v648
    %1043 = vmatprep.subr.bf16.mxu0 %v652
    %1044 = vmatpush1.bf16.msra.mxu0 %v651
    %1045 = vmatprep.subr.bf16.mxu0 %v655
    %1046 = vmatpush1.bf16.msra.mxu0 %v654
    %1047 = vmatprep.subr.bf16.mxu0 %v658
    %1048 = vmatpush1.bf16.msra.mxu0 %v657
    %1049 = vmatprep.subr.bf16.mxu0 %v661
    %1050 = vmatpush1.bf16.msra.mxu0 %v660
    %1051 = vmatprep.subr.bf16.mxu0 %v664
    %1052 = vmatpush1.bf16.msra.mxu0 %v663
    %1053 = vmatprep.subr.bf16.mxu0 0
    %1054 = vmatpush1.bf16.msra.mxu0 0
    %1055 = vmatprep.subr.bf16.mxu0 0
    %1056 = vmatpush1.bf16.msra.mxu0 0
    %1057 = vmatprep.subr.bf16.mxu0 0
    %1058 = vmatpush1.bf16.msra.mxu0 0
    %1059 = vmatprep.subr.bf16.mxu0 0
    %1060 = vmatpush1.bf16.msra.mxu0 0
    %1061 = vmatprep.subr.bf16.mxu0 0
    %1062 = vmatpush1.bf16.msra.mxu0 0
    %1063 = vmatprep.subr.bf16.mxu0 0
    %1064 = vmatpush1.bf16.msra.mxu0 0
    %1065 = vmatprep.subr.bf16.mxu0 0
    %1066 = vmatpush1.bf16.msra.mxu0 0
    %1067 = vmatprep.subr.bf16.mxu0 0
    %1068 = vmatpush1.bf16.msra.mxu0 0
    %1069 = vmatprep.mubr.bf16.mxu0 0
    %1070 = vmatmul.mubr.bf16.gmra.mrb[0].mxu0 %v792
    %v1071 = vpop.f32.mrb[0].mxu0
    %v1072 = vadd.f32 %v550, %v1071
    %v1073 = vpop.f32.mrb[0].mxu0
    %v1074 = vadd.f32 %v554, %v1073
    %v1075 = vpop.f32.mrb[0].mxu0
    %v1076 = vpop.f32.mrb[0].mxu0
    %1077 = vdwg.mxu0
    %1078 = vmatprep.subr.bf16.mxu0 0
    %1079 = vmatpush1.bf16.msra.mxu0 %v644
    %1080 = vmatprep.subr.bf16.mxu0 0
    %1081 = vmatpush1.bf16.msra.mxu0 %v647
    %1082 = vmatprep.subr.bf16.mxu0 0
    %1083 = vmatpush1.bf16.msra.mxu0 %v650
    %1084 = vmatprep.subr.bf16.mxu0 0
    %1085 = vmatpush1.bf16.msra.mxu0 %v653
    %1086 = vmatprep.subr.bf16.mxu0 0
    %1087 = vmatpush1.bf16.msra.mxu0 %v656
    %1088 = vmatprep.subr.bf16.mxu0 0
    %1089 = vmatpush1.bf16.msra.mxu0 %v659
    %1090 = vmatprep.subr.bf16.mxu0 0
    %1091 = vmatpush1.bf16.msra.mxu0 %v662
    %1092 = vmatprep.subr.bf16.mxu0 0
    %1093 = vmatpush1.bf16.msra.mxu0 %v665
    %1094 = vmatprep.subr.bf16.mxu0 0
    %1095 = vmatpush1.bf16.msra.mxu0 0
    %1096 = vmatprep.subr.bf16.mxu0 0
    %1097 = vmatpush1.bf16.msra.mxu0 0
    %1098 = vmatprep.subr.bf16.mxu0 0
    %1099 = vmatpush1.bf16.msra.mxu0 0
    %1100 = vmatprep.subr.bf16.mxu0 0
    %1101 = vmatpush1.bf16.msra.mxu0 0
    %1102 = vmatprep.subr.bf16.mxu0 0
    %1103 = vmatpush1.bf16.msra.mxu0 0
    %1104 = vmatprep.subr.bf16.mxu0 0
    %1105 = vmatpush1.bf16.msra.mxu0 0
    %1106 = vmatprep.subr.bf16.mxu0 0
    %1107 = vmatpush1.bf16.msra.mxu0 0
    %1108 = vmatprep.subr.bf16.mxu0 0
    %1109 = vmatpush1.bf16.msra.mxu0 0
    %1110 = vmatprep.mubr.bf16.mxu0 0
    %1111 = vmatmul.mubr.bf16.gmra.mrb[0].mxu0 %v792
    %v1112 = vpop.f32.mrb[0].mxu0
    %v1113 = vadd.f32 %v558, %v1112
    %v1114 = vpop.f32.mrb[0].mxu0
    %v1115 = vpop.f32.mrb[0].mxu0
    %v1116 = vpop.f32.mrb[0].mxu0
    %1117 = vdwg.mxu0
    %v1118 = vadd.f32 %v991, %v1072
    %v1119 = vxor.u32 %v1118, 2147483648
    %v1120 = vmul.f32 %v1119, 1.442695
    %v1121 = vpow.pop %v1120
    %v1122 = vadd.f32 %v1121, 1.0
    %v1123 = vrcp.pop %v1122
    %v1124 = vmul.f32 1.0, %v1123
    %v1125 = vadd.f32 %v993, %v1074
    %v1126 = vxor.u32 %v1125, 2147483648
    %v1127 = vmul.f32 %v1126, 1.442695
    %v1128 = vpow.pop %v1127
    %v1129 = vadd.f32 %v1128, 1.0
    %v1130 = vrcp.pop %v1129
    %v1131 = vmul.f32 1.0, %v1130
    %v1132 = vmul.f32 %v1124, %v1113
    %v1133 = vadd.f32 %v1032, %v1132
    %v1134 = vtanh.pop %v1133
    %v1135 = vsub.f32 1.0, %v1131
    %v1136 = vmul.f32 %v1135, %v1134
    %v1137 = vmul.f32 %v1131, %v791
    %v1138 = vadd.f32 %v1136, %v1137
    %v1139 = vpack.c.bf16 %v1138, %v1138
    %1140 = vmatprep.subr.bf16.mxu0 %v853
    %1141 = vmatpush1.bf16.msra.mxu0 %v852
    %1142 = vmatprep.subr.bf16.mxu0 %v855
    %1143 = vmatpush1.bf16.msra.mxu0 %v854
    %1144 = vmatprep.subr.bf16.mxu0 %v857
    %1145 = vmatpush1.bf16.msra.mxu0 %v856
    %1146 = vmatprep.subr.bf16.mxu0 %v859
    %1147 = vmatpush1.bf16.msra.mxu0 %v858
    %1148 = vmatprep.subr.bf16.mxu0 %v861
    %1149 = vmatpush1.bf16.msra.mxu0 %v860
    %1150 = vmatprep.subr.bf16.mxu0 %v863
    %1151 = vmatpush1.bf16.msra.mxu0 %v862
    %1152 = vmatprep.subr.bf16.mxu0 %v865
    %1153 = vmatpush1.bf16.msra.mxu0 %v864
    %1154 = vmatprep.subr.bf16.mxu0 %v867
    %1155 = vmatpush1.bf16.msra.mxu0 %v866
    %1156 = vmatprep.subr.bf16.mxu0 0
    %1157 = vmatpush1.bf16.msra.mxu0 0
    %1158 = vmatprep.subr.bf16.mxu0 0
    %1159 = vmatpush1.bf16.msra.mxu0 0
    %1160 = vmatprep.subr.bf16.mxu0 0
    %1161 = vmatpush1.bf16.msra.mxu0 0
    %1162 = vmatprep.subr.bf16.mxu0 0
    %1163 = vmatpush1.bf16.msra.mxu0 0
    %1164 = vmatprep.subr.bf16.mxu0 0
    %1165 = vmatpush1.bf16.msra.mxu0 0
    %1166 = vmatprep.subr.bf16.mxu0 0
    %1167 = vmatpush1.bf16.msra.mxu0 0
    %1168 = vmatprep.subr.bf16.mxu0 0
    %1169 = vmatpush1.bf16.msra.mxu0 0
    %1170 = vmatprep.subr.bf16.mxu0 0
    %1171 = vmatpush1.bf16.msra.mxu0 0
    %1172 = vmatprep.mubr.bf16.mxu0 0
    %1173 = vmatmul.mubr.bf16.gmra.mrb[0].mxu0 %v1139
    %v1174 = vpop.f32.mrb[0].mxu0
    %v1175 = vadd.f32 %v797, %v1174
    %v1176 = vpop.f32.mrb[0].mxu0
    %v1177 = vadd.f32 %v801, %v1176
    %v1178 = vpop.f32.mrb[0].mxu0
    %v1179 = vpop.f32.mrb[0].mxu0
    %1180 = vdwg.mxu0
    %v1181 = vmax.f32 %v1175, %v1177
    %1182 = vmax.xlane.f32.xlu0 %v1181
    %v1183 = vpop.xlane.xlu0 %1182
    %v1184 = vsub.f32 %v1175, %v1183
    %v1185 = vsub.f32 %v1177, %v1183
    %v1186 = vmul.f32 %v1184, 1.442695
    %v1187 = vpow.pop %v1186
    %v1188 = vmul.f32 %v1185, 1.442695
    %v1189 = vpow.pop %v1188
    %v1190 = vadd.f32 %v1187, %v1189
    %1191 = vadd.xlane.f32.xlu0 %v1190
    %v1192 = vpop.xlane.xlu0 %1191
    %v1193 = vlog2.pop %v1192
    %v1194 = vmul.f32 %v1193, 0.6931472
    %v1195 = vsub.f32 %v1184, %v1194
    %v1196 = vsub.f32 %v1185, %v1194
    %s1197 = scalar_lea.vmem [#allocation9], 16
    %1198 = vst [vmem:[%s1197] sm:$0xff] %v1195
    %1199 = vst [vmem:[%s1197 + $0x8] sm:$0xff] %v1196
    %s1200 = scalar_lea.vmem %s0, 16
    %v1201 = vld [vmem:[%s1200] sm:$0xff]
    %1202 = vset.pattern.permute.xlu0 0
    %1203 = vperm.xlu0 %1202, %v1201
    %v1204 = vpop.permute.xlu0 %1203
    %vm1205 = vcmp.eq.s32.totalorder %v79, %v1204
    %vm1206 = vcmp.eq.s32.totalorder %v80, %v1204
    %v1207 = vsel %vm1205, 1, 0
    %v1208 = vsel %vm1206, 1, 0
    %v1209 = vcvt.s32.f32 %v1207
    %v1210 = vcvt.s32.f32 %v1208
    %v1211 = vpack.c.bf16 %v1209, %v1209
    %v1212 = vpack.c.bf16 %v1210, %v1210
    %1213 = vmatprep.subr.bf16.mxu0 %v369
    %1214 = vmatpush1.bf16.msra.mxu0 %v368
    %1215 = vmatprep.subr.bf16.mxu0 %v372
    %1216 = vmatpush1.bf16.msra.mxu0 %v371
    %1217 = vmatprep.subr.bf16.mxu0 %v375
    %1218 = vmatpush1.bf16.msra.mxu0 %v374
    %1219 = vmatprep.subr.bf16.mxu0 %v378
    %1220 = vmatpush1.bf16.msra.mxu0 %v377
    %1221 = vmatprep.subr.bf16.mxu0 %v381
    %1222 = vmatpush1.bf16.msra.mxu0 %v380
    %1223 = vmatprep.subr.bf16.mxu0 %v384
    %1224 = vmatpush1.bf16.msra.mxu0 %v383
    %1225 = vmatprep.subr.bf16.mxu0 %v387
    %1226 = vmatpush1.bf16.msra.mxu0 %v386
    %1227 = vmatprep.subr.bf16.mxu0 %v390
    %1228 = vmatpush1.bf16.msra.mxu0 %v389
    %1229 = vmatprep.subr.bf16.mxu0 %v393
    %1230 = vmatpush1.bf16.msra.mxu0 %v392
    %1231 = vmatprep.subr.bf16.mxu0 %v396
    %1232 = vmatpush1.bf16.msra.mxu0 %v395
    %1233 = vmatprep.subr.bf16.mxu0 %v399
    %1234 = vmatpush1.bf16.msra.mxu0 %v398
    %1235 = vmatprep.subr.bf16.mxu0 %v402
    %1236 = vmatpush1.bf16.msra.mxu0 %v401
    %1237 = vmatprep.subr.bf16.mxu0 %v405
    %1238 = vmatpush1.bf16.msra.mxu0 %v404
    %1239 = vmatprep.subr.bf16.mxu0 %v408
    %1240 = vmatpush1.bf16.msra.mxu0 %v407
    %1241 = vmatprep.subr.bf16.mxu0 %v411
    %1242 = vmatpush1.bf16.msra.mxu0 %v410
    %1243 = vmatprep.subr.bf16.mxu0 %v414
    %1244 = vmatpush1.bf16.msra.mxu0 %v413
    %1245 = vmatprep.mubr.bf16.mxu0 %v1212
    %1246 = vmatmul.mubr.bf16.gmra.mrb[0].mxu0 %v1211
    %v1247 = vpop.f32.mrb[0].mxu0
    %v1248 = vadd.f32 0.0, %v1247
    %v1249 = vpop.f32.mrb[0].mxu0
    %v1250 = vadd.f32 0.0, %v1249
    %v1251 = vpop.f32.mrb[0].mxu0
    %v1252 = vpop.f32.mrb[0].mxu0
    %1253 = vdwg.mxu0
    %1254 = vmatprep.subr.bf16.mxu0 0
    %1255 = vmatpush1.bf16.msra.mxu0 %v370
    %1256 = vmatprep.subr.bf16.mxu0 0
    %1257 = vmatpush1.bf16.msra.mxu0 %v373
    %1258 = vmatprep.subr.bf16.mxu0 0
    %1259 = vmatpush1.bf16.msra.mxu0 %v376
    %1260 = vmatprep.subr.bf16.mxu0 0
    %1261 = vmatpush1.bf16.msra.mxu0 %v379
    %1262 = vmatprep.subr.bf16.mxu0 0
    %1263 = vmatpush1.bf16.msra.mxu0 %v382
    %1264 = vmatprep.subr.bf16.mxu0 0
    %1265 = vmatpush1.bf16.msra.mxu0 %v385
    %1266 = vmatprep.subr.bf16.mxu0 0
    %1267 = vmatpush1.bf16.msra.mxu0 %v388
    %1268 = vmatprep.subr.bf16.mxu0 0
    %1269 = vmatpush1.bf16.msra.mxu0 %v391
    %1270 = vmatprep.subr.bf16.mxu0 0
    %1271 = vmatpush1.bf16.msra.mxu0 %v394
    %1272 = vmatprep.subr.bf16.mxu0 0
    %1273 = vmatpush1.bf16.msra.mxu0 %v397
    %1274 = vmatprep.subr.bf16.mxu0 0
    %1275 = vmatpush1.bf16.msra.mxu0 %v400
    %1276 = vmatprep.subr.bf16.mxu0 0
    %1277 = vmatpush1.bf16.msra.mxu0 %v403
    %1278 = vmatprep.subr.bf16.mxu0 0
    %1279 = vmatpush1.bf16.msra.mxu0 %v406
    %1280 = vmatprep.subr.bf16.mxu0 0
    %1281 = vmatpush1.bf16.msra.mxu0 %v409
    %1282 = vmatprep.subr.bf16.mxu0 0
    %1283 = vmatpush1.bf16.msra.mxu0 %v412
    %1284 = vmatprep.subr.bf16.mxu0 0
    %1285 = vmatpush1.bf16.msra.mxu0 %v415
    %1286 = vmatprep.mubr.bf16.mxu0 %v1212
    %1287 = vmatmul.mubr.bf16.gmra.mrb[0].mxu0 %v1211
    %v1288 = vpop.f32.mrb[0].mxu0
    %v1289 = vadd.f32 0.0, %v1288
    %v1290 = vpop.f32.mrb[0].mxu0
    %v1291 = vpop.f32.mrb[0].mxu0
    %v1292 = vpop.f32.mrb[0].mxu0
    %1293 = vdwg.mxu0
    %1294 = vmatprep.subr.bf16.mxu0 %v643
    %1295 = vmatpush1.bf16.msra.mxu0 %v642
    %1296 = vmatprep.subr.bf16.mxu0 %v646
    %1297 = vmatpush1.bf16.msra.mxu0 %v645
    %1298 = vmatprep.subr.bf16.mxu0 %v649
    %1299 = vmatpush1.bf16.msra.mxu0 %v648
    %1300 = vmatprep.subr.bf16.mxu0 %v652
    %1301 = vmatpush1.bf16.msra.mxu0 %v651
    %1302 = vmatprep.subr.bf16.mxu0 %v655
    %1303 = vmatpush1.bf16.msra.mxu0 %v654
    %1304 = vmatprep.subr.bf16.mxu0 %v658
    %1305 = vmatpush1.bf16.msra.mxu0 %v657
    %1306 = vmatprep.subr.bf16.mxu0 %v661
    %1307 = vmatpush1.bf16.msra.mxu0 %v660
    %1308 = vmatprep.subr.bf16.mxu0 %v664
    %1309 = vmatpush1.bf16.msra.mxu0 %v663
    %1310 = vmatprep.subr.bf16.mxu0 0
    %1311 = vmatpush1.bf16.msra.mxu0 0
    %1312 = vmatprep.subr.bf16.mxu0 0
    %1313 = vmatpush1.bf16.msra.mxu0 0
    %1314 = vmatprep.subr.bf16.mxu0 0
    %1315 = vmatpush1.bf16.msra.mxu0 0
    %1316 = vmatprep.subr.bf16.mxu0 0
    %1317 = vmatpush1.bf16.msra.mxu0 0
    %1318 = vmatprep.subr.bf16.mxu0 0
    %1319 = vmatpush1.bf16.msra.mxu0 0
    %1320 = vmatprep.subr.bf16.mxu0 0
    %1321 = vmatpush1.bf16.msra.mxu0 0
    %1322 = vmatprep.subr.bf16.mxu0 0
    %1323 = vmatpush1.bf16.msra.mxu0 0
    %1324 = vmatprep.subr.bf16.mxu0 0
    %1325 = vmatpush1.bf16.msra.mxu0 0
    %1326 = vmatprep.mubr.bf16.mxu0 0
    %1327 = vmatmul.mubr.bf16.gmra.mrb[0].mxu0 %v1139
    %v1328 = vpop.f32.mrb[0].mxu0
    %v1329 = vadd.f32 %v550, %v1328
    %v1330 = vpop.f32.mrb[0].mxu0
    %v1331 = vadd.f32 %v554, %v1330
    %v1332 = vpop.f32.mrb[0].mxu0
    %v1333 = vpop.f32.mrb[0].mxu0
    %1334 = vdwg.mxu0
    %1335 = vmatprep.subr.bf16.mxu0 0
    %1336 = vmatpush1.bf16.msra.mxu0 %v644
    %1337 = vmatprep.subr.bf16.mxu0 0
    %1338 = vmatpush1.bf16.msra.mxu0 %v647
    %1339 = vmatprep.subr.bf16.mxu0 0
    %1340 = vmatpush1.bf16.msra.mxu0 %v650
    %1341 = vmatprep.subr.bf16.mxu0 0
    %1342 = vmatpush1.bf16.msra.mxu0 %v653
    %1343 = vmatprep.subr.bf16.mxu0 0
    %1344 = vmatpush1.bf16.msra.mxu0 %v656
    %1345 = vmatprep.subr.bf16.mxu0 0
    %1346 = vmatpush1.bf16.msra.mxu0 %v659
    %1347 = vmatprep.subr.bf16.mxu0 0
    %1348 = vmatpush1.bf16.msra.mxu0 %v662
    %1349 = vmatprep.subr.bf16.mxu0 0
    %1350 = vmatpush1.bf16.msra.mxu0 %v665
    %1351 = vmatprep.subr.bf16.mxu0 0
    %1352 = vmatpush1.bf16.msra.mxu0 0
    %1353 = vmatprep.subr.bf16.mxu0 0
    %1354 = vmatpush1.bf16.msra.mxu0 0
    %1355 = vmatprep.subr.bf16.mxu0 0
    %1356 = vmatpush1.bf16.msra.mxu0 0
    %1357 = vmatprep.subr.bf16.mxu0 0
    %1358 = vmatpush1.bf16.msra.mxu0 0
    %1359 = vmatprep.subr.bf16.mxu0 0
    %1360 = vmatpush1.bf16.msra.mxu0 0
    %1361 = vmatprep.subr.bf16.mxu0 0
    %1362 = vmatpush1.bf16.msra.mxu0 0
    %1363 = vmatprep.subr.bf16.mxu0 0
    %1364 = vmatpush1.bf16.msra.mxu0 0
    %1365 = vmatprep.subr.bf16.mxu0 0
    %1366 = vmatpush1.bf16.msra.mxu0 0
    %1367 = vmatprep.mubr.bf16.mxu0 0
    %1368 = vmatmul.mubr.bf16.gmra.mrb[0].mxu0 %v1139
    %v1369 = vpop.f32.mrb[0].mxu0
    %v1370 = vadd.f32 %v558, %v1369
    %v1371 = vpop.f32.mrb[0].mxu0
    %v1372 = vpop.f32.mrb[0].mxu0
    %v1373 = vpop.f32.mrb[0].mxu0
    %1374 = vdwg.mxu0
    %v1375 = vadd.f32 %v1248, %v1329
    %v1376 = vxor.u32 %v1375, 2147483648
    %v1377 = vmul.f32 %v1376, 1.442695
    %v1378 = vpow.pop %v1377
    %v1379 = vadd.f32 %v1378, 1.0
    %v1380 = vrcp.pop %v1379
    %v1381 = vmul.f32 1.0, %v1380
    %v1382 = vadd.f32 %v1250, %v1331
    %v1383 = vxor.u32 %v1382, 2147483648
    %v1384 = vmul.f32 %v1383, 1.442695
    %v1385 = vpow.pop %v1384
    %v1386 = vadd.f32 %v1385, 1.0
    %v1387 = vrcp.pop %v1386
    %v1388 = vmul.f32 1.0, %v1387
    %v1389 = vmul.f32 %v1381, %v1370
    %v1390 = vadd.f32 %v1289, %v1389
    %v1391 = vtanh.pop %v1390
    %v1392 = vsub.f32 1.0, %v1388
    %v1393 = vmul.f32 %v1392, %v1391
    %v1394 = vmul.f32 %v1388, %v1138
    %v1395 = vadd.f32 %v1393, %v1394
    %v1396 = vpack.c.bf16 %v1395, %v1395
    %1397 = vmatprep.subr.bf16.mxu0 %v853
    %1398 = vmatpush1.bf16.msra.mxu0 %v852
    %1399 = vmatprep.subr.bf16.mxu0 %v855
    %1400 = vmatpush1.bf16.msra.mxu0 %v854
    %1401 = vmatprep.subr.bf16.mxu0 %v857
    %1402 = vmatpush1.bf16.msra.mxu0 %v856
    %1403 = vmatprep.subr.bf16.mxu0 %v859
    %1404 = vmatpush1.bf16.msra.mxu0 %v858
    %1405 = vmatprep.subr.bf16.mxu0 %v861
    %1406 = vmatpush1.bf16.msra.mxu0 %v860
    %1407 = vmatprep.subr.bf16.mxu0 %v863
    %1408 = vmatpush1.bf16.msra.mxu0 %v862
    %1409 = vmatprep.subr.bf16.mxu0 %v865
    %1410 = vmatpush1.bf16.msra.mxu0 %v864
    %1411 = vmatprep.subr.bf16.mxu0 %v867
    %1412 = vmatpush1.bf16.msra.mxu0 %v866
    %1413 = vmatprep.subr.bf16.mxu0 0
    %1414 = vmatpush1.bf16.msra.mxu0 0
    %1415 = vmatprep.subr.bf16.mxu0 0
    %1416 = vmatpush1.bf16.msra.mxu0 0
    %1417 = vmatprep.subr.bf16.mxu0 0
    %1418 = vmatpush1.bf16.msra.mxu0 0
    %1419 = vmatprep.subr.bf16.mxu0 0
    %1420 = vmatpush1.bf16.msra.mxu0 0
    %1421 = vmatprep.subr.bf16.mxu0 0
    %1422 = vmatpush1.bf16.msra.mxu0 0
    %1423 = vmatprep.subr.bf16.mxu0 0
    %1424 = vmatpush1.bf16.msra.mxu0 0
    %1425 = vmatprep.subr.bf16.mxu0 0
    %1426 = vmatpush1.bf16.msra.mxu0 0
    %1427 = vmatprep.subr.bf16.mxu0 0
    %1428 = vmatpush1.bf16.msra.mxu0 0
    %1429 = vmatprep.mubr.bf16.mxu0 0
    %1430 = vmatmul.mubr.bf16.gmra.mrb[0].mxu0 %v1396
    %v1431 = vpop.f32.mrb[0].mxu0
    %v1432 = vadd.f32 %v797, %v1431
    %v1433 = vpop.f32.mrb[0].mxu0
    %v1434 = vadd.f32 %v801, %v1433
    %v1435 = vpop.f32.mrb[0].mxu0
    %v1436 = vpop.f32.mrb[0].mxu0
    %1437 = vdwg.mxu0
    %v1438 = vmax.f32 %v1432, %v1434
    %1439 = vmax.xlane.f32.xlu0 %v1438
    %v1440 = vpop.xlane.xlu0 %1439
    %v1441 = vsub.f32 %v1432, %v1440
    %v1442 = vsub.f32 %v1434, %v1440
    %v1443 = vmul.f32 %v1441, 1.442695
    %v1444 = vpow.pop %v1443
    %v1445 = vmul.f32 %v1442, 1.442695
    %v1446 = vpow.pop %v1445
    %v1447 = vadd.f32 %v1444, %v1446
    %1448 = vadd.xlane.f32.xlu0 %v1447
    %v1449 = vpop.xlane.xlu0 %1448
    %v1450 = vlog2.pop %v1449
    %v1451 = vmul.f32 %v1450, 0.6931472
    %v1452 = vsub.f32 %v1441, %v1451
    %v1453 = vsub.f32 %v1442, %v1451
    %s1454 = scalar_lea.vmem [#allocation9], 32
    %1455 = vst [vmem:[%s1454] sm:$0xff] %v1452
    %1456 = vst [vmem:[%s1454 + $0x8] sm:$0xff] %v1453
    %s1457 = scalar_lea.vmem %s0, 24
    %v1458 = vld [vmem:[%s1457] sm:$0xff]
    %1459 = vset.pattern.permute.xlu0 0
    %1460 = vperm.xlu0 %1459, %v1458
    %v1461 = vpop.permute.xlu0 %1460
    %vm1462 = vcmp.eq.s32.totalorder %v79, %v1461
    %vm1463 = vcmp.eq.s32.totalorder %v80, %v1461
    %v1464 = vsel %vm1462, 1, 0
    %v1465 = vsel %vm1463, 1, 0
    %v1466 = vcvt.s32.f32 %v1464
    %v1467 = vcvt.s32.f32 %v1465
    %v1468 = vpack.c.bf16 %v1466, %v1466
    %v1469 = vpack.c.bf16 %v1467, %v1467
    %1470 = vmatprep.subr.bf16.mxu0 %v369
    %1471 = vmatpush1.bf16.msra.mxu0 %v368
    %1472 = vmatprep.subr.bf16.mxu0 %v372
    %1473 = vmatpush1.bf16.msra.mxu0 %v371
    %1474 = vmatprep.subr.bf16.mxu0 %v375
    %1475 = vmatpush1.bf16.msra.mxu0 %v374
    %1476 = vmatprep.subr.bf16.mxu0 %v378
    %1477 = vmatpush1.bf16.msra.mxu0 %v377
    %1478 = vmatprep.subr.bf16.mxu0 %v381
    %1479 = vmatpush1.bf16.msra.mxu0 %v380
    %1480 = vmatprep.subr.bf16.mxu0 %v384
    %1481 = vmatpush1.bf16.msra.mxu0 %v383
    %1482 = vmatprep.subr.bf16.mxu0 %v387
    %1483 = vmatpush1.bf16.msra.mxu0 %v386
    %1484 = vmatprep.subr.bf16.mxu0 %v390
    %1485 = vmatpush1.bf16.msra.mxu0 %v389
    %1486 = vmatprep.subr.bf16.mxu0 %v393
    %1487 = vmatpush1.bf16.msra.mxu0 %v392
    %1488 = vmatprep.subr.bf16.mxu0 %v396
    %1489 = vmatpush1.bf16.msra.mxu0 %v395
    %1490 = vmatprep.subr.bf16.mxu0 %v399
    %1491 = vmatpush1.bf16.msra.mxu0 %v398
    %1492 = vmatprep.subr.bf16.mxu0 %v402
    %1493 = vmatpush1.bf16.msra.mxu0 %v401
    %1494 = vmatprep.subr.bf16.mxu0 %v405
    %1495 = vmatpush1.bf16.msra.mxu0 %v404
    %1496 = vmatprep.subr.bf16.mxu0 %v408
    %1497 = vmatpush1.bf16.msra.mxu0 %v407
    %1498 = vmatprep.subr.bf16.mxu0 %v411
    %1499 = vmatpush1.bf16.msra.mxu0 %v410
    %1500 = vmatprep.subr.bf16.mxu0 %v414
    %1501 = vmatpush1.bf16.msra.mxu0 %v413
    %1502 = vmatprep.mubr.bf16.mxu0 %v1469
    %1503 = vmatmul.mubr.bf16.gmra.mrb[0].mxu0 %v1468
    %v1504 = vpop.f32.mrb[0].mxu0
    %v1505 = vadd.f32 0.0, %v1504
    %v1506 = vpop.f32.mrb[0].mxu0
    %v1507 = vadd.f32 0.0, %v1506
    %v1508 = vpop.f32.mrb[0].mxu0
    %v1509 = vpop.f32.mrb[0].mxu0
    %1510 = vdwg.mxu0
    %1511 = vmatprep.subr.bf16.mxu0 0
    %1512 = vmatpush1.bf16.msra.mxu0 %v370
    %1513 = vmatprep.subr.bf16.mxu0 0
    %1514 = vmatpush1.bf16.msra.mxu0 %v373
    %1515 = vmatprep.subr.bf16.mxu0 0
    %1516 = vmatpush1.bf16.msra.mxu0 %v376
    %1517 = vmatprep.subr.bf16.mxu0 0
    %1518 = vmatpush1.bf16.msra.mxu0 %v379
    %1519 = vmatprep.subr.bf16.mxu0 0
    %1520 = vmatpush1.bf16.msra.mxu0 %v382
    %1521 = vmatprep.subr.bf16.mxu0 0
    %1522 = vmatpush1.bf16.msra.mxu0 %v385
    %1523 = vmatprep.subr.bf16.mxu0 0
    %1524 = vmatpush1.bf16.msra.mxu0 %v388
    %1525 = vmatprep.subr.bf16.mxu0 0
    %1526 = vmatpush1.bf16.msra.mxu0 %v391
    %1527 = vmatprep.subr.bf16.mxu0 0
    %1528 = vmatpush1.bf16.msra.mxu0 %v394
    %1529 = vmatprep.subr.bf16.mxu0 0
    %1530 = vmatpush1.bf16.msra.mxu0 %v397
    %1531 = vmatprep.subr.bf16.mxu0 0
    %1532 = vmatpush1.bf16.msra.mxu0 %v400
    %1533 = vmatprep.subr.bf16.mxu0 0
    %1534 = vmatpush1.bf16.msra.mxu0 %v403
    %1535 = vmatprep.subr.bf16.mxu0 0
    %1536 = vmatpush1.bf16.msra.mxu0 %v406
    %1537 = vmatprep.subr.bf16.mxu0 0
    %1538 = vmatpush1.bf16.msra.mxu0 %v409
    %1539 = vmatprep.subr.bf16.mxu0 0
    %1540 = vmatpush1.bf16.msra.mxu0 %v412
    %1541 = vmatprep.subr.bf16.mxu0 0
    %1542 = vmatpush1.bf16.msra.mxu0 %v415
    %1543 = vmatprep.mubr.bf16.mxu0 %v1469
    %1544 = vmatmul.mubr.bf16.gmra.mrb[0].mxu0 %v1468
    %v1545 = vpop.f32.mrb[0].mxu0
    %v1546 = vadd.f32 0.0, %v1545
    %v1547 = vpop.f32.mrb[0].mxu0
    %v1548 = vpop.f32.mrb[0].mxu0
    %v1549 = vpop.f32.mrb[0].mxu0
    %1550 = vdwg.mxu0
    %1551 = vmatprep.subr.bf16.mxu0 %v643
    %1552 = vmatpush1.bf16.msra.mxu0 %v642
    %1553 = vmatprep.subr.bf16.mxu0 %v646
    %1554 = vmatpush1.bf16.msra.mxu0 %v645
    %1555 = vmatprep.subr.bf16.mxu0 %v649
    %1556 = vmatpush1.bf16.msra.mxu0 %v648
    %1557 = vmatprep.subr.bf16.mxu0 %v652
    %1558 = vmatpush1.bf16.msra.mxu0 %v651
    %1559 = vmatprep.subr.bf16.mxu0 %v655
    %1560 = vmatpush1.bf16.msra.mxu0 %v654
    %1561 = vmatprep.subr.bf16.mxu0 %v658
    %1562 = vmatpush1.bf16.msra.mxu0 %v657
    %1563 = vmatprep.subr.bf16.mxu0 %v661
    %1564 = vmatpush1.bf16.msra.mxu0 %v660
    %1565 = vmatprep.subr.bf16.mxu0 %v664
    %1566 = vmatpush1.bf16.msra.mxu0 %v663
    %1567 = vmatprep.subr.bf16.mxu0 0
    %1568 = vmatpush1.bf16.msra.mxu0 0
    %1569 = vmatprep.subr.bf16.mxu0 0
    %1570 = vmatpush1.bf16.msra.mxu0 0
    %1571 = vmatprep.subr.bf16.mxu0 0
    %1572 = vmatpush1.bf16.msra.mxu0 0
    %1573 = vmatprep.subr.bf16.mxu0 0
    %1574 = vmatpush1.bf16.msra.mxu0 0
    %1575 = vmatprep.subr.bf16.mxu0 0
    %1576 = vmatpush1.bf16.msra.mxu0 0
    %1577 = vmatprep.subr.bf16.mxu0 0
    %1578 = vmatpush1.bf16.msra.mxu0 0
    %1579 = vmatprep.subr.bf16.mxu0 0
    %1580 = vmatpush1.bf16.msra.mxu0 0
    %1581 = vmatprep.subr.bf16.mxu0 0
    %1582 = vmatpush1.bf16.msra.mxu0 0
    %1583 = vmatprep.mubr.bf16.mxu0 0
    %1584 = vmatmul.mubr.bf16.gmra.mrb[0].mxu0 %v1396
    %v1585 = vpop.f32.mrb[0].mxu0
    %v1586 = vadd.f32 %v550, %v1585
    %v1587 = vpop.f32.mrb[0].mxu0
    %v1588 = vadd.f32 %v554, %v1587
    %v1589 = vpop.f32.mrb[0].mxu0
    %v1590 = vpop.f32.mrb[0].mxu0
    %1591 = vdwg.mxu0
    %1592 = vmatprep.subr.bf16.mxu0 0
    %1593 = vmatpush1.bf16.msra.mxu0 %v644
    %1594 = vmatprep.subr.bf16.mxu0 0
    %1595 = vmatpush1.bf16.msra.mxu0 %v647
    %1596 = vmatprep.subr.bf16.mxu0 0
    %1597 = vmatpush1.bf16.msra.mxu0 %v650
    %1598 = vmatprep.subr.bf16.mxu0 0
    %1599 = vmatpush1.bf16.msra.mxu0 %v653
    %1600 = vmatprep.subr.bf16.mxu0 0
    %1601 = vmatpush1.bf16.msra.mxu0 %v656
    %1602 = vmatprep.subr.bf16.mxu0 0
    %1603 = vmatpush1.bf16.msra.mxu0 %v659
    %1604 = vmatprep.subr.bf16.mxu0 0
    %1605 = vmatpush1.bf16.msra.mxu0 %v662
    %1606 = vmatprep.subr.bf16.mxu0 0
    %1607 = vmatpush1.bf16.msra.mxu0 %v665
    %1608 = vmatprep.subr.bf16.mxu0 0
    %1609 = vmatpush1.bf16.msra.mxu0 0
    %1610 = vmatprep.subr.bf16.mxu0 0
    %1611 = vmatpush1.bf16.msra.mxu0 0
    %1612 = vmatprep.subr.bf16.mxu0 0
    %1613 = vmatpush1.bf16.msra.mxu0 0
    %1614 = vmatprep.subr.bf16.mxu0 0
    %1615 = vmatpush1.bf16.msra.mxu0 0
    %1616 = vmatprep.subr.bf16.mxu0 0
    %1617 = vmatpush1.bf16.msra.mxu0 0
    %1618 = vmatprep.subr.bf16.mxu0 0
    %1619 = vmatpush1.bf16.msra.mxu0 0
    %1620 = vmatprep.subr.bf16.mxu0 0
    %1621 = vmatpush1.bf16.msra.mxu0 0
    %1622 = vmatprep.subr.bf16.mxu0 0
    %1623 = vmatpush1.bf16.msra.mxu0 0
    %1624 = vmatprep.mubr.bf16.mxu0 0
    %1625 = vmatmul.mubr.bf16.gmra.mrb[0].mxu0 %v1396
    %v1626 = vpop.f32.mrb[0].mxu0
    %v1627 = vadd.f32 %v558, %v1626
    %v1628 = vpop.f32.mrb[0].mxu0
    %v1629 = vpop.f32.mrb[0].mxu0
    %v1630 = vpop.f32.mrb[0].mxu0
    %1631 = vdwg.mxu0
    %v1632 = vadd.f32 %v1505, %v1586
    %v1633 = vxor.u32 %v1632, 2147483648
    %v1634 = vmul.f32 %v1633, 1.442695
    %v1635 = vpow.pop %v1634
    %v1636 = vadd.f32 %v1635, 1.0
    %v1637 = vrcp.pop %v1636
    %v1638 = vmul.f32 1.0, %v1637
    %v1639 = vadd.f32 %v1507, %v1588
    %v1640 = vxor.u32 %v1639, 2147483648
    %v1641 = vmul.f32 %v1640, 1.442695
    %v1642 = vpow.pop %v1641
    %v1643 = vadd.f32 %v1642, 1.0
    %v1644 = vrcp.pop %v1643
    %v1645 = vmul.f32 1.0, %v1644
    %v1646 = vmul.f32 %v1638, %v1627
    %v1647 = vadd.f32 %v1546, %v1646
    %v1648 = vtanh.pop %v1647
    %v1649 = vsub.f32 1.0, %v1645
    %v1650 = vmul.f32 %v1649, %v1648
    %v1651 = vmul.f32 %v1645, %v1395
    %v1652 = vadd.f32 %v1650, %v1651
    %v1653 = vpack.c.bf16 %v1652, %v1652
    %1654 = vmatprep.subr.bf16.mxu0 %v853
    %1655 = vmatpush1.bf16.msra.mxu0 %v852
    %1656 = vmatprep.subr.bf16.mxu0 %v855
    %1657 = vmatpush1.bf16.msra.mxu0 %v854
    %1658 = vmatprep.subr.bf16.mxu0 %v857
    %1659 = vmatpush1.bf16.msra.mxu0 %v856
    %1660 = vmatprep.subr.bf16.mxu0 %v859
    %1661 = vmatpush1.bf16.msra.mxu0 %v858
    %1662 = vmatprep.subr.bf16.mxu0 %v861
    %1663 = vmatpush1.bf16.msra.mxu0 %v860
    %1664 = vmatprep.subr.bf16.mxu0 %v863
    %1665 = vmatpush1.bf16.msra.mxu0 %v862
    %1666 = vmatprep.subr.bf16.mxu0 %v865
    %1667 = vmatpush1.bf16.msra.mxu0 %v864
    %1668 = vmatprep.subr.bf16.mxu0 %v867
    %1669 = vmatpush1.bf16.msra.mxu0 %v866
    %1670 = vmatprep.subr.bf16.mxu0 0
    %1671 = vmatpush1.bf16.msra.mxu0 0
    %1672 = vmatprep.subr.bf16.mxu0 0
    %1673 = vmatpush1.bf16.msra.mxu0 0
    %1674 = vmatprep.subr.bf16.mxu0 0
    %1675 = vmatpush1.bf16.msra.mxu0 0
    %1676 = vmatprep.subr.bf16.mxu0 0
    %1677 = vmatpush1.bf16.msra.mxu0 0
    %1678 = vmatprep.subr.bf16.mxu0 0
    %1679 = vmatpush1.bf16.msra.mxu0 0
    %1680 = vmatprep.subr.bf16.mxu0 0
    %1681 = vmatpush1.bf16.msra.mxu0 0
    %1682 = vmatprep.subr.bf16.mxu0 0
    %1683 = vmatpush1.bf16.msra.mxu0 0
    %1684 = vmatprep.subr.bf16.mxu0 0
    %1685 = vmatpush1.bf16.msra.mxu0 0
    %1686 = vmatprep.mubr.bf16.mxu0 0
    %1687 = vmatmul.mubr.bf16.gmra.mrb[0].mxu0 %v1653
    %v1688 = vpop.f32.mrb[0].mxu0
    %v1689 = vadd.f32 %v797, %v1688
    %v1690 = vpop.f32.mrb[0].mxu0
    %v1691 = vadd.f32 %v801, %v1690
    %v1692 = vpop.f32.mrb[0].mxu0
    %v1693 = vpop.f32.mrb[0].mxu0
    %1694 = vdwg.mxu0
    %v1695 = vmax.f32 %v1689, %v1691
    %1696 = vmax.xlane.f32.xlu0 %v1695
    %v1697 = vpop.xlane.xlu0 %1696
    %v1698 = vsub.f32 %v1689, %v1697
    %v1699 = vsub.f32 %v1691, %v1697
    %v1700 = vmul.f32 %v1698, 1.442695
    %v1701 = vpow.pop %v1700
    %v1702 = vmul.f32 %v1699, 1.442695
    %v1703 = vpow.pop %v1702
    %v1704 = vadd.f32 %v1701, %v1703
    %1705 = vadd.xlane.f32.xlu0 %v1704
    %v1706 = vpop.xlane.xlu0 %1705
    %v1707 = vlog2.pop %v1706
    %v1708 = vmul.f32 %v1707, 0.6931472
    %v1709 = vsub.f32 %v1698, %v1708
    %v1710 = vsub.f32 %v1699, %v1708
    %s1711 = scalar_lea.vmem [#allocation9], 48
    %1712 = vst [vmem:[%s1711] sm:$0xff] %v1709
    %1713 = vst [vmem:[%s1711 + $0x8] sm:$0xff] %v1710
    %s1714 = scalar_lea.vmem %s0, 32
    %v1715 = vld [vmem:[%s1714] sm:$0xff]
    %1716 = vset.pattern.permute.xlu0 0
    %1717 = vperm.xlu0 %1716, %v1715
    %v1718 = vpop.permute.xlu0 %1717
    %vm1719 = vcmp.eq.s32.totalorder %v79, %v1718
    %vm1720 = vcmp.eq.s32.totalorder %v80, %v1718
    %v1721 = vsel %vm1719, 1, 0
    %v1722 = vsel %vm1720, 1, 0
    %v1723 = vcvt.s32.f32 %v1721
    %v1724 = vcvt.s32.f32 %v1722
    %v1725 = vpack.c.bf16 %v1723, %v1723
    %v1726 = vpack.c.bf16 %v1724, %v1724
    %1727 = vmatprep.subr.bf16.mxu0 %v369
    %1728 = vmatpush1.bf16.msra.mxu0 %v368
    %1729 = vmatprep.subr.bf16.mxu0 %v372
    %1730 = vmatpush1.bf16.msra.mxu0 %v371
    %1731 = vmatprep.subr.bf16.mxu0 %v375
    %1732 = vmatpush1.bf16.msra.mxu0 %v374
    %1733 = vmatprep.subr.bf16.mxu0 %v378
    %1734 = vmatpush1.bf16.msra.mxu0 %v377
    %1735 = vmatprep.subr.bf16.mxu0 %v381
    %1736 = vmatpush1.bf16.msra.mxu0 %v380
    %1737 = vmatprep.subr.bf16.mxu0 %v384
    %1738 = vmatpush1.bf16.msra.mxu0 %v383
    %1739 = vmatprep.subr.bf16.mxu0 %v387
    %1740 = vmatpush1.bf16.msra.mxu0 %v386
    %1741 = vmatprep.subr.bf16.mxu0 %v390
    %1742 = vmatpush1.bf16.msra.mxu0 %v389
    %1743 = vmatprep.subr.bf16.mxu0 %v393
    %1744 = vmatpush1.bf16.msra.mxu0 %v392
    %1745 = vmatprep.subr.bf16.mxu0 %v396
    %1746 = vmatpush1.bf16.msra.mxu0 %v395
    %1747 = vmatprep.subr.bf16.mxu0 %v399
    %1748 = vmatpush1.bf16.msra.mxu0 %v398
    %1749 = vmatprep.subr.bf16.mxu0 %v402
    %1750 = vmatpush1.bf16.msra.mxu0 %v401
    %1751 = vmatprep.subr.bf16.mxu0 %v405
    %1752 = vmatpush1.bf16.msra.mxu0 %v404
    %1753 = vmatprep.subr.bf16.mxu0 %v408
    %1754 = vmatpush1.bf16.msra.mxu0 %v407
    %1755 = vmatprep.subr.bf16.mxu0 %v411
    %1756 = vmatpush1.bf16.msra.mxu0 %v410
    %1757 = vmatprep.subr.bf16.mxu0 %v414
    %1758 = vmatpush1.bf16.msra.mxu0 %v413
    %1759 = vmatprep.mubr.bf16.mxu0 %v1726
    %1760 = vmatmul.mubr.bf16.gmra.mrb[0].mxu0 %v1725
    %v1761 = vpop.f32.mrb[0].mxu0
    %v1762 = vadd.f32 0.0, %v1761
    %v1763 = vpop.f32.mrb[0].mxu0
    %v1764 = vadd.f32 0.0, %v1763
    %v1765 = vpop.f32.mrb[0].mxu0
    %v1766 = vpop.f32.mrb[0].mxu0
    %1767 = vdwg.mxu0
    %1768 = vmatprep.subr.bf16.mxu0 0
    %1769 = vmatpush1.bf16.msra.mxu0 %v370
    %1770 = vmatprep.subr.bf16.mxu0 0
    %1771 = vmatpush1.bf16.msra.mxu0 %v373
    %1772 = vmatprep.subr.bf16.mxu0 0
    %1773 = vmatpush1.bf16.msra.mxu0 %v376
    %1774 = vmatprep.subr.bf16.mxu0 0
    %1775 = vmatpush1.bf16.msra.mxu0 %v379
    %1776 = vmatprep.subr.bf16.mxu0 0
    %1777 = vmatpush1.bf16.msra.mxu0 %v382
    %1778 = vmatprep.subr.bf16.mxu0 0
    %1779 = vmatpush1.bf16.msra.mxu0 %v385
    %1780 = vmatprep.subr.bf16.mxu0 0
    %1781 = vmatpush1.bf16.msra.mxu0 %v388
    %1782 = vmatprep.subr.bf16.mxu0 0
    %1783 = vmatpush1.bf16.msra.mxu0 %v391
    %1784 = vmatprep.subr.bf16.mxu0 0
    %1785 = vmatpush1.bf16.msra.mxu0 %v394
    %1786 = vmatprep.subr.bf16.mxu0 0
    %1787 = vmatpush1.bf16.msra.mxu0 %v397
    %1788 = vmatprep.subr.bf16.mxu0 0
    %1789 = vmatpush1.bf16.msra.mxu0 %v400
    %1790 = vmatprep.subr.bf16.mxu0 0
    %1791 = vmatpush1.bf16.msra.mxu0 %v403
    %1792 = vmatprep.subr.bf16.mxu0 0
    %1793 = vmatpush1.bf16.msra.mxu0 %v406
    %1794 = vmatprep.subr.bf16.mxu0 0
    %1795 = vmatpush1.bf16.msra.mxu0 %v409
    %1796 = vmatprep.subr.bf16.mxu0 0
    %1797 = vmatpush1.bf16.msra.mxu0 %v412
    %1798 = vmatprep.subr.bf16.mxu0 0
    %1799 = vmatpush1.bf16.msra.mxu0 %v415
    %1800 = vmatprep.mubr.bf16.mxu0 %v1726
    %1801 = vmatmul.mubr.bf16.gmra.mrb[0].mxu0 %v1725
    %v1802 = vpop.f32.mrb[0].mxu0
    %v1803 = vadd.f32 0.0, %v1802
    %v1804 = vpop.f32.mrb[0].mxu0
    %v1805 = vpop.f32.mrb[0].mxu0
    %v1806 = vpop.f32.mrb[0].mxu0
    %1807 = vdwg.mxu0
    %1808 = vmatprep.subr.bf16.mxu0 %v643
    %1809 = vmatpush1.bf16.msra.mxu0 %v642
    %1810 = vmatprep.subr.bf16.mxu0 %v646
    %1811 = vmatpush1.bf16.msra.mxu0 %v645
    %1812 = vmatprep.subr.bf16.mxu0 %v649
    %1813 = vmatpush1.bf16.msra.mxu0 %v648
    %1814 = vmatprep.subr.bf16.mxu0 %v652
    %1815 = vmatpush1.bf16.msra.mxu0 %v651
    %1816 = vmatprep.subr.bf16.mxu0 %v655
    %1817 = vmatpush1.bf16.msra.mxu0 %v654
    %1818 = vmatprep.subr.bf16.mxu0 %v658
    %1819 = vmatpush1.bf16.msra.mxu0 %v657
    %1820 = vmatprep.subr.bf16.mxu0 %v661
    %1821 = vmatpush1.bf16.msra.mxu0 %v660
    %1822 = vmatprep.subr.bf16.mxu0 %v664
    %1823 = vmatpush1.bf16.msra.mxu0 %v663
    %1824 = vmatprep.subr.bf16.mxu0 0
    %1825 = vmatpush1.bf16.msra.mxu0 0
    %1826 = vmatprep.subr.bf16.mxu0 0
    %1827 = vmatpush1.bf16.msra.mxu0 0
    %1828 = vmatprep.subr.bf16.mxu0 0
    %1829 = vmatpush1.bf16.msra.mxu0 0
    %1830 = vmatprep.subr.bf16.mxu0 0
    %1831 = vmatpush1.bf16.msra.mxu0 0
    %1832 = vmatprep.subr.bf16.mxu0 0
    %1833 = vmatpush1.bf16.msra.mxu0 0
    %1834 = vmatprep.subr.bf16.mxu0 0
    %1835 = vmatpush1.bf16.msra.mxu0 0
    %1836 = vmatprep.subr.bf16.mxu0 0
    %1837 = vmatpush1.bf16.msra.mxu0 0
    %1838 = vmatprep.subr.bf16.mxu0 0
    %1839 = vmatpush1.bf16.msra.mxu0 0
    %1840 = vmatprep.mubr.bf16.mxu0 0
    %1841 = vmatmul.mubr.bf16.gmra.mrb[0].mxu0 %v1653
    %v1842 = vpop.f32.mrb[0].mxu0
    %v1843 = vadd.f32 %v550, %v1842
    %v1844 = vpop.f32.mrb[0].mxu0
    %v1845 = vadd.f32 %v554, %v1844
    %v1846 = vpop.f32.mrb[0].mxu0
    %v1847 = vpop.f32.mrb[0].mxu0
    %1848 = vdwg.mxu0
    %1849 = vmatprep.subr.bf16.mxu0 0
    %1850 = vmatpush1.bf16.msra.mxu0 %v644
    %1851 = vmatprep.subr.bf16.mxu0 0
    %1852 = vmatpush1.bf16.msra.mxu0 %v647
    %1853 = vmatprep.subr.bf16.mxu0 0
    %1854 = vmatpush1.bf16.msra.mxu0 %v650
    %1855 = vmatprep.subr.bf16.mxu0 0
    %1856 = vmatpush1.bf16.msra.mxu0 %v653
    %1857 = vmatprep.subr.bf16.mxu0 0
    %1858 = vmatpush1.bf16.msra.mxu0 %v656
    %1859 = vmatprep.subr.bf16.mxu0 0
    %1860 = vmatpush1.bf16.msra.mxu0 %v659
    %1861 = vmatprep.subr.bf16.mxu0 0
    %1862 = vmatpush1.bf16.msra.mxu0 %v662
    %1863 = vmatprep.subr.bf16.mxu0 0
    %1864 = vmatpush1.bf16.msra.mxu0 %v665
    %1865 = vmatprep.subr.bf16.mxu0 0
    %1866 = vmatpush1.bf16.msra.mxu0 0
    %1867 = vmatprep.subr.bf16.mxu0 0
    %1868 = vmatpush1.bf16.msra.mxu0 0
    %1869 = vmatprep.subr.bf16.mxu0 0
    %1870 = vmatpush1.bf16.msra.mxu0 0
    %1871 = vmatprep.subr.bf16.mxu0 0
    %1872 = vmatpush1.bf16.msra.mxu0 0
    %1873 = vmatprep.subr.bf16.mxu0 0
    %1874 = vmatpush1.bf16.msra.mxu0 0
    %1875 = vmatprep.subr.bf16.mxu0 0
    %1876 = vmatpush1.bf16.msra.mxu0 0
    %1877 = vmatprep.subr.bf16.mxu0 0
    %1878 = vmatpush1.bf16.msra.mxu0 0
    %1879 = vmatprep.subr.bf16.mxu0 0
    %1880 = vmatpush1.bf16.msra.mxu0 0
    %1881 = vmatprep.mubr.bf16.mxu0 0
    %1882 = vmatmul.mubr.bf16.gmra.mrb[0].mxu0 %v1653
    %v1883 = vpop.f32.mrb[0].mxu0
    %v1884 = vadd.f32 %v558, %v1883
    %v1885 = vpop.f32.mrb[0].mxu0
    %v1886 = vpop.f32.mrb[0].mxu0
    %v1887 = vpop.f32.mrb[0].mxu0
    %1888 = vdwg.mxu0
    %v1889 = vadd.f32 %v1762, %v1843
    %v1890 = vxor.u32 %v1889, 2147483648
    %v1891 = vmul.f32 %v1890, 1.442695
    %v1892 = vpow.pop %v1891
    %v1893 = vadd.f32 %v1892, 1.0
    %v1894 = vrcp.pop %v1893
    %v1895 = vmul.f32 1.0, %v1894
    %v1896 = vadd.f32 %v1764, %v1845
    %v1897 = vxor.u32 %v1896, 2147483648
    %v1898 = vmul.f32 %v1897, 1.442695
    %v1899 = vpow.pop %v1898
    %v1900 = vadd.f32 %v1899, 1.0
    %v1901 = vrcp.pop %v1900
    %v1902 = vmul.f32 1.0, %v1901
    %v1903 = vmul.f32 %v1895, %v1884
    %v1904 = vadd.f32 %v1803, %v1903
    %v1905 = vtanh.pop %v1904
    %v1906 = vsub.f32 1.0, %v1902
    %v1907 = vmul.f32 %v1906, %v1905
    %v1908 = vmul.f32 %v1902, %v1652
    %v1909 = vadd.f32 %v1907, %v1908
    %v1910 = vpack.c.bf16 %v1909, %v1909
    %1911 = vmatprep.subr.bf16.mxu0 %v853
    %1912 = vmatpush1.bf16.msra.mxu0 %v852
    %1913 = vmatprep.subr.bf16.mxu0 %v855
    %1914 = vmatpush1.bf16.msra.mxu0 %v854
    %1915 = vmatprep.subr.bf16.mxu0 %v857
    %1916 = vmatpush1.bf16.msra.mxu0 %v856
    %1917 = vmatprep.subr.bf16.mxu0 %v859
    %1918 = vmatpush1.bf16.msra.mxu0 %v858
    %1919 = vmatprep.subr.bf16.mxu0 %v861
    %1920 = vmatpush1.bf16.msra.mxu0 %v860
    %1921 = vmatprep.subr.bf16.mxu0 %v863
    %1922 = vmatpush1.bf16.msra.mxu0 %v862
    %1923 = vmatprep.subr.bf16.mxu0 %v865
    %1924 = vmatpush1.bf16.msra.mxu0 %v864
    %1925 = vmatprep.subr.bf16.mxu0 %v867
    %1926 = vmatpush1.bf16.msra.mxu0 %v866
    %1927 = vmatprep.subr.bf16.mxu0 0
    %1928 = vmatpush1.bf16.msra.mxu0 0
    %1929 = vmatprep.subr.bf16.mxu0 0
    %1930 = vmatpush1.bf16.msra.mxu0 0
    %1931 = vmatprep.subr.bf16.mxu0 0
    %1932 = vmatpush1.bf16.msra.mxu0 0
    %1933 = vmatprep.subr.bf16.mxu0 0
    %1934 = vmatpush1.bf16.msra.mxu0 0
    %1935 = vmatprep.subr.bf16.mxu0 0
    %1936 = vmatpush1.bf16.msra.mxu0 0
    %1937 = vmatprep.subr.bf16.mxu0 0
    %1938 = vmatpush1.bf16.msra.mxu0 0
    %1939 = vmatprep.subr.bf16.mxu0 0
    %1940 = vmatpush1.bf16.msra.mxu0 0
    %1941 = vmatprep.subr.bf16.mxu0 0
    %1942 = vmatpush1.bf16.msra.mxu0 0
    %1943 = vmatprep.mubr.bf16.mxu0 0
    %1944 = vmatmul.mubr.bf16.gmra.mrb[0].mxu0 %v1910
    %v1945 = vpop.f32.mrb[0].mxu0
    %v1946 = vadd.f32 %v797, %v1945
    %v1947 = vpop.f32.mrb[0].mxu0
    %v1948 = vadd.f32 %v801, %v1947
    %v1949 = vpop.f32.mrb[0].mxu0
    %v1950 = vpop.f32.mrb[0].mxu0
    %1951 = vdwg.mxu0
    %v1952 = vmax.f32 %v1946, %v1948
    %1953 = vmax.xlane.f32.xlu0 %v1952
    %v1954 = vpop.xlane.xlu0 %1953
    %v1955 = vsub.f32 %v1946, %v1954
    %v1956 = vsub.f32 %v1948, %v1954
    %v1957 = vmul.f32 %v1955, 1.442695
    %v1958 = vpow.pop %v1957
    %v1959 = vmul.f32 %v1956, 1.442695
    %v1960 = vpow.pop %v1959
    %v1961 = vadd.f32 %v1958, %v1960
    %1962 = vadd.xlane.f32.xlu0 %v1961
    %v1963 = vpop.xlane.xlu0 %1962
    %v1964 = vlog2.pop %v1963
    %v1965 = vmul.f32 %v1964, 0.6931472
    %v1966 = vsub.f32 %v1955, %v1965
    %v1967 = vsub.f32 %v1956, %v1965
    %s1968 = scalar_lea.vmem [#allocation9], 64
    %1969 = vst [vmem:[%s1968] sm:$0xff] %v1966
    %1970 = vst [vmem:[%s1968 + $0x8] sm:$0xff] %v1967
    %s1971 = scalar_lea.vmem %s0, 40
    %v1972 = vld [vmem:[%s1971] sm:$0xff]
    %1973 = vset.pattern.permute.xlu0 0
    %1974 = vperm.xlu0 %1973, %v1972
    %v1975 = vpop.permute.xlu0 %1974
    %vm1976 = vcmp.eq.s32.totalorder %v79, %v1975
    %vm1977 = vcmp.eq.s32.totalorder %v80, %v1975
    %v1978 = vsel %vm1976, 1, 0
    %v1979 = vsel %vm1977, 1, 0
    %v1980 = vcvt.s32.f32 %v1978
    %v1981 = vcvt.s32.f32 %v1979
    %v1982 = vpack.c.bf16 %v1980, %v1980
    %v1983 = vpack.c.bf16 %v1981, %v1981
    %1984 = vmatprep.subr.bf16.mxu0 %v369
    %1985 = vmatpush1.bf16.msra.mxu0 %v368
    %1986 = vmatprep.subr.bf16.mxu0 %v372
    %1987 = vmatpush1.bf16.msra.mxu0 %v371
    %1988 = vmatprep.subr.bf16.mxu0 %v375
    %1989 = vmatpush1.bf16.msra.mxu0 %v374
    %1990 = vmatprep.subr.bf16.mxu0 %v378
    %1991 = vmatpush1.bf16.msra.mxu0 %v377
    %1992 = vmatprep.subr.bf16.mxu0 %v381
    %1993 = vmatpush1.bf16.msra.mxu0 %v380
    %1994 = vmatprep.subr.bf16.mxu0 %v384
    %1995 = vmatpush1.bf16.msra.mxu0 %v383
    %1996 = vmatprep.subr.bf16.mxu0 %v387
    %1997 = vmatpush1.bf16.msra.mxu0 %v386
    %1998 = vmatprep.subr.bf16.mxu0 %v390
    %1999 = vmatpush1.bf16.msra.mxu0 %v389
    %2000 = vmatprep.subr.bf16.mxu0 %v393
    %2001 = vmatpush1.bf16.msra.mxu0 %v392
    %2002 = vmatprep.subr.bf16.mxu0 %v396
    %2003 = vmatpush1.bf16.msra.mxu0 %v395
    %2004 = vmatprep.subr.bf16.mxu0 %v399
    %2005 = vmatpush1.bf16.msra.mxu0 %v398
    %2006 = vmatprep.subr.bf16.mxu0 %v402
    %2007 = vmatpush1.bf16.msra.mxu0 %v401
    %2008 = vmatprep.subr.bf16.mxu0 %v405
    %2009 = vmatpush1.bf16.msra.mxu0 %v404
    %2010 = vmatprep.subr.bf16.mxu0 %v408
    %2011 = vmatpush1.bf16.msra.mxu0 %v407
    %2012 = vmatprep.subr.bf16.mxu0 %v411
    %2013 = vmatpush1.bf16.msra.mxu0 %v410
    %2014 = vmatprep.subr.bf16.mxu0 %v414
    %2015 = vmatpush1.bf16.msra.mxu0 %v413
    %2016 = vmatprep.mubr.bf16.mxu0 %v1983
    %2017 = vmatmul.mubr.bf16.gmra.mrb[0].mxu0 %v1982
    %v2018 = vpop.f32.mrb[0].mxu0
    %v2019 = vadd.f32 0.0, %v2018
    %v2020 = vpop.f32.mrb[0].mxu0
    %v2021 = vadd.f32 0.0, %v2020
    %v2022 = vpop.f32.mrb[0].mxu0
    %v2023 = vpop.f32.mrb[0].mxu0
    %2024 = vdwg.mxu0
    %2025 = vmatprep.subr.bf16.mxu0 0
    %2026 = vmatpush1.bf16.msra.mxu0 %v370
    %2027 = vmatprep.subr.bf16.mxu0 0
    %2028 = vmatpush1.bf16.msra.mxu0 %v373
    %2029 = vmatprep.subr.bf16.mxu0 0
    %2030 = vmatpush1.bf16.msra.mxu0 %v376
    %2031 = vmatprep.subr.bf16.mxu0 0
    %2032 = vmatpush1.bf16.msra.mxu0 %v379
    %2033 = vmatprep.subr.bf16.mxu0 0
    %2034 = vmatpush1.bf16.msra.mxu0 %v382
    %2035 = vmatprep.subr.bf16.mxu0 0
    %2036 = vmatpush1.bf16.msra.mxu0 %v385
    %2037 = vmatprep.subr.bf16.mxu0 0
    %2038 = vmatpush1.bf16.msra.mxu0 %v388
    %2039 = vmatprep.subr.bf16.mxu0 0
    %2040 = vmatpush1.bf16.msra.mxu0 %v391
    %2041 = vmatprep.subr.bf16.mxu0 0
    %2042 = vmatpush1.bf16.msra.mxu0 %v394
    %2043 = vmatprep.subr.bf16.mxu0 0
    %2044 = vmatpush1.bf16.msra.mxu0 %v397
    %2045 = vmatprep.subr.bf16.mxu0 0
    %2046 = vmatpush1.bf16.msra.mxu0 %v400
    %2047 = vmatprep.subr.bf16.mxu0 0
    %2048 = vmatpush1.bf16.msra.mxu0 %v403
    %2049 = vmatprep.subr.bf16.mxu0 0
    %2050 = vmatpush1.bf16.msra.mxu0 %v406
    %2051 = vmatprep.subr.bf16.mxu0 0
    %2052 = vmatpush1.bf16.msra.mxu0 %v409
    %2053 = vmatprep.subr.bf16.mxu0 0
    %2054 = vmatpush1.bf16.msra.mxu0 %v412
    %2055 = vmatprep.subr.bf16.mxu0 0
    %2056 = vmatpush1.bf16.msra.mxu0 %v415
    %2057 = vmatprep.mubr.bf16.mxu0 %v1983
    %2058 = vmatmul.mubr.bf16.gmra.mrb[0].mxu0 %v1982
    %v2059 = vpop.f32.mrb[0].mxu0
    %v2060 = vadd.f32 0.0, %v2059
    %v2061 = vpop.f32.mrb[0].mxu0
    %v2062 = vpop.f32.mrb[0].mxu0
    %v2063 = vpop.f32.mrb[0].mxu0
    %2064 = vdwg.mxu0
    %2065 = vmatprep.subr.bf16.mxu0 %v643
    %2066 = vmatpush1.bf16.msra.mxu0 %v642
    %2067 = vmatprep.subr.bf16.mxu0 %v646
    %2068 = vmatpush1.bf16.msra.mxu0 %v645
    %2069 = vmatprep.subr.bf16.mxu0 %v649
    %2070 = vmatpush1.bf16.msra.mxu0 %v648
    %2071 = vmatprep.subr.bf16.mxu0 %v652
    %2072 = vmatpush1.bf16.msra.mxu0 %v651
    %2073 = vmatprep.subr.bf16.mxu0 %v655
    %2074 = vmatpush1.bf16.msra.mxu0 %v654
    %2075 = vmatprep.subr.bf16.mxu0 %v658
    %2076 = vmatpush1.bf16.msra.mxu0 %v657
    %2077 = vmatprep.subr.bf16.mxu0 %v661
    %2078 = vmatpush1.bf16.msra.mxu0 %v660
    %2079 = vmatprep.subr.bf16.mxu0 %v664
    %2080 = vmatpush1.bf16.msra.mxu0 %v663
    %2081 = vmatprep.subr.bf16.mxu0 0
    %2082 = vmatpush1.bf16.msra.mxu0 0
    %2083 = vmatprep.subr.bf16.mxu0 0
    %2084 = vmatpush1.bf16.msra.mxu0 0
    %2085 = vmatprep.subr.bf16.mxu0 0
    %2086 = vmatpush1.bf16.msra.mxu0 0
    %2087 = vmatprep.subr.bf16.mxu0 0
    %2088 = vmatpush1.bf16.msra.mxu0 0
    %2089 = vmatprep.subr.bf16.mxu0 0
    %2090 = vmatpush1.bf16.msra.mxu0 0
    %2091 = vmatprep.subr.bf16.mxu0 0
    %2092 = vmatpush1.bf16.msra.mxu0 0
    %2093 = vmatprep.subr.bf16.mxu0 0
    %2094 = vmatpush1.bf16.msra.mxu0 0
    %2095 = vmatprep.subr.bf16.mxu0 0
    %2096 = vmatpush1.bf16.msra.mxu0 0
    %2097 = vmatprep.mubr.bf16.mxu0 0
    %2098 = vmatmul.mubr.bf16.gmra.mrb[0].mxu0 %v1910
    %v2099 = vpop.f32.mrb[0].mxu0
    %v2100 = vadd.f32 %v550, %v2099
    %v2101 = vpop.f32.mrb[0].mxu0
    %v2102 = vadd.f32 %v554, %v2101
    %v2103 = vpop.f32.mrb[0].mxu0
    %v2104 = vpop.f32.mrb[0].mxu0
    %2105 = vdwg.mxu0
    %2106 = vmatprep.subr.bf16.mxu0 0
    %2107 = vmatpush1.bf16.msra.mxu0 %v644
    %2108 = vmatprep.subr.bf16.mxu0 0
    %2109 = vmatpush1.bf16.msra.mxu0 %v647
    %2110 = vmatprep.subr.bf16.mxu0 0
    %2111 = vmatpush1.bf16.msra.mxu0 %v650
    %2112 = vmatprep.subr.bf16.mxu0 0
    %2113 = vmatpush1.bf16.msra.mxu0 %v653
    %2114 = vmatprep.subr.bf16.mxu0 0
    %2115 = vmatpush1.bf16.msra.mxu0 %v656
    %2116 = vmatprep.subr.bf16.mxu0 0
    %2117 = vmatpush1.bf16.msra.mxu0 %v659
    %2118 = vmatprep.subr.bf16.mxu0 0
    %2119 = vmatpush1.bf16.msra.mxu0 %v662
    %2120 = vmatprep.subr.bf16.mxu0 0
    %2121 = vmatpush1.bf16.msra.mxu0 %v665
    %2122 = vmatprep.subr.bf16.mxu0 0
    %2123 = vmatpush1.bf16.msra.mxu0 0
    %2124 = vmatprep.subr.bf16.mxu0 0
    %2125 = vmatpush1.bf16.msra.mxu0 0
    %2126 = vmatprep.subr.bf16.mxu0 0
    %2127 = vmatpush1.bf16.msra.mxu0 0
    %2128 = vmatprep.subr.bf16.mxu0 0
    %2129 = vmatpush1.bf16.msra.mxu0 0
    %2130 = vmatprep.subr.bf16.mxu0 0
    %2131 = vmatpush1.bf16.msra.mxu0 0
    %2132 = vmatprep.subr.bf16.mxu0 0
    %2133 = vmatpush1.bf16.msra.mxu0 0
    %2134 = vmatprep.subr.bf16.mxu0 0
    %2135 = vmatpush1.bf16.msra.mxu0 0
    %2136 = vmatprep.subr.bf16.mxu0 0
    %2137 = vmatpush1.bf16.msra.mxu0 0
    %2138 = vmatprep.mubr.bf16.mxu0 0
    %2139 = vmatmul.mubr.bf16.gmra.mrb[0].mxu0 %v1910
    %v2140 = vpop.f32.mrb[0].mxu0
    %v2141 = vadd.f32 %v558, %v2140
    %v2142 = vpop.f32.mrb[0].mxu0
    %v2143 = vpop.f32.mrb[0].mxu0
    %v2144 = vpop.f32.mrb[0].mxu0
    %2145 = vdwg.mxu0
    %v2146 = vadd.f32 %v2019, %v2100
    %v2147 = vxor.u32 %v2146, 2147483648
    %v2148 = vmul.f32 %v2147, 1.442695
    %v2149 = vpow.pop %v2148
    %v2150 = vadd.f32 %v2149, 1.0
    %v2151 = vrcp.pop %v2150
    %v2152 = vmul.f32 1.0, %v2151
    %v2153 = vadd.f32 %v2021, %v2102
    %v2154 = vxor.u32 %v2153, 2147483648
    %v2155 = vmul.f32 %v2154, 1.442695
    %v2156 = vpow.pop %v2155
    %v2157 = vadd.f32 %v2156, 1.0
    %v2158 = vrcp.pop %v2157
    %v2159 = vmul.f32 1.0, %v2158
    %v2160 = vmul.f32 %v2152, %v2141
    %v2161 = vadd.f32 %v2060, %v2160
    %v2162 = vtanh.pop %v2161
    %v2163 = vsub.f32 1.0, %v2159
    %v2164 = vmul.f32 %v2163, %v2162
    %v2165 = vmul.f32 %v2159, %v1909
    %v2166 = vadd.f32 %v2164, %v2165
    %v2167 = vpack.c.bf16 %v2166, %v2166
    %2168 = vmatprep.subr.bf16.mxu0 %v853
    %2169 = vmatpush1.bf16.msra.mxu0 %v852
    %2170 = vmatprep.subr.bf16.mxu0 %v855
    %2171 = vmatpush1.bf16.msra.mxu0 %v854
    %2172 = vmatprep.subr.bf16.mxu0 %v857
    %2173 = vmatpush1.bf16.msra.mxu0 %v856
    %2174 = vmatprep.subr.bf16.mxu0 %v859
    %2175 = vmatpush1.bf16.msra.mxu0 %v858
    %2176 = vmatprep.subr.bf16.mxu0 %v861
    %2177 = vmatpush1.bf16.msra.mxu0 %v860
    %2178 = vmatprep.subr.bf16.mxu0 %v863
    %2179 = vmatpush1.bf16.msra.mxu0 %v862
    %2180 = vmatprep.subr.bf16.mxu0 %v865
    %2181 = vmatpush1.bf16.msra.mxu0 %v864
    %2182 = vmatprep.subr.bf16.mxu0 %v867
    %2183 = vmatpush1.bf16.msra.mxu0 %v866
    %2184 = vmatprep.subr.bf16.mxu0 0
    %2185 = vmatpush1.bf16.msra.mxu0 0
    %2186 = vmatprep.subr.bf16.mxu0 0
    %2187 = vmatpush1.bf16.msra.mxu0 0
    %2188 = vmatprep.subr.bf16.mxu0 0
    %2189 = vmatpush1.bf16.msra.mxu0 0
    %2190 = vmatprep.subr.bf16.mxu0 0
    %2191 = vmatpush1.bf16.msra.mxu0 0
    %2192 = vmatprep.subr.bf16.mxu0 0
    %2193 = vmatpush1.bf16.msra.mxu0 0
    %2194 = vmatprep.subr.bf16.mxu0 0
    %2195 = vmatpush1.bf16.msra.mxu0 0
    %2196 = vmatprep.subr.bf16.mxu0 0
    %2197 = vmatpush1.bf16.msra.mxu0 0
    %2198 = vmatprep.subr.bf16.mxu0 0
    %2199 = vmatpush1.bf16.msra.mxu0 0
    %2200 = vmatprep.mubr.bf16.mxu0 0
    %2201 = vmatmul.mubr.bf16.gmra.mrb[0].mxu0 %v2167
    %v2202 = vpop.f32.mrb[0].mxu0
    %v2203 = vadd.f32 %v797, %v2202
    %v2204 = vpop.f32.mrb[0].mxu0
    %v2205 = vadd.f32 %v801, %v2204
    %v2206 = vpop.f32.mrb[0].mxu0
    %v2207 = vpop.f32.mrb[0].mxu0
    %2208 = vdwg.mxu0
    %v2209 = vmax.f32 %v2203, %v2205
    %2210 = vmax.xlane.f32.xlu0 %v2209
    %v2211 = vpop.xlane.xlu0 %2210
    %v2212 = vsub.f32 %v2203, %v2211
    %v2213 = vsub.f32 %v2205, %v2211
    %v2214 = vmul.f32 %v2212, 1.442695
    %v2215 = vpow.pop %v2214
    %v2216 = vmul.f32 %v2213, 1.442695
    %v2217 = vpow.pop %v2216
    %v2218 = vadd.f32 %v2215, %v2217
    %2219 = vadd.xlane.f32.xlu0 %v2218
    %v2220 = vpop.xlane.xlu0 %2219
    %v2221 = vlog2.pop %v2220
    %v2222 = vmul.f32 %v2221, 0.6931472
    %v2223 = vsub.f32 %v2212, %v2222
    %v2224 = vsub.f32 %v2213, %v2222
    %s2225 = scalar_lea.vmem [#allocation9], 80
    %2226 = vst [vmem:[%s2225] sm:$0xff] %v2223
    %2227 = vst [vmem:[%s2225 + $0x8] sm:$0xff] %v2224
    %s2228 = scalar_lea.vmem %s0, 48
    %v2229 = vld [vmem:[%s2228] sm:$0xff]
    %2230 = vset.pattern.permute.xlu0 0
    %2231 = vperm.xlu0 %2230, %v2229
    %v2232 = vpop.permute.xlu0 %2231
    %vm2233 = vcmp.eq.s32.totalorder %v79, %v2232
    %vm2234 = vcmp.eq.s32.totalorder %v80, %v2232
    %v2235 = vsel %vm2233, 1, 0
    %v2236 = vsel %vm2234, 1, 0
    %v2237 = vcvt.s32.f32 %v2235
    %v2238 = vcvt.s32.f32 %v2236
    %v2239 = vpack.c.bf16 %v2237, %v2237
    %v2240 = vpack.c.bf16 %v2238, %v2238
    %2241 = vmatprep.subr.bf16.mxu0 %v369
    %2242 = vmatpush1.bf16.msra.mxu0 %v368
    %2243 = vmatprep.subr.bf16.mxu0 %v372
    %2244 = vmatpush1.bf16.msra.mxu0 %v371
    %2245 = vmatprep.subr.bf16.mxu0 %v375
    %2246 = vmatpush1.bf16.msra.mxu0 %v374
    %2247 = vmatprep.subr.bf16.mxu0 %v378
    %2248 = vmatpush1.bf16.msra.mxu0 %v377
    %2249 = vmatprep.subr.bf16.mxu0 %v381
    %2250 = vmatpush1.bf16.msra.mxu0 %v380
    %2251 = vmatprep.subr.bf16.mxu0 %v384
    %2252 = vmatpush1.bf16.msra.mxu0 %v383
    %2253 = vmatprep.subr.bf16.mxu0 %v387
    %2254 = vmatpush1.bf16.msra.mxu0 %v386
    %2255 = vmatprep.subr.bf16.mxu0 %v390
    %2256 = vmatpush1.bf16.msra.mxu0 %v389
    %2257 = vmatprep.subr.bf16.mxu0 %v393
    %2258 = vmatpush1.bf16.msra.mxu0 %v392
    %2259 = vmatprep.subr.bf16.mxu0 %v396
    %2260 = vmatpush1.bf16.msra.mxu0 %v395
    %2261 = vmatprep.subr.bf16.mxu0 %v399
    %2262 = vmatpush1.bf16.msra.mxu0 %v398
    %2263 = vmatprep.subr.bf16.mxu0 %v402
    %2264 = vmatpush1.bf16.msra.mxu0 %v401
    %2265 = vmatprep.subr.bf16.mxu0 %v405
    %2266 = vmatpush1.bf16.msra.mxu0 %v404
    %2267 = vmatprep.subr.bf16.mxu0 %v408
    %2268 = vmatpush1.bf16.msra.mxu0 %v407
    %2269 = vmatprep.subr.bf16.mxu0 %v411
    %2270 = vmatpush1.bf16.msra.mxu0 %v410
    %2271 = vmatprep.subr.bf16.mxu0 %v414
    %2272 = vmatpush1.bf16.msra.mxu0 %v413
    %2273 = vmatprep.mubr.bf16.mxu0 %v2240
    %2274 = vmatmul.mubr.bf16.gmra.mrb[0].mxu0 %v2239
    %v2275 = vpop.f32.mrb[0].mxu0
    %v2276 = vadd.f32 0.0, %v2275
    %v2277 = vpop.f32.mrb[0].mxu0
    %v2278 = vadd.f32 0.0, %v2277
    %v2279 = vpop.f32.mrb[0].mxu0
    %v2280 = vpop.f32.mrb[0].mxu0
    %2281 = vdwg.mxu0
    %2282 = vmatprep.subr.bf16.mxu0 0
    %2283 = vmatpush1.bf16.msra.mxu0 %v370
    %2284 = vmatprep.subr.bf16.mxu0 0
    %2285 = vmatpush1.bf16.msra.mxu0 %v373
    %2286 = vmatprep.subr.bf16.mxu0 0
    %2287 = vmatpush1.bf16.msra.mxu0 %v376
    %2288 = vmatprep.subr.bf16.mxu0 0
    %2289 = vmatpush1.bf16.msra.mxu0 %v379
    %2290 = vmatprep.subr.bf16.mxu0 0
    %2291 = vmatpush1.bf16.msra.mxu0 %v382
    %2292 = vmatprep.subr.bf16.mxu0 0
    %2293 = vmatpush1.bf16.msra.mxu0 %v385
    %2294 = vmatprep.subr.bf16.mxu0 0
    %2295 = vmatpush1.bf16.msra.mxu0 %v388
    %2296 = vmatprep.subr.bf16.mxu0 0
    %2297 = vmatpush1.bf16.msra.mxu0 %v391
    %2298 = vmatprep.subr.bf16.mxu0 0
    %2299 = vmatpush1.bf16.msra.mxu0 %v394
    %2300 = vmatprep.subr.bf16.mxu0 0
    %2301 = vmatpush1.bf16.msra.mxu0 %v397
    %2302 = vmatprep.subr.bf16.mxu0 0
    %2303 = vmatpush1.bf16.msra.mxu0 %v400
    %2304 = vmatprep.subr.bf16.mxu0 0
    %2305 = vmatpush1.bf16.msra.mxu0 %v403
    %2306 = vmatprep.subr.bf16.mxu0 0
    %2307 = vmatpush1.bf16.msra.mxu0 %v406
    %2308 = vmatprep.subr.bf16.mxu0 0
    %2309 = vmatpush1.bf16.msra.mxu0 %v409
    %2310 = vmatprep.subr.bf16.mxu0 0
    %2311 = vmatpush1.bf16.msra.mxu0 %v412
    %2312 = vmatprep.subr.bf16.mxu0 0
    %2313 = vmatpush1.bf16.msra.mxu0 %v415
    %2314 = vmatprep.mubr.bf16.mxu0 %v2240
    %2315 = vmatmul.mubr.bf16.gmra.mrb[0].mxu0 %v2239
    %v2316 = vpop.f32.mrb[0].mxu0
    %v2317 = vadd.f32 0.0, %v2316
    %v2318 = vpop.f32.mrb[0].mxu0
    %v2319 = vpop.f32.mrb[0].mxu0
    %v2320 = vpop.f32.mrb[0].mxu0
    %2321 = vdwg.mxu0
    %2322 = vmatprep.subr.bf16.mxu0 %v643
    %2323 = vmatpush1.bf16.msra.mxu0 %v642
    %2324 = vmatprep.subr.bf16.mxu0 %v646
    %2325 = vmatpush1.bf16.msra.mxu0 %v645
    %2326 = vmatprep.subr.bf16.mxu0 %v649
    %2327 = vmatpush1.bf16.msra.mxu0 %v648
    %2328 = vmatprep.subr.bf16.mxu0 %v652
    %2329 = vmatpush1.bf16.msra.mxu0 %v651
    %2330 = vmatprep.subr.bf16.mxu0 %v655
    %2331 = vmatpush1.bf16.msra.mxu0 %v654
    %2332 = vmatprep.subr.bf16.mxu0 %v658
    %2333 = vmatpush1.bf16.msra.mxu0 %v657
    %2334 = vmatprep.subr.bf16.mxu0 %v661
    %2335 = vmatpush1.bf16.msra.mxu0 %v660
    %2336 = vmatprep.subr.bf16.mxu0 %v664
    %2337 = vmatpush1.bf16.msra.mxu0 %v663
    %2338 = vmatprep.subr.bf16.mxu0 0
    %2339 = vmatpush1.bf16.msra.mxu0 0
    %2340 = vmatprep.subr.bf16.mxu0 0
    %2341 = vmatpush1.bf16.msra.mxu0 0
    %2342 = vmatprep.subr.bf16.mxu0 0
    %2343 = vmatpush1.bf16.msra.mxu0 0
    %2344 = vmatprep.subr.bf16.mxu0 0
    %2345 = vmatpush1.bf16.msra.mxu0 0
    %2346 = vmatprep.subr.bf16.mxu0 0
    %2347 = vmatpush1.bf16.msra.mxu0 0
    %2348 = vmatprep.subr.bf16.mxu0 0
    %2349 = vmatpush1.bf16.msra.mxu0 0
    %2350 = vmatprep.subr.bf16.mxu0 0
    %2351 = vmatpush1.bf16.msra.mxu0 0
    %2352 = vmatprep.subr.bf16.mxu0 0
    %2353 = vmatpush1.bf16.msra.mxu0 0
    %2354 = vmatprep.mubr.bf16.mxu0 0
    %2355 = vmatmul.mubr.bf16.gmra.mrb[0].mxu0 %v2167
    %v2356 = vpop.f32.mrb[0].mxu0
    %v2357 = vadd.f32 %v550, %v2356
    %v2358 = vpop.f32.mrb[0].mxu0
    %v2359 = vadd.f32 %v554, %v2358
    %v2360 = vpop.f32.mrb[0].mxu0
    %v2361 = vpop.f32.mrb[0].mxu0
    %2362 = vdwg.mxu0
    %2363 = vmatprep.subr.bf16.mxu0 0
    %2364 = vmatpush1.bf16.msra.mxu0 %v644
    %2365 = vmatprep.subr.bf16.mxu0 0
    %2366 = vmatpush1.bf16.msra.mxu0 %v647
    %2367 = vmatprep.subr.bf16.mxu0 0
    %2368 = vmatpush1.bf16.msra.mxu0 %v650
    %2369 = vmatprep.subr.bf16.mxu0 0
    %2370 = vmatpush1.bf16.msra.mxu0 %v653
    %2371 = vmatprep.subr.bf16.mxu0 0
    %2372 = vmatpush1.bf16.msra.mxu0 %v656
    %2373 = vmatprep.subr.bf16.mxu0 0
    %2374 = vmatpush1.bf16.msra.mxu0 %v659
    %2375 = vmatprep.subr.bf16.mxu0 0
    %2376 = vmatpush1.bf16.msra.mxu0 %v662
    %2377 = vmatprep.subr.bf16.mxu0 0
    %2378 = vmatpush1.bf16.msra.mxu0 %v665
    %2379 = vmatprep.subr.bf16.mxu0 0
    %2380 = vmatpush1.bf16.msra.mxu0 0
    %2381 = vmatprep.subr.bf16.mxu0 0
    %2382 = vmatpush1.bf16.msra.mxu0 0
    %2383 = vmatprep.subr.bf16.mxu0 0
    %2384 = vmatpush1.bf16.msra.mxu0 0
    %2385 = vmatprep.subr.bf16.mxu0 0
    %2386 = vmatpush1.bf16.msra.mxu0 0
    %2387 = vmatprep.subr.bf16.mxu0 0
    %2388 = vmatpush1.bf16.msra.mxu0 0
    %2389 = vmatprep.subr.bf16.mxu0 0
    %2390 = vmatpush1.bf16.msra.mxu0 0
    %2391 = vmatprep.subr.bf16.mxu0 0
    %2392 = vmatpush1.bf16.msra.mxu0 0
    %2393 = vmatprep.subr.bf16.mxu0 0
    %2394 = vmatpush1.bf16.msra.mxu0 0
    %2395 = vmatprep.mubr.bf16.mxu0 0
    %2396 = vmatmul.mubr.bf16.gmra.mrb[0].mxu0 %v2167
    %v2397 = vpop.f32.mrb[0].mxu0
    %v2398 = vadd.f32 %v558, %v2397
    %v2399 = vpop.f32.mrb[0].mxu0
    %v2400 = vpop.f32.mrb[0].mxu0
    %v2401 = vpop.f32.mrb[0].mxu0
    %2402 = vdwg.mxu0
    %v2403 = vadd.f32 %v2276, %v2357
    %v2404 = vxor.u32 %v2403, 2147483648
    %v2405 = vmul.f32 %v2404, 1.442695
    %v2406 = vpow.pop %v2405
    %v2407 = vadd.f32 %v2406, 1.0
    %v2408 = vrcp.pop %v2407
    %v2409 = vmul.f32 1.0, %v2408
    %v2410 = vadd.f32 %v2278, %v2359
    %v2411 = vxor.u32 %v2410, 2147483648
    %v2412 = vmul.f32 %v2411, 1.442695
    %v2413 = vpow.pop %v2412
    %v2414 = vadd.f32 %v2413, 1.0
    %v2415 = vrcp.pop %v2414
    %v2416 = vmul.f32 1.0, %v2415
    %v2417 = vmul.f32 %v2409, %v2398
    %v2418 = vadd.f32 %v2317, %v2417
    %v2419 = vtanh.pop %v2418
    %v2420 = vsub.f32 1.0, %v2416
    %v2421 = vmul.f32 %v2420, %v2419
    %v2422 = vmul.f32 %v2416, %v2166
    %v2423 = vadd.f32 %v2421, %v2422
    %v2424 = vpack.c.bf16 %v2423, %v2423
    %2425 = vmatprep.subr.bf16.mxu0 %v853
    %2426 = vmatpush1.bf16.msra.mxu0 %v852
    %2427 = vmatprep.subr.bf16.mxu0 %v855
    %2428 = vmatpush1.bf16.msra.mxu0 %v854
    %2429 = vmatprep.subr.bf16.mxu0 %v857
    %2430 = vmatpush1.bf16.msra.mxu0 %v856
    %2431 = vmatprep.subr.bf16.mxu0 %v859
    %2432 = vmatpush1.bf16.msra.mxu0 %v858
    %2433 = vmatprep.subr.bf16.mxu0 %v861
    %2434 = vmatpush1.bf16.msra.mxu0 %v860
    %2435 = vmatprep.subr.bf16.mxu0 %v863
    %2436 = vmatpush1.bf16.msra.mxu0 %v862
    %2437 = vmatprep.subr.bf16.mxu0 %v865
    %2438 = vmatpush1.bf16.msra.mxu0 %v864
    %2439 = vmatprep.subr.bf16.mxu0 %v867
    %2440 = vmatpush1.bf16.msra.mxu0 %v866
    %2441 = vmatprep.subr.bf16.mxu0 0
    %2442 = vmatpush1.bf16.msra.mxu0 0
    %2443 = vmatprep.subr.bf16.mxu0 0
    %2444 = vmatpush1.bf16.msra.mxu0 0
    %2445 = vmatprep.subr.bf16.mxu0 0
    %2446 = vmatpush1.bf16.msra.mxu0 0
    %2447 = vmatprep.subr.bf16.mxu0 0
    %2448 = vmatpush1.bf16.msra.mxu0 0
    %2449 = vmatprep.subr.bf16.mxu0 0
    %2450 = vmatpush1.bf16.msra.mxu0 0
    %2451 = vmatprep.subr.bf16.mxu0 0
    %2452 = vmatpush1.bf16.msra.mxu0 0
    %2453 = vmatprep.subr.bf16.mxu0 0
    %2454 = vmatpush1.bf16.msra.mxu0 0
    %2455 = vmatprep.subr.bf16.mxu0 0
    %2456 = vmatpush1.bf16.msra.mxu0 0
    %2457 = vmatprep.mubr.bf16.mxu0 0
    %2458 = vmatmul.mubr.bf16.gmra.mrb[0].mxu0 %v2424
    %v2459 = vpop.f32.mrb[0].mxu0
    %v2460 = vadd.f32 %v797, %v2459
    %v2461 = vpop.f32.mrb[0].mxu0
    %v2462 = vadd.f32 %v801, %v2461
    %v2463 = vpop.f32.mrb[0].mxu0
    %v2464 = vpop.f32.mrb[0].mxu0
    %2465 = vdwg.mxu0
    %v2466 = vmax.f32 %v2460, %v2462
    %2467 = vmax.xlane.f32.xlu0 %v2466
    %v2468 = vpop.xlane.xlu0 %2467
    %v2469 = vsub.f32 %v2460, %v2468
    %v2470 = vsub.f32 %v2462, %v2468
    %v2471 = vmul.f32 %v2469, 1.442695
    %v2472 = vpow.pop %v2471
    %v2473 = vmul.f32 %v2470, 1.442695
    %v2474 = vpow.pop %v2473
    %v2475 = vadd.f32 %v2472, %v2474
    %2476 = vadd.xlane.f32.xlu0 %v2475
    %v2477 = vpop.xlane.xlu0 %2476
    %v2478 = vlog2.pop %v2477
    %v2479 = vmul.f32 %v2478, 0.6931472
    %v2480 = vsub.f32 %v2469, %v2479
    %v2481 = vsub.f32 %v2470, %v2479
    %s2482 = scalar_lea.vmem [#allocation9], 96
    %2483 = vst [vmem:[%s2482] sm:$0xff] %v2480
    %2484 = vst [vmem:[%s2482 + $0x8] sm:$0xff] %v2481
    %s2485 = scalar_lea.vmem %s0, 56
    %v2486 = vld [vmem:[%s2485] sm:$0xff]
    %2487 = vset.pattern.permute.xlu0 0
    %2488 = vperm.xlu0 %2487, %v2486
    %v2489 = vpop.permute.xlu0 %2488
    %vm2490 = vcmp.eq.s32.totalorder %v79, %v2489
    %vm2491 = vcmp.eq.s32.totalorder %v80, %v2489
    %v2492 = vsel %vm2490, 1, 0
    %v2493 = vsel %vm2491, 1, 0
    %v2494 = vcvt.s32.f32 %v2492
    %v2495 = vcvt.s32.f32 %v2493
    %v2496 = vpack.c.bf16 %v2494, %v2494
    %v2497 = vpack.c.bf16 %v2495, %v2495
    %2498 = vmatprep.subr.bf16.mxu0 %v369
    %2499 = vmatpush1.bf16.msra.mxu0 %v368
    %2500 = vmatprep.subr.bf16.mxu0 %v372
    %2501 = vmatpush1.bf16.msra.mxu0 %v371
    %2502 = vmatprep.subr.bf16.mxu0 %v375
    %2503 = vmatpush1.bf16.msra.mxu0 %v374
    %2504 = vmatprep.subr.bf16.mxu0 %v378
    %2505 = vmatpush1.bf16.msra.mxu0 %v377
    %2506 = vmatprep.subr.bf16.mxu0 %v381
    %2507 = vmatpush1.bf16.msra.mxu0 %v380
    %2508 = vmatprep.subr.bf16.mxu0 %v384
    %2509 = vmatpush1.bf16.msra.mxu0 %v383
    %2510 = vmatprep.subr.bf16.mxu0 %v387
    %2511 = vmatpush1.bf16.msra.mxu0 %v386
    %2512 = vmatprep.subr.bf16.mxu0 %v390
    %2513 = vmatpush1.bf16.msra.mxu0 %v389
    %2514 = vmatprep.subr.bf16.mxu0 %v393
    %2515 = vmatpush1.bf16.msra.mxu0 %v392
    %2516 = vmatprep.subr.bf16.mxu0 %v396
    %2517 = vmatpush1.bf16.msra.mxu0 %v395
    %2518 = vmatprep.subr.bf16.mxu0 %v399
    %2519 = vmatpush1.bf16.msra.mxu0 %v398
    %2520 = vmatprep.subr.bf16.mxu0 %v402
    %2521 = vmatpush1.bf16.msra.mxu0 %v401
    %2522 = vmatprep.subr.bf16.mxu0 %v405
    %2523 = vmatpush1.bf16.msra.mxu0 %v404
    %2524 = vmatprep.subr.bf16.mxu0 %v408
    %2525 = vmatpush1.bf16.msra.mxu0 %v407
    %2526 = vmatprep.subr.bf16.mxu0 %v411
    %2527 = vmatpush1.bf16.msra.mxu0 %v410
    %2528 = vmatprep.subr.bf16.mxu0 %v414
    %2529 = vmatpush1.bf16.msra.mxu0 %v413
    %2530 = vmatprep.mubr.bf16.mxu0 %v2497
    %2531 = vmatmul.mubr.bf16.gmra.mrb[0].mxu0 %v2496
    %v2532 = vpop.f32.mrb[0].mxu0
    %v2533 = vadd.f32 0.0, %v2532
    %v2534 = vpop.f32.mrb[0].mxu0
    %v2535 = vadd.f32 0.0, %v2534
    %v2536 = vpop.f32.mrb[0].mxu0
    %v2537 = vpop.f32.mrb[0].mxu0
    %2538 = vdwg.mxu0
    %2539 = vmatprep.subr.bf16.mxu0 0
    %2540 = vmatpush1.bf16.msra.mxu0 %v370
    %2541 = vmatprep.subr.bf16.mxu0 0
    %2542 = vmatpush1.bf16.msra.mxu0 %v373
    %2543 = vmatprep.subr.bf16.mxu0 0
    %2544 = vmatpush1.bf16.msra.mxu0 %v376
    %2545 = vmatprep.subr.bf16.mxu0 0
    %2546 = vmatpush1.bf16.msra.mxu0 %v379
    %2547 = vmatprep.subr.bf16.mxu0 0
    %2548 = vmatpush1.bf16.msra.mxu0 %v382
    %2549 = vmatprep.subr.bf16.mxu0 0
    %2550 = vmatpush1.bf16.msra.mxu0 %v385
    %2551 = vmatprep.subr.bf16.mxu0 0
    %2552 = vmatpush1.bf16.msra.mxu0 %v388
    %2553 = vmatprep.subr.bf16.mxu0 0
    %2554 = vmatpush1.bf16.msra.mxu0 %v391
    %2555 = vmatprep.subr.bf16.mxu0 0
    %2556 = vmatpush1.bf16.msra.mxu0 %v394
    %2557 = vmatprep.subr.bf16.mxu0 0
    %2558 = vmatpush1.bf16.msra.mxu0 %v397
    %2559 = vmatprep.subr.bf16.mxu0 0
    %2560 = vmatpush1.bf16.msra.mxu0 %v400
    %2561 = vmatprep.subr.bf16.mxu0 0
    %2562 = vmatpush1.bf16.msra.mxu0 %v403
    %2563 = vmatprep.subr.bf16.mxu0 0
    %2564 = vmatpush1.bf16.msra.mxu0 %v406
    %2565 = vmatprep.subr.bf16.mxu0 0
    %2566 = vmatpush1.bf16.msra.mxu0 %v409
    %2567 = vmatprep.subr.bf16.mxu0 0
    %2568 = vmatpush1.bf16.msra.mxu0 %v412
    %2569 = vmatprep.subr.bf16.mxu0 0
    %2570 = vmatpush1.bf16.msra.mxu0 %v415
    %2571 = vmatprep.mubr.bf16.mxu0 %v2497
    %2572 = vmatmul.mubr.bf16.gmra.mrb[0].mxu0 %v2496
    %v2573 = vpop.f32.mrb[0].mxu0
    %v2574 = vadd.f32 0.0, %v2573
    %v2575 = vpop.f32.mrb[0].mxu0
    %v2576 = vpop.f32.mrb[0].mxu0
    %v2577 = vpop.f32.mrb[0].mxu0
    %2578 = vdwg.mxu0
    %2579 = vmatprep.subr.bf16.mxu0 %v643
    %2580 = vmatpush1.bf16.msra.mxu0 %v642
    %2581 = vmatprep.subr.bf16.mxu0 %v646
    %2582 = vmatpush1.bf16.msra.mxu0 %v645
    %2583 = vmatprep.subr.bf16.mxu0 %v649
    %2584 = vmatpush1.bf16.msra.mxu0 %v648
    %2585 = vmatprep.subr.bf16.mxu0 %v652
    %2586 = vmatpush1.bf16.msra.mxu0 %v651
    %2587 = vmatprep.subr.bf16.mxu0 %v655
    %2588 = vmatpush1.bf16.msra.mxu0 %v654
    %2589 = vmatprep.subr.bf16.mxu0 %v658
    %2590 = vmatpush1.bf16.msra.mxu0 %v657
    %2591 = vmatprep.subr.bf16.mxu0 %v661
    %2592 = vmatpush1.bf16.msra.mxu0 %v660
    %2593 = vmatprep.subr.bf16.mxu0 %v664
    %2594 = vmatpush1.bf16.msra.mxu0 %v663
    %2595 = vmatprep.subr.bf16.mxu0 0
    %2596 = vmatpush1.bf16.msra.mxu0 0
    %2597 = vmatprep.subr.bf16.mxu0 0
    %2598 = vmatpush1.bf16.msra.mxu0 0
    %2599 = vmatprep.subr.bf16.mxu0 0
    %2600 = vmatpush1.bf16.msra.mxu0 0
    %2601 = vmatprep.subr.bf16.mxu0 0
    %2602 = vmatpush1.bf16.msra.mxu0 0
    %2603 = vmatprep.subr.bf16.mxu0 0
    %2604 = vmatpush1.bf16.msra.mxu0 0
    %2605 = vmatprep.subr.bf16.mxu0 0
    %2606 = vmatpush1.bf16.msra.mxu0 0
    %2607 = vmatprep.subr.bf16.mxu0 0
    %2608 = vmatpush1.bf16.msra.mxu0 0
    %2609 = vmatprep.subr.bf16.mxu0 0
    %2610 = vmatpush1.bf16.msra.mxu0 0
    %2611 = vmatprep.mubr.bf16.mxu0 0
    %2612 = vmatmul.mubr.bf16.gmra.mrb[0].mxu0 %v2424
    %v2613 = vpop.f32.mrb[0].mxu0
    %v2614 = vadd.f32 %v550, %v2613
    %v2615 = vpop.f32.mrb[0].mxu0
    %v2616 = vadd.f32 %v554, %v2615
    %v2617 = vpop.f32.mrb[0].mxu0
    %v2618 = vpop.f32.mrb[0].mxu0
    %2619 = vdwg.mxu0
    %2620 = vmatprep.subr.bf16.mxu0 0
    %2621 = vmatpush1.bf16.msra.mxu0 %v644
    %2622 = vmatprep.subr.bf16.mxu0 0
    %2623 = vmatpush1.bf16.msra.mxu0 %v647
    %2624 = vmatprep.subr.bf16.mxu0 0
    %2625 = vmatpush1.bf16.msra.mxu0 %v650
    %2626 = vmatprep.subr.bf16.mxu0 0
    %2627 = vmatpush1.bf16.msra.mxu0 %v653
    %2628 = vmatprep.subr.bf16.mxu0 0
    %2629 = vmatpush1.bf16.msra.mxu0 %v656
    %2630 = vmatprep.subr.bf16.mxu0 0
    %2631 = vmatpush1.bf16.msra.mxu0 %v659
    %2632 = vmatprep.subr.bf16.mxu0 0
    %2633 = vmatpush1.bf16.msra.mxu0 %v662
    %2634 = vmatprep.subr.bf16.mxu0 0
    %2635 = vmatpush1.bf16.msra.mxu0 %v665
    %2636 = vmatprep.subr.bf16.mxu0 0
    %2637 = vmatpush1.bf16.msra.mxu0 0
    %2638 = vmatprep.subr.bf16.mxu0 0
    %2639 = vmatpush1.bf16.msra.mxu0 0
    %2640 = vmatprep.subr.bf16.mxu0 0
    %2641 = vmatpush1.bf16.msra.mxu0 0
    %2642 = vmatprep.subr.bf16.mxu0 0
    %2643 = vmatpush1.bf16.msra.mxu0 0
    %2644 = vmatprep.subr.bf16.mxu0 0
    %2645 = vmatpush1.bf16.msra.mxu0 0
    %2646 = vmatprep.subr.bf16.mxu0 0
    %2647 = vmatpush1.bf16.msra.mxu0 0
    %2648 = vmatprep.subr.bf16.mxu0 0
    %2649 = vmatpush1.bf16.msra.mxu0 0
    %2650 = vmatprep.subr.bf16.mxu0 0
    %2651 = vmatpush1.bf16.msra.mxu0 0
    %2652 = vmatprep.mubr.bf16.mxu0 0
    %2653 = vmatmul.mubr.bf16.gmra.mrb[0].mxu0 %v2424
    %v2654 = vpop.f32.mrb[0].mxu0
    %v2655 = vadd.f32 %v558, %v2654
    %v2656 = vpop.f32.mrb[0].mxu0
    %v2657 = vpop.f32.mrb[0].mxu0
    %v2658 = vpop.f32.mrb[0].mxu0
    %2659 = vdwg.mxu0
    %v2660 = vadd.f32 %v2533, %v2614
    %v2661 = vxor.u32 %v2660, 2147483648
    %v2662 = vmul.f32 %v2661, 1.442695
    %v2663 = vpow.pop %v2662
    %v2664 = vadd.f32 %v2663, 1.0
    %v2665 = vrcp.pop %v2664
    %v2666 = vmul.f32 1.0, %v2665
    %v2667 = vadd.f32 %v2535, %v2616
    %v2668 = vxor.u32 %v2667, 2147483648
    %v2669 = vmul.f32 %v2668, 1.442695
    %v2670 = vpow.pop %v2669
    %v2671 = vadd.f32 %v2670, 1.0
    %v2672 = vrcp.pop %v2671
    %v2673 = vmul.f32 1.0, %v2672
    %v2674 = vmul.f32 %v2666, %v2655
    %v2675 = vadd.f32 %v2574, %v2674
    %v2676 = vtanh.pop %v2675
    %v2677 = vsub.f32 1.0, %v2673
    %v2678 = vmul.f32 %v2677, %v2676
    %v2679 = vmul.f32 %v2673, %v2423
    %v2680 = vadd.f32 %v2678, %v2679
    %v2681 = vpack.c.bf16 %v2680, %v2680
    %2682 = vmatprep.subr.bf16.mxu0 %v853
    %2683 = vmatpush1.bf16.msra.mxu0 %v852
    %2684 = vmatprep.subr.bf16.mxu0 %v855
    %2685 = vmatpush1.bf16.msra.mxu0 %v854
    %2686 = vmatprep.subr.bf16.mxu0 %v857
    %2687 = vmatpush1.bf16.msra.mxu0 %v856
    %2688 = vmatprep.subr.bf16.mxu0 %v859
    %2689 = vmatpush1.bf16.msra.mxu0 %v858
    %2690 = vmatprep.subr.bf16.mxu0 %v861
    %2691 = vmatpush1.bf16.msra.mxu0 %v860
    %2692 = vmatprep.subr.bf16.mxu0 %v863
    %2693 = vmatpush1.bf16.msra.mxu0 %v862
    %2694 = vmatprep.subr.bf16.mxu0 %v865
    %2695 = vmatpush1.bf16.msra.mxu0 %v864
    %2696 = vmatprep.subr.bf16.mxu0 %v867
    %2697 = vmatpush1.bf16.msra.mxu0 %v866
    %2698 = vmatprep.subr.bf16.mxu0 0
    %2699 = vmatpush1.bf16.msra.mxu0 0
    %2700 = vmatprep.subr.bf16.mxu0 0
    %2701 = vmatpush1.bf16.msra.mxu0 0
    %2702 = vmatprep.subr.bf16.mxu0 0
    %2703 = vmatpush1.bf16.msra.mxu0 0
    %2704 = vmatprep.subr.bf16.mxu0 0
    %2705 = vmatpush1.bf16.msra.mxu0 0
    %2706 = vmatprep.subr.bf16.mxu0 0
    %2707 = vmatpush1.bf16.msra.mxu0 0
    %2708 = vmatprep.subr.bf16.mxu0 0
    %2709 = vmatpush1.bf16.msra.mxu0 0
    %2710 = vmatprep.subr.bf16.mxu0 0
    %2711 = vmatpush1.bf16.msra.mxu0 0
    %2712 = vmatprep.subr.bf16.mxu0 0
    %2713 = vmatpush1.bf16.msra.mxu0 0
    %2714 = vmatprep.mubr.bf16.mxu0 0
    %2715 = vmatmul.mubr.bf16.gmra.mrb[0].mxu0 %v2681
    %v2716 = vpop.f32.mrb[0].mxu0
    %v2717 = vadd.f32 %v797, %v2716
    %v2718 = vpop.f32.mrb[0].mxu0
    %v2719 = vadd.f32 %v801, %v2718
    %v2720 = vpop.f32.mrb[0].mxu0
    %v2721 = vpop.f32.mrb[0].mxu0
    %2722 = vdwg.mxu0
    %v2723 = vmax.f32 %v2717, %v2719
    %2724 = vmax.xlane.f32.xlu0 %v2723
    %v2725 = vpop.xlane.xlu0 %2724
    %v2726 = vsub.f32 %v2717, %v2725
    %v2727 = vsub.f32 %v2719, %v2725
    %v2728 = vmul.f32 %v2726, 1.442695
    %v2729 = vpow.pop %v2728
    %v2730 = vmul.f32 %v2727, 1.442695
    %v2731 = vpow.pop %v2730
    %v2732 = vadd.f32 %v2729, %v2731
    %2733 = vadd.xlane.f32.xlu0 %v2732
    %v2734 = vpop.xlane.xlu0 %2733
    %v2735 = vlog2.pop %v2734
    %v2736 = vmul.f32 %v2735, 0.6931472
    %v2737 = vsub.f32 %v2726, %v2736
    %v2738 = vsub.f32 %v2727, %v2736
    %s2739 = scalar_lea.vmem [#allocation9], 112
    %2740 = vst [vmem:[%s2739] sm:$0xff] %v2737
    %2741 = vst [vmem:[%s2739 + $0x8] sm:$0xff] %v2738
    %2742 = vst [vmem:[#allocation2] sm:$0xff] %v2680
    // Predicated region
    $region46: #{decoder_rnn_decode.1} parent=1 // pred_check
      %p2743 = pneg %p72
    $region47: #{decoder_rnn_decode.1} parent=1 // pred_check_branch
      %2745 = sbr.rel (%p2743) target = $region49
    $region48: #{decoder_rnn_decode.1} parent=1 // pred_region
      %2746 = vst [vmem:[#allocation10] sm:$0xff] %v2680
    $region49: #{decoder_rnn_decode.1} parent=1 // pred_fallthru
      _
    // Predicated region
    $region50: #{decoder_rnn_decode.1} parent=1 // pred_check
      _
    $region51: #{decoder_rnn_decode.1} parent=1 // pred_check_branch
      %2748 = sbr.rel (0) target = $region53
    $region52: #{decoder_rnn_decode.1} parent=1 // pred_region
      %s2750 = ssub.s32 2048, 2048
      %2751 = vsyncadd [#allocation5], %s2750
      %s2752 = sshll.u32 [#allocation9], 4
      %s2753 = int_to_ptr.vmem [resolvable:$true] %s2752
      %2758 = dma.vmem_to_hbm [thread:$0]  %s2753, 2048, %s7, [#allocation5], 256, 256, 16
    $region53: #{decoder_rnn_decode.1} parent=1 // pred_fallthru
      _
    // Predicated region
    $region54: #{decoder_rnn_decode.1} parent=1 // pred_check
      _
    $region55: #{decoder_rnn_decode.1} parent=1 // pred_check_branch
      %2760 = sbr.rel (0) target = $region57
    $region56: #{decoder_rnn_decode.1} parent=1 // pred_region
      %s2762 = ssub.s32 128, 128
      %2763 = vsyncadd [#allocation11], %s2762
      %s2765 = sshll.u32 [#allocation10], 4
      %s2766 = int_to_ptr.vmem [resolvable:$true] %s2765
      %2768 = dma.vmem_to_hbm [thread:$0]  %s2766, 128, %s8, [#allocation11]
    $region57: #{decoder_rnn_decode.1} parent=1 // pred_fallthru
      _
    // Predicated region
    $region58: #{decoder_rnn_decode.1} parent=1 // pred_check
      _
    $region59: #{decoder_rnn_decode.1} parent=1 // pred_check_branch
      %2770 = sbr.rel (0) target = $region61
    $region60: #{decoder_rnn_decode.1} parent=1 // pred_region
      %2771 = dma.done [#allocation5], 2048
    $region61: #{decoder_rnn_decode.1} parent=1 // pred_fallthru
      _
    // Predicated region
    $region62: #{decoder_rnn_decode.1} parent=1 // pred_check
      _
    $region63: #{decoder_rnn_decode.1} parent=1 // pred_check_branch
      %2773 = sbr.rel (0) target = $region65
    $region64: #{decoder_rnn_decode.1} parent=1 // pred_region
      %2774 = dma.done [#allocation11], 128
    $region65: #{decoder_rnn_decode.1} parent=1 // pred_fallthru
      _
    %2775 = vsyncpa [#allocation4], 1
    %2776 = vsyncpa [#allocation7], 1
    %2777 = vsyncpa [#allocation5], 1
    %2778 = vsyncpa [#allocation11], 1

</llo_original>
